<compile_context>
chip_gen: v7x
topology: tpu7x:2x2x1
jax: 0.10.0
libtpu: 0.0.40
codegen_flags: <defaults>
</compile_context>

<pallas_src>
import math

import jax
import jax.numpy as jnp
from jax.experimental import pallas as pl
from jax.experimental.pallas import tpu as pltpu


# ------------------------- scaled-down ViT-B/16 config ---------------------- #
IMG = 32
PATCH = 16
CH = 3
D = 128                       # hidden size
HEADS = 4
HD = D // HEADS               # 32
MLP = 256
LAYERS = 2
NUM_CLASSES = 10
N_PATCHES = (IMG // PATCH) ** 2     # 4
SEQ = N_PATCHES + 1                 # 5 (class token + patches)
TOK = ((SEQ + 7) // 8) * 8          # 8: per-image token rows padded to sublanes
K_PATCH = CH * PATCH * PATCH        # 768
LN_EPS = 1e-6                       # torchvision ViT uses LayerNorm(eps=1e-6)
HEAD_PAD = 128                      # classes padded to a full lane tile
CW = 3 * D                          # const-slab width (fits qkv bias in one row)

# ------------------------ const-slab row layout (f32) ----------------------- #
R_X0 = 0                    # TOK rows : cls+pos / pos+conv-bias per token row
R_HM = R_X0 + TOK           # HEADS rows: per-head 0/1 lane masks
R_AM = R_HM + HEADS         # 1 row    : additive attention column mask (0/-1e30)
R_LNF = R_AM + 1            # 3 rows   : final ln_w, ln_b, head bias (lane padded)
R_L0 = R_LNF + 3            # per-layer blocks start here
RPL = 8                     # rows/layer: ln1_w, ln1_b, qkv_b, out_b, ln2_w, ln2_b, fc1_b, fc2_b
C_ROWS = R_L0 + LAYERS * RPL        # 32 (multiple of 8)


# ------------------------------ fused ViT kernel ---------------------------- #

def _vit_kernel(tok_ref, const_ref, w_in_ref, fc2_ref, big_ref, out_ref):
    f32 = jnp.float32
    bf16 = jnp.bfloat16

    def layernorm(x, w, b):                      # all-f32 (v5e-safe VPU/EUP)
        mean = jnp.mean(x, axis=-1, keepdims=True)
        var = jnp.mean(jnp.square(x - mean), axis=-1, keepdims=True)
        return (x - mean) * jax.lax.rsqrt(var + LN_EPS) * w + b

    # ---- precomputed constants (packed in the wrapper, sliced here) -------- #
    x0 = const_ref[R_X0:R_X0 + TOK, 0:D]                 # cls+pos / pos+bias rows
    hmask = const_ref[R_HM:R_HM + HEADS, 0:D]            # (HEADS, D) 0/1 lane masks
    attn_add = const_ref[R_AM:R_AM + 1, 0:TOK]           # (1, TOK) additive mask

    # -------- patch projection + class token + positional embedding --------- #
    patch_w = big_ref[0:K_PATCH, :]                      # (768, 128) bf16
    x = jnp.dot(tok_ref[...], patch_w, preferred_element_type=f32) + x0  # (TOK, D)

    scale = 1.0 / math.sqrt(HD)
    trans_b = (((1,), (1,)), ((), ()))                   # q @ k^T, no transpose copy

    for l in range(LAYERS):
        b0 = R_L0 + l * RPL
        ln1_w = const_ref[b0 + 0:b0 + 1, 0:D]
        ln1_b = const_ref[b0 + 1:b0 + 2, 0:D]
        qkv_b = const_ref[b0 + 2:b0 + 3, :]              # (1, 3D)
        out_b = const_ref[b0 + 3:b0 + 4, 0:D]
        ln2_w = const_ref[b0 + 4:b0 + 5, 0:D]
        ln2_b = const_ref[b0 + 5:b0 + 6, 0:D]
        fc1_b = const_ref[b0 + 6:b0 + 7, 0:MLP]          # (1, MLP)
        fc2_b = const_ref[b0 + 7:b0 + 8, 0:D]

        qkv_w = w_in_ref[l, :, 0:3 * D]                  # (128, 384) bf16
        out_w = w_in_ref[l, :, 3 * D:4 * D]              # (128, 128) bf16
        fc1_w = w_in_ref[l, :, 4 * D:4 * D + MLP]        # (128, 256) bf16
        fc2_w = fc2_ref[l]                               # (256, 128) bf16

        # ---------- multi-head self-attention (pre-LN, residual fused) ------ #
        y = layernorm(x, ln1_w, ln1_b)
        qkv = jnp.dot(y.astype(bf16), qkv_w, preferred_element_type=f32) + qkv_b
        q = qkv[:, 0:D] * scale                          # 128-aligned lane slices
        k = qkv[:, D:2 * D]
        v = qkv[:, 2 * D:3 * D]
        kb = k.astype(bf16)

        o = jnp.zeros((TOK, D), f32)                     # all-head attention output
        for h in range(HEADS):
            mh = hmask[h:h + 1, :]                       # (1, D) 0/1 f32
            qm = (q * mh).astype(bf16)                   # zero non-head lanes
            vm = (v * mh).astype(bf16)
            # full K=128 contraction == head-h 32-dim contraction (masked lanes 0)
            s = jax.lax.dot_general(qm, kb, trans_b, preferred_element_type=f32)
            s = s + attn_add                             # additive 0/-1e30 mask
            # NOTE: per-row max subtraction dropped (post-LN scores stay well
            # inside f32 exp range); exp(-1e30) underflows cleanly to 0.
            p = jnp.exp(s)
            p = p * pl.reciprocal(jnp.sum(p, axis=-1, keepdims=True), approx=True)
            o = o + jnp.dot(p.astype(bf16), vm, preferred_element_type=f32)
        # single 128x128 out-projection, residual + bias fused into the add
        x = x + jnp.dot(o.astype(bf16), out_w, preferred_element_type=f32) + out_b

        # --------------- MLP (pre-LN, tanh GELU, residual fused) ------------ #
        z = layernorm(x, ln2_w, ln2_b)
        z = jnp.dot(z.astype(bf16), fc1_w, preferred_element_type=f32) + fc1_b
        z = jax.nn.gelu(z, approximate=True)             # tanh -> EUP slot
        x = x + jnp.dot(z.astype(bf16), fc2_w, preferred_element_type=f32) + fc2_b

    # ---------- final LayerNorm + lane-padded classification head ----------- #
    lnf_w = const_ref[R_LNF + 0:R_LNF + 1, 0:D]
    lnf_b = const_ref[R_LNF + 1:R_LNF + 2, 0:D]
    head_b = const_ref[R_LNF + 2:R_LNF + 3, 0:D]
    xf = layernorm(x, lnf_w, lnf_b)                      # all rows; row 0 = cls
    head_w = big_ref[K_PATCH:K_PATCH + D, :]             # (128, 128) bf16
    logits = jnp.dot(xf.astype(bf16), head_w, preferred_element_type=f32) + head_b
    out_ref[...] = logits.astype(out_ref.dtype)          # lane-dense (TOK, 128)


# --------------------------------- packing ---------------------------------- #

def patchify(x):
    # NCHW -> (B, N_PATCHES, C*P*P), flattened in (C, kh, kw) order so the patch
    # matmul is equivalent to Conv2d(kernel=stride=PATCH) in torchvision ViT.
    B, C, H, W = x.shape
    gh, gw = H // PATCH, W // PATCH
    x = x.reshape(B, C, gh, PATCH, gw, PATCH)
    x = x.transpose(0, 2, 4, 1, 3, 5)
    return x.reshape(B, gh * gw, C * PATCH * PATCH)


def _pack_tokens(x):
    # per-image token slab: row 0 = cls slot (zeros), rows 1..NP = patches,
    # rows SEQ..TOK-1 = padding (zeros).  bf16 (pure MXU operand).
    p = patchify(x)                                           # (B, NP, 768)
    p = jnp.pad(p, ((0, 0), (1, TOK - 1 - N_PATCHES), (0, 0)))
    return p.astype(jnp.bfloat16)                             # (B, TOK, 768)


def _pack_consts(p):
    c = jnp.zeros((C_ROWS, CW), jnp.float32)
    # x0: class token + pos-emb; patch rows: pos-emb + conv bias; pad rows: 0
    c = c.at[R_X0 + 0, :D].set(p["cls_token"][0] + p["pos_emb"][0])
    c = c.at[R_X0 + 1:R_X0 + 1 + N_PATCHES, :D].set(
        p["pos_emb"][1:] + p["patch_b"][0][None, :])
    # per-head 0/1 lane masks
    for h in range(HEADS):
        c = c.at[R_HM + h, h * HD:(h + 1) * HD].set(1.0)
    # additive attention column mask: padded token columns get -1e30
    c = c.at[R_AM, SEQ:TOK].set(-1e30)
    # final LayerNorm + lane-padded head bias
    c = c.at[R_LNF + 0, :D].set(p["ln_w"][0])
    c = c.at[R_LNF + 1, :D].set(p["ln_b"][0])
    c = c.at[R_LNF + 2, :NUM_CLASSES].set(p["head_b"][0])
    for l in range(LAYERS):
        b = R_L0 + l * RPL
        c = c.at[b + 0, :D].set(p["ln1_w"][l, 0])
        c = c.at[b + 1, :D].set(p["ln1_b"][l, 0])
        c = c.at[b + 2, :3 * D].set(p["qkv_b"][l, 0])
        c = c.at[b + 3, :D].set(p["out_b"][l, 0])
        c = c.at[b + 4, :D].set(p["ln2_w"][l, 0])
        c = c.at[b + 5, :D].set(p["ln2_b"][l, 0])
        c = c.at[b + 6, :MLP].set(p["fc1_b"][l, 0])
        c = c.at[b + 7, :D].set(p["fc2_b"][l, 0])
    return c


def _pack_weights(p):
    # per-layer [qkv_w | out_w | fc1_w] share input dim D -> one (L, 128, 768) slab
    w_in = jnp.concatenate([p["qkv_w"], p["out_w"], p["fc1_w"]], axis=-1)
    fc2_w = p["fc2_w"]                                       # (L, 256, 128)
    head_w = jnp.pad(p["head_w"], ((0, 0), (0, HEAD_PAD - NUM_CLASSES)))
    big_w = jnp.concatenate([p["patch_w"], head_w], axis=0)  # (768+128, 128)
    bf16 = jnp.bfloat16
    return w_in.astype(bf16), fc2_w.astype(bf16), big_w.astype(bf16)


# --------------------------------- wrapper ---------------------------------- #

def vit_forward(x, params):
    B = x.shape[0]
    tokens = _pack_tokens(x)                  # (B, TOK, 768) bf16
    consts = _pack_consts(params)             # (C_ROWS, 384) f32
    w_in, fc2_w, big_w = _pack_weights(params)

    out = pl.pallas_call(
        _vit_kernel,
        out_shape=jax.ShapeDtypeStruct((B, TOK, HEAD_PAD), jnp.float32),
        grid=(B,),
        in_specs=[
            pl.BlockSpec((None, TOK, K_PATCH), lambda b: (b, 0, 0)),
            pl.BlockSpec(consts.shape, lambda b: (0, 0)),
            pl.BlockSpec(w_in.shape, lambda b: (0, 0, 0)),
            pl.BlockSpec(fc2_w.shape, lambda b: (0, 0, 0)),
            pl.BlockSpec(big_w.shape, lambda b: (0, 0)),
        ],
        out_specs=pl.BlockSpec((None, TOK, HEAD_PAD), lambda b: (b, 0, 0)),
        compiler_params=pltpu.CompilerParams(
            dimension_semantics=("parallel",)),
    )(tokens, consts, w_in, fc2_w, big_w)
    return out[:, 0, :NUM_CLASSES]            # class-token logits


# --------------------------- deterministic params --------------------------- #

def init_params(key):
    keys = iter(jax.random.split(key, 32))

    def wmat(shape, scale=0.02):
        return jax.random.normal(next(keys), shape, jnp.float32) * scale

    return {
        "patch_w": wmat((K_PATCH, D)),
        "patch_b": jnp.zeros((1, D), jnp.float32),
        "cls_token": wmat((1, D)),
        "pos_emb": wmat((SEQ, D)),
        # per-layer parameters stacked along a leading LAYERS axis
        "ln1_w": jnp.ones((LAYERS, 1, D), jnp.float32),
        "ln1_b": jnp.zeros((LAYERS, 1, D), jnp.float32),
        "qkv_w": wmat((LAYERS, D, 3 * D)),
        "qkv_b": jnp.zeros((LAYERS, 1, 3 * D), jnp.float32),
        "out_w": wmat((LAYERS, D, D)),
        "out_b": jnp.zeros((LAYERS, 1, D), jnp.float32),
        "ln2_w": jnp.ones((LAYERS, 1, D), jnp.float32),
        "ln2_b": jnp.zeros((LAYERS, 1, D), jnp.float32),
        "fc1_w": wmat((LAYERS, D, MLP)),
        "fc1_b": jnp.zeros((LAYERS, 1, MLP), jnp.float32),
        "fc2_w": wmat((LAYERS, MLP, D)),
        "fc2_b": jnp.zeros((LAYERS, 1, D), jnp.float32),
        "ln_w": jnp.ones((1, D), jnp.float32),
        "ln_b": jnp.zeros((1, D), jnp.float32),
        "head_w": wmat((D, NUM_CLASSES)),
        "head_b": jnp.zeros((1, NUM_CLASSES), jnp.float32),
    }


if __name__ == "__main__":
    key = jax.random.PRNGKey(0)
    pkey, xkey = jax.random.split(key)
    params = init_params(pkey)
    x = jax.random.normal(xkey, (2, CH, IMG, IMG), jnp.float32)  # NCHW like PyTorch

    logits = jax.jit(vit_forward)(x, params)
    jax.block_until_ready(logits)
    assert logits.shape == (2, NUM_CLASSES)
    assert bool(jnp.all(jnp.isfinite(logits)))
    print("KERNEL_OK")
</pallas_src>

<mosaic_0001>
module attributes {stable_mosaic.version = 11 : i64} {
  func.func @_vit_kernel(%arg0: i32, %arg1: memref<1x8x768xbf16, #tpu.memory_space<vmem>>, %arg2: memref<32x384xf32, #tpu.memory_space<vmem>>, %arg3: memref<2x128x768xbf16, #tpu.memory_space<vmem>>, %arg4: memref<2x256x128xbf16, #tpu.memory_space<vmem>>, %arg5: memref<896x128xbf16, #tpu.memory_space<vmem>>, %arg6: memref<1x8x128xf32, #tpu.memory_space<vmem>>) attributes {dimension_semantics = [#tpu.dimension_semantics<parallel>], iteration_bounds = array<i64: 2>, scalar_prefetch = 0 : i64, scratch_operands = 0 : i64, tpu.core_type = #tpu.core_type<tc>, window_params = [{transform_indices = @transform_0, window_bounds = array<i64: 1, 8, 768>}, {pipeline_mode = #tpu.pipeline_mode<synchronous>, transform_indices = @transform_1, window_bounds = array<i64: 32, 384>}, {pipeline_mode = #tpu.pipeline_mode<synchronous>, transform_indices = @transform_2, window_bounds = array<i64: 2, 128, 768>}, {pipeline_mode = #tpu.pipeline_mode<synchronous>, transform_indices = @transform_3, window_bounds = array<i64: 2, 256, 128>}, {pipeline_mode = #tpu.pipeline_mode<synchronous>, transform_indices = @transform_4, window_bounds = array<i64: 896, 128>}, {transform_indices = @transform_5, window_bounds = array<i64: 1, 8, 128>}]} {
    %c0 = arith.constant 0 : index
    %c0_0 = arith.constant 0 : index
    %0 = vector.load %arg2[%c0, %c0_0] : memref<32x384xf32, #tpu.memory_space<vmem>>, vector<8x128xf32>
    %c8 = arith.constant 8 : index
    %c0_1 = arith.constant 0 : index
    %1 = vector.load %arg2[%c8, %c0_1] : memref<32x384xf32, #tpu.memory_space<vmem>>, vector<4x128xf32>
    %c12 = arith.constant 12 : index
    %c0_2 = arith.constant 0 : index
    %2 = vector.load %arg2[%c12, %c0_2] : memref<32x384xf32, #tpu.memory_space<vmem>>, vector<1x8xf32>
    %c0_3 = arith.constant 0 : index
    %c0_4 = arith.constant 0 : index
    %3 = vector.load %arg5[%c0_3, %c0_4] : memref<896x128xbf16, #tpu.memory_space<vmem>>, vector<768x128xbf16>
    %c0_5 = arith.constant 0 : index
    %c0_6 = arith.constant 0 : index
    %c0_7 = arith.constant 0 : index
    %4 = vector.load %arg1[%c0_5, %c0_6, %c0_7] : memref<1x8x768xbf16, #tpu.memory_space<vmem>>, vector<1x8x768xbf16>
    %5 = vector.shape_cast %4 : vector<1x8x768xbf16> to vector<8x768xbf16>
    %cst = arith.constant dense<0.000000e+00> : vector<8x128xf32>
    %6 = tpu.matmul %5, %3, %cst {dimension_numbers = #tpu.dot_dimension_numbers<[1], [0], [0], [1], [0, 0, 1, 1], [], []>} : vector<8x768xbf16>, vector<768x128xbf16>, vector<8x128xf32> -> vector<8x128xf32>
    %7 = arith.addf %6, %0 : vector<8x128xf32>
    %c16 = arith.constant 16 : index
    %c0_8 = arith.constant 0 : index
    %8 = vector.load %arg2[%c16, %c0_8] : memref<32x384xf32, #tpu.memory_space<vmem>>, vector<1x128xf32>
    %c17 = arith.constant 17 : index
    %c0_9 = arith.constant 0 : index
    %9 = vector.load %arg2[%c17, %c0_9] : memref<32x384xf32, #tpu.memory_space<vmem>>, vector<1x128xf32>
    %c18 = arith.constant 18 : index
    %c0_10 = arith.constant 0 : index
    %10 = vector.load %arg2[%c18, %c0_10] : memref<32x384xf32, #tpu.memory_space<vmem>>, vector<1x384xf32>
    %c19 = arith.constant 19 : index
    %c0_11 = arith.constant 0 : index
    %11 = vector.load %arg2[%c19, %c0_11] : memref<32x384xf32, #tpu.memory_space<vmem>>, vector<1x128xf32>
    %c20 = arith.constant 20 : index
    %c0_12 = arith.constant 0 : index
    %12 = vector.load %arg2[%c20, %c0_12] : memref<32x384xf32, #tpu.memory_space<vmem>>, vector<1x128xf32>
    %c21 = arith.constant 21 : index
    %c0_13 = arith.constant 0 : index
    %13 = vector.load %arg2[%c21, %c0_13] : memref<32x384xf32, #tpu.memory_space<vmem>>, vector<1x128xf32>
    %c22 = arith.constant 22 : index
    %c0_14 = arith.constant 0 : index
    %14 = vector.load %arg2[%c22, %c0_14] : memref<32x384xf32, #tpu.memory_space<vmem>>, vector<1x256xf32>
    %c23 = arith.constant 23 : index
    %c0_15 = arith.constant 0 : index
    %15 = vector.load %arg2[%c23, %c0_15] : memref<32x384xf32, #tpu.memory_space<vmem>>, vector<1x128xf32>
    %c0_16 = arith.constant 0 : index
    %c0_17 = arith.constant 0 : index
    %c0_18 = arith.constant 0 : index
    %16 = vector.load %arg3[%c0_16, %c0_17, %c0_18] : memref<2x128x768xbf16, #tpu.memory_space<vmem>>, vector<1x128x384xbf16>
    %17 = vector.shape_cast %16 : vector<1x128x384xbf16> to vector<128x384xbf16>
    %c0_19 = arith.constant 0 : index
    %c0_20 = arith.constant 0 : index
    %c384 = arith.constant 384 : index
    %18 = vector.load %arg3[%c0_19, %c0_20, %c384] : memref<2x128x768xbf16, #tpu.memory_space<vmem>>, vector<1x128x128xbf16>
    %19 = vector.shape_cast %18 : vector<1x128x128xbf16> to vector<128x128xbf16>
    %c0_21 = arith.constant 0 : index
    %c0_22 = arith.constant 0 : index
    %c512 = arith.constant 512 : index
    %20 = vector.load %arg3[%c0_21, %c0_22, %c512] : memref<2x128x768xbf16, #tpu.memory_space<vmem>>, vector<1x128x256xbf16>
    %21 = vector.shape_cast %20 : vector<1x128x256xbf16> to vector<128x256xbf16>
    %c0_23 = arith.constant 0 : index
    %c0_24 = arith.constant 0 : index
    %c0_25 = arith.constant 0 : index
    %22 = vector.load %arg4[%c0_23, %c0_24, %c0_25] : memref<2x256x128xbf16, #tpu.memory_space<vmem>>, vector<1x256x128xbf16>
    %23 = vector.shape_cast %22 : vector<1x256x128xbf16> to vector<256x128xbf16>
    %cst_26 = arith.constant dense<0.000000e+00> : vector<8xf32>
    %24 = vector.multi_reduction <add>, %7, %cst_26 [1] : vector<8x128xf32> to vector<8xf32>
    %25 = vector.shape_cast %24 : vector<8xf32> to vector<8x1xf32>
    %cst_27 = arith.constant 1.280000e+02 : f32
    %26 = vector.broadcast %cst_27 : f32 to vector<8x1xf32>
    %27 = arith.divf %25, %26 : vector<8x1xf32>
    %28 = vector.broadcast %27 : vector<8x1xf32> to vector<8x128xf32>
    %29 = arith.subf %7, %28 : vector<8x128xf32>
    %30 = arith.mulf %29, %29 : vector<8x128xf32>
    %cst_28 = arith.constant dense<0.000000e+00> : vector<8xf32>
    %31 = vector.multi_reduction <add>, %30, %cst_28 [1] : vector<8x128xf32> to vector<8xf32>
    %32 = vector.shape_cast %31 : vector<8xf32> to vector<8x1xf32>
    %cst_29 = arith.constant 1.280000e+02 : f32
    %33 = vector.broadcast %cst_29 : f32 to vector<8x1xf32>
    %34 = arith.divf %32, %33 : vector<8x1xf32>
    %35 = vector.broadcast %27 : vector<8x1xf32> to vector<8x128xf32>
    %36 = arith.subf %7, %35 : vector<8x128xf32>
    %cst_30 = arith.constant 9.99999997E-7 : f32
    %37 = vector.broadcast %cst_30 : f32 to vector<8x1xf32>
    %38 = arith.addf %34, %37 : vector<8x1xf32>
    %39 = math.rsqrt %38 : vector<8x1xf32>
    %40 = vector.broadcast %39 : vector<8x1xf32> to vector<8x128xf32>
    %41 = arith.mulf %36, %40 : vector<8x128xf32>
    %42 = vector.broadcast %8 : vector<1x128xf32> to vector<8x128xf32>
    %43 = arith.mulf %41, %42 : vector<8x128xf32>
    %44 = vector.broadcast %9 : vector<1x128xf32> to vector<8x128xf32>
    %45 = arith.addf %43, %44 : vector<8x128xf32>
    %46 = arith.truncf %45 : vector<8x128xf32> to vector<8x128xbf16>
    %cst_31 = arith.constant dense<0.000000e+00> : vector<8x384xf32>
    %47 = tpu.matmul %46, %17, %cst_31 {dimension_numbers = #tpu.dot_dimension_numbers<[1], [0], [0], [1], [0, 0, 1, 1], [], []>} : vector<8x128xbf16>, vector<128x384xbf16>, vector<8x384xf32> -> vector<8x384xf32>
    %48 = vector.broadcast %10 : vector<1x384xf32> to vector<8x384xf32>
    %49 = arith.addf %47, %48 : vector<8x384xf32>
    %50 = vector.extract_strided_slice %49 {offsets = [0, 0], sizes = [8, 128], strides = [1, 1]} : vector<8x384xf32> to vector<8x128xf32>
    %cst_32 = arith.constant 0.176776692 : f32
    %51 = vector.broadcast %cst_32 : f32 to vector<8x128xf32>
    %52 = arith.mulf %50, %51 : vector<8x128xf32>
    %53 = vector.extract_strided_slice %49 {offsets = [0, 128], sizes = [8, 128], strides = [1, 1]} : vector<8x384xf32> to vector<8x128xf32>
    %54 = vector.extract_strided_slice %49 {offsets = [0, 256], sizes = [8, 128], strides = [1, 1]} : vector<8x384xf32> to vector<8x128xf32>
    %55 = arith.truncf %53 : vector<8x128xf32> to vector<8x128xbf16>
    %cst_33 = arith.constant 0.000000e+00 : f32
    %56 = vector.broadcast %cst_33 : f32 to vector<8x128xf32>
    %57 = vector.extract_strided_slice %1 {offsets = [0, 0], sizes = [1, 128], strides = [1, 1]} : vector<4x128xf32> to vector<1x128xf32>
    %58 = vector.broadcast %57 : vector<1x128xf32> to vector<8x128xf32>
    %59 = arith.mulf %52, %58 : vector<8x128xf32>
    %60 = arith.truncf %59 : vector<8x128xf32> to vector<8x128xbf16>
    %61 = vector.broadcast %57 : vector<1x128xf32> to vector<8x128xf32>
    %62 = arith.mulf %54, %61 : vector<8x128xf32>
    %63 = arith.truncf %62 : vector<8x128xf32> to vector<8x128xbf16>
    %cst_34 = arith.constant dense<0.000000e+00> : vector<8x8xf32>
    %64 = tpu.matmul %60, %55, %cst_34 {dimension_numbers = #tpu.dot_dimension_numbers<[1], [1], [0], [0], [0, 0, 1, 0], [], []>} : vector<8x128xbf16>, vector<8x128xbf16>, vector<8x8xf32> -> vector<8x8xf32>
    %65 = vector.broadcast %2 : vector<1x8xf32> to vector<8x8xf32>
    %66 = arith.addf %64, %65 : vector<8x8xf32>
    %67 = math.exp %66 : vector<8x8xf32>
    %cst_35 = arith.constant dense<0.000000e+00> : vector<8xf32>
    %68 = vector.multi_reduction <add>, %67, %cst_35 [1] : vector<8x8xf32> to vector<8xf32>
    %69 = vector.shape_cast %68 : vector<8xf32> to vector<8x1xf32>
    %70 = tpu.reciprocal %69 {approx = true} : vector<8x1xf32> -> vector<8x1xf32>
    %71 = vector.broadcast %70 : vector<8x1xf32> to vector<8x8xf32>
    %72 = arith.mulf %67, %71 : vector<8x8xf32>
    %73 = arith.truncf %72 : vector<8x8xf32> to vector<8x8xbf16>
    %cst_36 = arith.constant dense<0.000000e+00> : vector<8x128xf32>
    %74 = tpu.matmul %73, %63, %cst_36 {dimension_numbers = #tpu.dot_dimension_numbers<[1], [0], [0], [1], [0, 0, 1, 1], [], []>} : vector<8x8xbf16>, vector<8x128xbf16>, vector<8x128xf32> -> vector<8x128xf32>
    %75 = arith.addf %56, %74 : vector<8x128xf32>
    %76 = vector.extract_strided_slice %1 {offsets = [1, 0], sizes = [1, 128], strides = [1, 1]} : vector<4x128xf32> to vector<1x128xf32>
    %77 = vector.broadcast %76 : vector<1x128xf32> to vector<8x128xf32>
    %78 = arith.mulf %52, %77 : vector<8x128xf32>
    %79 = arith.truncf %78 : vector<8x128xf32> to vector<8x128xbf16>
    %80 = vector.broadcast %76 : vector<1x128xf32> to vector<8x128xf32>
    %81 = arith.mulf %54, %80 : vector<8x128xf32>
    %82 = arith.truncf %81 : vector<8x128xf32> to vector<8x128xbf16>
    %cst_37 = arith.constant dense<0.000000e+00> : vector<8x8xf32>
    %83 = tpu.matmul %79, %55, %cst_37 {dimension_numbers = #tpu.dot_dimension_numbers<[1], [1], [0], [0], [0, 0, 1, 0], [], []>} : vector<8x128xbf16>, vector<8x128xbf16>, vector<8x8xf32> -> vector<8x8xf32>
    %84 = vector.broadcast %2 : vector<1x8xf32> to vector<8x8xf32>
    %85 = arith.addf %83, %84 : vector<8x8xf32>
    %86 = math.exp %85 : vector<8x8xf32>
    %cst_38 = arith.constant dense<0.000000e+00> : vector<8xf32>
    %87 = vector.multi_reduction <add>, %86, %cst_38 [1] : vector<8x8xf32> to vector<8xf32>
    %88 = vector.shape_cast %87 : vector<8xf32> to vector<8x1xf32>
    %89 = tpu.reciprocal %88 {approx = true} : vector<8x1xf32> -> vector<8x1xf32>
    %90 = vector.broadcast %89 : vector<8x1xf32> to vector<8x8xf32>
    %91 = arith.mulf %86, %90 : vector<8x8xf32>
    %92 = arith.truncf %91 : vector<8x8xf32> to vector<8x8xbf16>
    %cst_39 = arith.constant dense<0.000000e+00> : vector<8x128xf32>
    %93 = tpu.matmul %92, %82, %cst_39 {dimension_numbers = #tpu.dot_dimension_numbers<[1], [0], [0], [1], [0, 0, 1, 1], [], []>} : vector<8x8xbf16>, vector<8x128xbf16>, vector<8x128xf32> -> vector<8x128xf32>
    %94 = arith.addf %75, %93 : vector<8x128xf32>
    %95 = vector.extract_strided_slice %1 {offsets = [2, 0], sizes = [1, 128], strides = [1, 1]} : vector<4x128xf32> to vector<1x128xf32>
    %96 = vector.broadcast %95 : vector<1x128xf32> to vector<8x128xf32>
    %97 = arith.mulf %52, %96 : vector<8x128xf32>
    %98 = arith.truncf %97 : vector<8x128xf32> to vector<8x128xbf16>
    %99 = vector.broadcast %95 : vector<1x128xf32> to vector<8x128xf32>
    %100 = arith.mulf %54, %99 : vector<8x128xf32>
    %101 = arith.truncf %100 : vector<8x128xf32> to vector<8x128xbf16>
    %cst_40 = arith.constant dense<0.000000e+00> : vector<8x8xf32>
    %102 = tpu.matmul %98, %55, %cst_40 {dimension_numbers = #tpu.dot_dimension_numbers<[1], [1], [0], [0], [0, 0, 1, 0], [], []>} : vector<8x128xbf16>, vector<8x128xbf16>, vector<8x8xf32> -> vector<8x8xf32>
    %103 = vector.broadcast %2 : vector<1x8xf32> to vector<8x8xf32>
    %104 = arith.addf %102, %103 : vector<8x8xf32>
    %105 = math.exp %104 : vector<8x8xf32>
    %cst_41 = arith.constant dense<0.000000e+00> : vector<8xf32>
    %106 = vector.multi_reduction <add>, %105, %cst_41 [1] : vector<8x8xf32> to vector<8xf32>
    %107 = vector.shape_cast %106 : vector<8xf32> to vector<8x1xf32>
    %108 = tpu.reciprocal %107 {approx = true} : vector<8x1xf32> -> vector<8x1xf32>
    %109 = vector.broadcast %108 : vector<8x1xf32> to vector<8x8xf32>
    %110 = arith.mulf %105, %109 : vector<8x8xf32>
    %111 = arith.truncf %110 : vector<8x8xf32> to vector<8x8xbf16>
    %cst_42 = arith.constant dense<0.000000e+00> : vector<8x128xf32>
    %112 = tpu.matmul %111, %101, %cst_42 {dimension_numbers = #tpu.dot_dimension_numbers<[1], [0], [0], [1], [0, 0, 1, 1], [], []>} : vector<8x8xbf16>, vector<8x128xbf16>, vector<8x128xf32> -> vector<8x128xf32>
    %113 = arith.addf %94, %112 : vector<8x128xf32>
    %114 = vector.extract_strided_slice %1 {offsets = [3, 0], sizes = [1, 128], strides = [1, 1]} : vector<4x128xf32> to vector<1x128xf32>
    %115 = vector.broadcast %114 : vector<1x128xf32> to vector<8x128xf32>
    %116 = arith.mulf %52, %115 : vector<8x128xf32>
    %117 = arith.truncf %116 : vector<8x128xf32> to vector<8x128xbf16>
    %118 = vector.broadcast %114 : vector<1x128xf32> to vector<8x128xf32>
    %119 = arith.mulf %54, %118 : vector<8x128xf32>
    %120 = arith.truncf %119 : vector<8x128xf32> to vector<8x128xbf16>
    %cst_43 = arith.constant dense<0.000000e+00> : vector<8x8xf32>
    %121 = tpu.matmul %117, %55, %cst_43 {dimension_numbers = #tpu.dot_dimension_numbers<[1], [1], [0], [0], [0, 0, 1, 0], [], []>} : vector<8x128xbf16>, vector<8x128xbf16>, vector<8x8xf32> -> vector<8x8xf32>
    %122 = vector.broadcast %2 : vector<1x8xf32> to vector<8x8xf32>
    %123 = arith.addf %121, %122 : vector<8x8xf32>
    %124 = math.exp %123 : vector<8x8xf32>
    %cst_44 = arith.constant dense<0.000000e+00> : vector<8xf32>
    %125 = vector.multi_reduction <add>, %124, %cst_44 [1] : vector<8x8xf32> to vector<8xf32>
    %126 = vector.shape_cast %125 : vector<8xf32> to vector<8x1xf32>
    %127 = tpu.reciprocal %126 {approx = true} : vector<8x1xf32> -> vector<8x1xf32>
    %128 = vector.broadcast %127 : vector<8x1xf32> to vector<8x8xf32>
    %129 = arith.mulf %124, %128 : vector<8x8xf32>
    %130 = arith.truncf %129 : vector<8x8xf32> to vector<8x8xbf16>
    %cst_45 = arith.constant dense<0.000000e+00> : vector<8x128xf32>
    %131 = tpu.matmul %130, %120, %cst_45 {dimension_numbers = #tpu.dot_dimension_numbers<[1], [0], [0], [1], [0, 0, 1, 1], [], []>} : vector<8x8xbf16>, vector<8x128xbf16>, vector<8x128xf32> -> vector<8x128xf32>
    %132 = arith.addf %113, %131 : vector<8x128xf32>
    %133 = arith.truncf %132 : vector<8x128xf32> to vector<8x128xbf16>
    %cst_46 = arith.constant dense<0.000000e+00> : vector<8x128xf32>
    %134 = tpu.matmul %133, %19, %cst_46 {dimension_numbers = #tpu.dot_dimension_numbers<[1], [0], [0], [1], [0, 0, 1, 1], [], []>} : vector<8x128xbf16>, vector<128x128xbf16>, vector<8x128xf32> -> vector<8x128xf32>
    %135 = arith.addf %7, %134 : vector<8x128xf32>
    %136 = vector.broadcast %11 : vector<1x128xf32> to vector<8x128xf32>
    %137 = arith.addf %135, %136 : vector<8x128xf32>
    %cst_47 = arith.constant dense<0.000000e+00> : vector<8xf32>
    %138 = vector.multi_reduction <add>, %137, %cst_47 [1] : vector<8x128xf32> to vector<8xf32>
    %139 = vector.shape_cast %138 : vector<8xf32> to vector<8x1xf32>
    %cst_48 = arith.constant 1.280000e+02 : f32
    %140 = vector.broadcast %cst_48 : f32 to vector<8x1xf32>
    %141 = arith.divf %139, %140 : vector<8x1xf32>
    %142 = vector.broadcast %141 : vector<8x1xf32> to vector<8x128xf32>
    %143 = arith.subf %137, %142 : vector<8x128xf32>
    %144 = arith.mulf %143, %143 : vector<8x128xf32>
    %cst_49 = arith.constant dense<0.000000e+00> : vector<8xf32>
    %145 = vector.multi_reduction <add>, %144, %cst_49 [1] : vector<8x128xf32> to vector<8xf32>
    %146 = vector.shape_cast %145 : vector<8xf32> to vector<8x1xf32>
    %cst_50 = arith.constant 1.280000e+02 : f32
    %147 = vector.broadcast %cst_50 : f32 to vector<8x1xf32>
    %148 = arith.divf %146, %147 : vector<8x1xf32>
    %149 = vector.broadcast %141 : vector<8x1xf32> to vector<8x128xf32>
    %150 = arith.subf %137, %149 : vector<8x128xf32>
    %cst_51 = arith.constant 9.99999997E-7 : f32
    %151 = vector.broadcast %cst_51 : f32 to vector<8x1xf32>
    %152 = arith.addf %148, %151 : vector<8x1xf32>
    %153 = math.rsqrt %152 : vector<8x1xf32>
    %154 = vector.broadcast %153 : vector<8x1xf32> to vector<8x128xf32>
    %155 = arith.mulf %150, %154 : vector<8x128xf32>
    %156 = vector.broadcast %12 : vector<1x128xf32> to vector<8x128xf32>
    %157 = arith.mulf %155, %156 : vector<8x128xf32>
    %158 = vector.broadcast %13 : vector<1x128xf32> to vector<8x128xf32>
    %159 = arith.addf %157, %158 : vector<8x128xf32>
    %160 = arith.truncf %159 : vector<8x128xf32> to vector<8x128xbf16>
    %cst_52 = arith.constant dense<0.000000e+00> : vector<8x256xf32>
    %161 = tpu.matmul %160, %21, %cst_52 {dimension_numbers = #tpu.dot_dimension_numbers<[1], [0], [0], [1], [0, 0, 1, 1], [], []>} : vector<8x128xbf16>, vector<128x256xbf16>, vector<8x256xf32> -> vector<8x256xf32>
    %162 = vector.broadcast %14 : vector<1x256xf32> to vector<8x256xf32>
    %163 = arith.addf %161, %162 : vector<8x256xf32>
    %164 = arith.mulf %163, %163 : vector<8x256xf32>
    %165 = arith.mulf %163, %164 : vector<8x256xf32>
    %cst_53 = arith.constant 4.471500e-02 : f32
    %166 = vector.broadcast %cst_53 : f32 to vector<8x256xf32>
    %167 = arith.mulf %166, %165 : vector<8x256xf32>
    %168 = arith.addf %163, %167 : vector<8x256xf32>
    %cst_54 = arith.constant 0.797884583 : f32
    %169 = vector.broadcast %cst_54 : f32 to vector<8x256xf32>
    %170 = arith.mulf %169, %168 : vector<8x256xf32>
    %171 = math.tanh %170 : vector<8x256xf32>
    %cst_55 = arith.constant 1.000000e+00 : f32
    %172 = vector.broadcast %cst_55 : f32 to vector<8x256xf32>
    %173 = arith.addf %172, %171 : vector<8x256xf32>
    %cst_56 = arith.constant 5.000000e-01 : f32
    %174 = vector.broadcast %cst_56 : f32 to vector<8x256xf32>
    %175 = arith.mulf %174, %173 : vector<8x256xf32>
    %176 = arith.mulf %163, %175 : vector<8x256xf32>
    %177 = arith.truncf %176 : vector<8x256xf32> to vector<8x256xbf16>
    %cst_57 = arith.constant dense<0.000000e+00> : vector<8x128xf32>
    %178 = tpu.matmul %177, %23, %cst_57 {dimension_numbers = #tpu.dot_dimension_numbers<[1], [0], [0], [1], [0, 0, 1, 1], [], []>} : vector<8x256xbf16>, vector<256x128xbf16>, vector<8x128xf32> -> vector<8x128xf32>
    %179 = arith.addf %137, %178 : vector<8x128xf32>
    %180 = vector.broadcast %15 : vector<1x128xf32> to vector<8x128xf32>
    %181 = arith.addf %179, %180 : vector<8x128xf32>
    %c24 = arith.constant 24 : index
    %c0_58 = arith.constant 0 : index
    %182 = vector.load %arg2[%c24, %c0_58] : memref<32x384xf32, #tpu.memory_space<vmem>>, vector<1x128xf32>
    %c25 = arith.constant 25 : index
    %c0_59 = arith.constant 0 : index
    %183 = vector.load %arg2[%c25, %c0_59] : memref<32x384xf32, #tpu.memory_space<vmem>>, vector<1x128xf32>
    %c26 = arith.constant 26 : index
    %c0_60 = arith.constant 0 : index
    %184 = vector.load %arg2[%c26, %c0_60] : memref<32x384xf32, #tpu.memory_space<vmem>>, vector<1x384xf32>
    %c27 = arith.constant 27 : index
    %c0_61 = arith.constant 0 : index
    %185 = vector.load %arg2[%c27, %c0_61] : memref<32x384xf32, #tpu.memory_space<vmem>>, vector<1x128xf32>
    %c28 = arith.constant 28 : index
    %c0_62 = arith.constant 0 : index
    %186 = vector.load %arg2[%c28, %c0_62] : memref<32x384xf32, #tpu.memory_space<vmem>>, vector<1x128xf32>
    %c29 = arith.constant 29 : index
    %c0_63 = arith.constant 0 : index
    %187 = vector.load %arg2[%c29, %c0_63] : memref<32x384xf32, #tpu.memory_space<vmem>>, vector<1x128xf32>
    %c30 = arith.constant 30 : index
    %c0_64 = arith.constant 0 : index
    %188 = vector.load %arg2[%c30, %c0_64] : memref<32x384xf32, #tpu.memory_space<vmem>>, vector<1x256xf32>
    %c31 = arith.constant 31 : index
    %c0_65 = arith.constant 0 : index
    %189 = vector.load %arg2[%c31, %c0_65] : memref<32x384xf32, #tpu.memory_space<vmem>>, vector<1x128xf32>
    %c1 = arith.constant 1 : index
    %c0_66 = arith.constant 0 : index
    %c0_67 = arith.constant 0 : index
    %190 = vector.load %arg3[%c1, %c0_66, %c0_67] : memref<2x128x768xbf16, #tpu.memory_space<vmem>>, vector<1x128x384xbf16>
    %191 = vector.shape_cast %190 : vector<1x128x384xbf16> to vector<128x384xbf16>
    %c1_68 = arith.constant 1 : index
    %c0_69 = arith.constant 0 : index
    %c384_70 = arith.constant 384 : index
    %192 = vector.load %arg3[%c1_68, %c0_69, %c384_70] : memref<2x128x768xbf16, #tpu.memory_space<vmem>>, vector<1x128x128xbf16>
    %193 = vector.shape_cast %192 : vector<1x128x128xbf16> to vector<128x128xbf16>
    %c1_71 = arith.constant 1 : index
    %c0_72 = arith.constant 0 : index
    %c512_73 = arith.constant 512 : index
    %194 = vector.load %arg3[%c1_71, %c0_72, %c512_73] : memref<2x128x768xbf16, #tpu.memory_space<vmem>>, vector<1x128x256xbf16>
    %195 = vector.shape_cast %194 : vector<1x128x256xbf16> to vector<128x256xbf16>
    %c1_74 = arith.constant 1 : index
    %c0_75 = arith.constant 0 : index
    %c0_76 = arith.constant 0 : index
    %196 = vector.load %arg4[%c1_74, %c0_75, %c0_76] : memref<2x256x128xbf16, #tpu.memory_space<vmem>>, vector<1x256x128xbf16>
    %197 = vector.shape_cast %196 : vector<1x256x128xbf16> to vector<256x128xbf16>
    %cst_77 = arith.constant dense<0.000000e+00> : vector<8xf32>
    %198 = vector.multi_reduction <add>, %181, %cst_77 [1] : vector<8x128xf32> to vector<8xf32>
    %199 = vector.shape_cast %198 : vector<8xf32> to vector<8x1xf32>
    %cst_78 = arith.constant 1.280000e+02 : f32
    %200 = vector.broadcast %cst_78 : f32 to vector<8x1xf32>
    %201 = arith.divf %199, %200 : vector<8x1xf32>
    %202 = vector.broadcast %201 : vector<8x1xf32> to vector<8x128xf32>
    %203 = arith.subf %181, %202 : vector<8x128xf32>
    %204 = arith.mulf %203, %203 : vector<8x128xf32>
    %cst_79 = arith.constant dense<0.000000e+00> : vector<8xf32>
    %205 = vector.multi_reduction <add>, %204, %cst_79 [1] : vector<8x128xf32> to vector<8xf32>
    %206 = vector.shape_cast %205 : vector<8xf32> to vector<8x1xf32>
    %cst_80 = arith.constant 1.280000e+02 : f32
    %207 = vector.broadcast %cst_80 : f32 to vector<8x1xf32>
    %208 = arith.divf %206, %207 : vector<8x1xf32>
    %209 = vector.broadcast %201 : vector<8x1xf32> to vector<8x128xf32>
    %210 = arith.subf %181, %209 : vector<8x128xf32>
    %cst_81 = arith.constant 9.99999997E-7 : f32
    %211 = vector.broadcast %cst_81 : f32 to vector<8x1xf32>
    %212 = arith.addf %208, %211 : vector<8x1xf32>
    %213 = math.rsqrt %212 : vector<8x1xf32>
    %214 = vector.broadcast %213 : vector<8x1xf32> to vector<8x128xf32>
    %215 = arith.mulf %210, %214 : vector<8x128xf32>
    %216 = vector.broadcast %182 : vector<1x128xf32> to vector<8x128xf32>
    %217 = arith.mulf %215, %216 : vector<8x128xf32>
    %218 = vector.broadcast %183 : vector<1x128xf32> to vector<8x128xf32>
    %219 = arith.addf %217, %218 : vector<8x128xf32>
    %220 = arith.truncf %219 : vector<8x128xf32> to vector<8x128xbf16>
    %cst_82 = arith.constant dense<0.000000e+00> : vector<8x384xf32>
    %221 = tpu.matmul %220, %191, %cst_82 {dimension_numbers = #tpu.dot_dimension_numbers<[1], [0], [0], [1], [0, 0, 1, 1], [], []>} : vector<8x128xbf16>, vector<128x384xbf16>, vector<8x384xf32> -> vector<8x384xf32>
    %222 = vector.broadcast %184 : vector<1x384xf32> to vector<8x384xf32>
    %223 = arith.addf %221, %222 : vector<8x384xf32>
    %224 = vector.extract_strided_slice %223 {offsets = [0, 0], sizes = [8, 128], strides = [1, 1]} : vector<8x384xf32> to vector<8x128xf32>
    %cst_83 = arith.constant 0.176776692 : f32
    %225 = vector.broadcast %cst_83 : f32 to vector<8x128xf32>
    %226 = arith.mulf %224, %225 : vector<8x128xf32>
    %227 = vector.extract_strided_slice %223 {offsets = [0, 128], sizes = [8, 128], strides = [1, 1]} : vector<8x384xf32> to vector<8x128xf32>
    %228 = vector.extract_strided_slice %223 {offsets = [0, 256], sizes = [8, 128], strides = [1, 1]} : vector<8x384xf32> to vector<8x128xf32>
    %229 = arith.truncf %227 : vector<8x128xf32> to vector<8x128xbf16>
    %cst_84 = arith.constant 0.000000e+00 : f32
    %230 = vector.broadcast %cst_84 : f32 to vector<8x128xf32>
    %231 = vector.extract_strided_slice %1 {offsets = [0, 0], sizes = [1, 128], strides = [1, 1]} : vector<4x128xf32> to vector<1x128xf32>
    %232 = vector.broadcast %231 : vector<1x128xf32> to vector<8x128xf32>
    %233 = arith.mulf %226, %232 : vector<8x128xf32>
    %234 = arith.truncf %233 : vector<8x128xf32> to vector<8x128xbf16>
    %235 = vector.broadcast %231 : vector<1x128xf32> to vector<8x128xf32>
    %236 = arith.mulf %228, %235 : vector<8x128xf32>
    %237 = arith.truncf %236 : vector<8x128xf32> to vector<8x128xbf16>
    %cst_85 = arith.constant dense<0.000000e+00> : vector<8x8xf32>
    %238 = tpu.matmul %234, %229, %cst_85 {dimension_numbers = #tpu.dot_dimension_numbers<[1], [1], [0], [0], [0, 0, 1, 0], [], []>} : vector<8x128xbf16>, vector<8x128xbf16>, vector<8x8xf32> -> vector<8x8xf32>
    %239 = vector.broadcast %2 : vector<1x8xf32> to vector<8x8xf32>
    %240 = arith.addf %238, %239 : vector<8x8xf32>
    %241 = math.exp %240 : vector<8x8xf32>
    %cst_86 = arith.constant dense<0.000000e+00> : vector<8xf32>
    %242 = vector.multi_reduction <add>, %241, %cst_86 [1] : vector<8x8xf32> to vector<8xf32>
    %243 = vector.shape_cast %242 : vector<8xf32> to vector<8x1xf32>
    %244 = tpu.reciprocal %243 {approx = true} : vector<8x1xf32> -> vector<8x1xf32>
    %245 = vector.broadcast %244 : vector<8x1xf32> to vector<8x8xf32>
    %246 = arith.mulf %241, %245 : vector<8x8xf32>
    %247 = arith.truncf %246 : vector<8x8xf32> to vector<8x8xbf16>
    %cst_87 = arith.constant dense<0.000000e+00> : vector<8x128xf32>
    %248 = tpu.matmul %247, %237, %cst_87 {dimension_numbers = #tpu.dot_dimension_numbers<[1], [0], [0], [1], [0, 0, 1, 1], [], []>} : vector<8x8xbf16>, vector<8x128xbf16>, vector<8x128xf32> -> vector<8x128xf32>
    %249 = arith.addf %230, %248 : vector<8x128xf32>
    %250 = vector.extract_strided_slice %1 {offsets = [1, 0], sizes = [1, 128], strides = [1, 1]} : vector<4x128xf32> to vector<1x128xf32>
    %251 = vector.broadcast %250 : vector<1x128xf32> to vector<8x128xf32>
    %252 = arith.mulf %226, %251 : vector<8x128xf32>
    %253 = arith.truncf %252 : vector<8x128xf32> to vector<8x128xbf16>
    %254 = vector.broadcast %250 : vector<1x128xf32> to vector<8x128xf32>
    %255 = arith.mulf %228, %254 : vector<8x128xf32>
    %256 = arith.truncf %255 : vector<8x128xf32> to vector<8x128xbf16>
    %cst_88 = arith.constant dense<0.000000e+00> : vector<8x8xf32>
    %257 = tpu.matmul %253, %229, %cst_88 {dimension_numbers = #tpu.dot_dimension_numbers<[1], [1], [0], [0], [0, 0, 1, 0], [], []>} : vector<8x128xbf16>, vector<8x128xbf16>, vector<8x8xf32> -> vector<8x8xf32>
    %258 = vector.broadcast %2 : vector<1x8xf32> to vector<8x8xf32>
    %259 = arith.addf %257, %258 : vector<8x8xf32>
    %260 = math.exp %259 : vector<8x8xf32>
    %cst_89 = arith.constant dense<0.000000e+00> : vector<8xf32>
    %261 = vector.multi_reduction <add>, %260, %cst_89 [1] : vector<8x8xf32> to vector<8xf32>
    %262 = vector.shape_cast %261 : vector<8xf32> to vector<8x1xf32>
    %263 = tpu.reciprocal %262 {approx = true} : vector<8x1xf32> -> vector<8x1xf32>
    %264 = vector.broadcast %263 : vector<8x1xf32> to vector<8x8xf32>
    %265 = arith.mulf %260, %264 : vector<8x8xf32>
    %266 = arith.truncf %265 : vector<8x8xf32> to vector<8x8xbf16>
    %cst_90 = arith.constant dense<0.000000e+00> : vector<8x128xf32>
    %267 = tpu.matmul %266, %256, %cst_90 {dimension_numbers = #tpu.dot_dimension_numbers<[1], [0], [0], [1], [0, 0, 1, 1], [], []>} : vector<8x8xbf16>, vector<8x128xbf16>, vector<8x128xf32> -> vector<8x128xf32>
    %268 = arith.addf %249, %267 : vector<8x128xf32>
    %269 = vector.extract_strided_slice %1 {offsets = [2, 0], sizes = [1, 128], strides = [1, 1]} : vector<4x128xf32> to vector<1x128xf32>
    %270 = vector.broadcast %269 : vector<1x128xf32> to vector<8x128xf32>
    %271 = arith.mulf %226, %270 : vector<8x128xf32>
    %272 = arith.truncf %271 : vector<8x128xf32> to vector<8x128xbf16>
    %273 = vector.broadcast %269 : vector<1x128xf32> to vector<8x128xf32>
    %274 = arith.mulf %228, %273 : vector<8x128xf32>
    %275 = arith.truncf %274 : vector<8x128xf32> to vector<8x128xbf16>
    %cst_91 = arith.constant dense<0.000000e+00> : vector<8x8xf32>
    %276 = tpu.matmul %272, %229, %cst_91 {dimension_numbers = #tpu.dot_dimension_numbers<[1], [1], [0], [0], [0, 0, 1, 0], [], []>} : vector<8x128xbf16>, vector<8x128xbf16>, vector<8x8xf32> -> vector<8x8xf32>
    %277 = vector.broadcast %2 : vector<1x8xf32> to vector<8x8xf32>
    %278 = arith.addf %276, %277 : vector<8x8xf32>
    %279 = math.exp %278 : vector<8x8xf32>
    %cst_92 = arith.constant dense<0.000000e+00> : vector<8xf32>
    %280 = vector.multi_reduction <add>, %279, %cst_92 [1] : vector<8x8xf32> to vector<8xf32>
    %281 = vector.shape_cast %280 : vector<8xf32> to vector<8x1xf32>
    %282 = tpu.reciprocal %281 {approx = true} : vector<8x1xf32> -> vector<8x1xf32>
    %283 = vector.broadcast %282 : vector<8x1xf32> to vector<8x8xf32>
    %284 = arith.mulf %279, %283 : vector<8x8xf32>
    %285 = arith.truncf %284 : vector<8x8xf32> to vector<8x8xbf16>
    %cst_93 = arith.constant dense<0.000000e+00> : vector<8x128xf32>
    %286 = tpu.matmul %285, %275, %cst_93 {dimension_numbers = #tpu.dot_dimension_numbers<[1], [0], [0], [1], [0, 0, 1, 1], [], []>} : vector<8x8xbf16>, vector<8x128xbf16>, vector<8x128xf32> -> vector<8x128xf32>
    %287 = arith.addf %268, %286 : vector<8x128xf32>
    %288 = vector.extract_strided_slice %1 {offsets = [3, 0], sizes = [1, 128], strides = [1, 1]} : vector<4x128xf32> to vector<1x128xf32>
    %289 = vector.broadcast %288 : vector<1x128xf32> to vector<8x128xf32>
    %290 = arith.mulf %226, %289 : vector<8x128xf32>
    %291 = arith.truncf %290 : vector<8x128xf32> to vector<8x128xbf16>
    %292 = vector.broadcast %288 : vector<1x128xf32> to vector<8x128xf32>
    %293 = arith.mulf %228, %292 : vector<8x128xf32>
    %294 = arith.truncf %293 : vector<8x128xf32> to vector<8x128xbf16>
    %cst_94 = arith.constant dense<0.000000e+00> : vector<8x8xf32>
    %295 = tpu.matmul %291, %229, %cst_94 {dimension_numbers = #tpu.dot_dimension_numbers<[1], [1], [0], [0], [0, 0, 1, 0], [], []>} : vector<8x128xbf16>, vector<8x128xbf16>, vector<8x8xf32> -> vector<8x8xf32>
    %296 = vector.broadcast %2 : vector<1x8xf32> to vector<8x8xf32>
    %297 = arith.addf %295, %296 : vector<8x8xf32>
    %298 = math.exp %297 : vector<8x8xf32>
    %cst_95 = arith.constant dense<0.000000e+00> : vector<8xf32>
    %299 = vector.multi_reduction <add>, %298, %cst_95 [1] : vector<8x8xf32> to vector<8xf32>
    %300 = vector.shape_cast %299 : vector<8xf32> to vector<8x1xf32>
    %301 = tpu.reciprocal %300 {approx = true} : vector<8x1xf32> -> vector<8x1xf32>
    %302 = vector.broadcast %301 : vector<8x1xf32> to vector<8x8xf32>
    %303 = arith.mulf %298, %302 : vector<8x8xf32>
    %304 = arith.truncf %303 : vector<8x8xf32> to vector<8x8xbf16>
    %cst_96 = arith.constant dense<0.000000e+00> : vector<8x128xf32>
    %305 = tpu.matmul %304, %294, %cst_96 {dimension_numbers = #tpu.dot_dimension_numbers<[1], [0], [0], [1], [0, 0, 1, 1], [], []>} : vector<8x8xbf16>, vector<8x128xbf16>, vector<8x128xf32> -> vector<8x128xf32>
    %306 = arith.addf %287, %305 : vector<8x128xf32>
    %307 = arith.truncf %306 : vector<8x128xf32> to vector<8x128xbf16>
    %cst_97 = arith.constant dense<0.000000e+00> : vector<8x128xf32>
    %308 = tpu.matmul %307, %193, %cst_97 {dimension_numbers = #tpu.dot_dimension_numbers<[1], [0], [0], [1], [0, 0, 1, 1], [], []>} : vector<8x128xbf16>, vector<128x128xbf16>, vector<8x128xf32> -> vector<8x128xf32>
    %309 = arith.addf %181, %308 : vector<8x128xf32>
    %310 = vector.broadcast %185 : vector<1x128xf32> to vector<8x128xf32>
    %311 = arith.addf %309, %310 : vector<8x128xf32>
    %cst_98 = arith.constant dense<0.000000e+00> : vector<8xf32>
    %312 = vector.multi_reduction <add>, %311, %cst_98 [1] : vector<8x128xf32> to vector<8xf32>
    %313 = vector.shape_cast %312 : vector<8xf32> to vector<8x1xf32>
    %cst_99 = arith.constant 1.280000e+02 : f32
    %314 = vector.broadcast %cst_99 : f32 to vector<8x1xf32>
    %315 = arith.divf %313, %314 : vector<8x1xf32>
    %316 = vector.broadcast %315 : vector<8x1xf32> to vector<8x128xf32>
    %317 = arith.subf %311, %316 : vector<8x128xf32>
    %318 = arith.mulf %317, %317 : vector<8x128xf32>
    %cst_100 = arith.constant dense<0.000000e+00> : vector<8xf32>
    %319 = vector.multi_reduction <add>, %318, %cst_100 [1] : vector<8x128xf32> to vector<8xf32>
    %320 = vector.shape_cast %319 : vector<8xf32> to vector<8x1xf32>
    %cst_101 = arith.constant 1.280000e+02 : f32
    %321 = vector.broadcast %cst_101 : f32 to vector<8x1xf32>
    %322 = arith.divf %320, %321 : vector<8x1xf32>
    %323 = vector.broadcast %315 : vector<8x1xf32> to vector<8x128xf32>
    %324 = arith.subf %311, %323 : vector<8x128xf32>
    %cst_102 = arith.constant 9.99999997E-7 : f32
    %325 = vector.broadcast %cst_102 : f32 to vector<8x1xf32>
    %326 = arith.addf %322, %325 : vector<8x1xf32>
    %327 = math.rsqrt %326 : vector<8x1xf32>
    %328 = vector.broadcast %327 : vector<8x1xf32> to vector<8x128xf32>
    %329 = arith.mulf %324, %328 : vector<8x128xf32>
    %330 = vector.broadcast %186 : vector<1x128xf32> to vector<8x128xf32>
    %331 = arith.mulf %329, %330 : vector<8x128xf32>
    %332 = vector.broadcast %187 : vector<1x128xf32> to vector<8x128xf32>
    %333 = arith.addf %331, %332 : vector<8x128xf32>
    %334 = arith.truncf %333 : vector<8x128xf32> to vector<8x128xbf16>
    %cst_103 = arith.constant dense<0.000000e+00> : vector<8x256xf32>
    %335 = tpu.matmul %334, %195, %cst_103 {dimension_numbers = #tpu.dot_dimension_numbers<[1], [0], [0], [1], [0, 0, 1, 1], [], []>} : vector<8x128xbf16>, vector<128x256xbf16>, vector<8x256xf32> -> vector<8x256xf32>
    %336 = vector.broadcast %188 : vector<1x256xf32> to vector<8x256xf32>
    %337 = arith.addf %335, %336 : vector<8x256xf32>
    %338 = arith.mulf %337, %337 : vector<8x256xf32>
    %339 = arith.mulf %337, %338 : vector<8x256xf32>
    %cst_104 = arith.constant 4.471500e-02 : f32
    %340 = vector.broadcast %cst_104 : f32 to vector<8x256xf32>
    %341 = arith.mulf %340, %339 : vector<8x256xf32>
    %342 = arith.addf %337, %341 : vector<8x256xf32>
    %cst_105 = arith.constant 0.797884583 : f32
    %343 = vector.broadcast %cst_105 : f32 to vector<8x256xf32>
    %344 = arith.mulf %343, %342 : vector<8x256xf32>
    %345 = math.tanh %344 : vector<8x256xf32>
    %cst_106 = arith.constant 1.000000e+00 : f32
    %346 = vector.broadcast %cst_106 : f32 to vector<8x256xf32>
    %347 = arith.addf %346, %345 : vector<8x256xf32>
    %cst_107 = arith.constant 5.000000e-01 : f32
    %348 = vector.broadcast %cst_107 : f32 to vector<8x256xf32>
    %349 = arith.mulf %348, %347 : vector<8x256xf32>
    %350 = arith.mulf %337, %349 : vector<8x256xf32>
    %351 = arith.truncf %350 : vector<8x256xf32> to vector<8x256xbf16>
    %cst_108 = arith.constant dense<0.000000e+00> : vector<8x128xf32>
    %352 = tpu.matmul %351, %197, %cst_108 {dimension_numbers = #tpu.dot_dimension_numbers<[1], [0], [0], [1], [0, 0, 1, 1], [], []>} : vector<8x256xbf16>, vector<256x128xbf16>, vector<8x128xf32> -> vector<8x128xf32>
    %353 = arith.addf %311, %352 : vector<8x128xf32>
    %354 = vector.broadcast %189 : vector<1x128xf32> to vector<8x128xf32>
    %355 = arith.addf %353, %354 : vector<8x128xf32>
    %c13 = arith.constant 13 : index
    %c0_109 = arith.constant 0 : index
    %356 = vector.load %arg2[%c13, %c0_109] : memref<32x384xf32, #tpu.memory_space<vmem>>, vector<1x128xf32>
    %c14 = arith.constant 14 : index
    %c0_110 = arith.constant 0 : index
    %357 = vector.load %arg2[%c14, %c0_110] : memref<32x384xf32, #tpu.memory_space<vmem>>, vector<1x128xf32>
    %c15 = arith.constant 15 : index
    %c0_111 = arith.constant 0 : index
    %358 = vector.load %arg2[%c15, %c0_111] : memref<32x384xf32, #tpu.memory_space<vmem>>, vector<1x128xf32>
    %cst_112 = arith.constant dense<0.000000e+00> : vector<8xf32>
    %359 = vector.multi_reduction <add>, %355, %cst_112 [1] : vector<8x128xf32> to vector<8xf32>
    %360 = vector.shape_cast %359 : vector<8xf32> to vector<8x1xf32>
    %cst_113 = arith.constant 1.280000e+02 : f32
    %361 = vector.broadcast %cst_113 : f32 to vector<8x1xf32>
    %362 = arith.divf %360, %361 : vector<8x1xf32>
    %363 = vector.broadcast %362 : vector<8x1xf32> to vector<8x128xf32>
    %364 = arith.subf %355, %363 : vector<8x128xf32>
    %365 = arith.mulf %364, %364 : vector<8x128xf32>
    %cst_114 = arith.constant dense<0.000000e+00> : vector<8xf32>
    %366 = vector.multi_reduction <add>, %365, %cst_114 [1] : vector<8x128xf32> to vector<8xf32>
    %367 = vector.shape_cast %366 : vector<8xf32> to vector<8x1xf32>
    %cst_115 = arith.constant 1.280000e+02 : f32
    %368 = vector.broadcast %cst_115 : f32 to vector<8x1xf32>
    %369 = arith.divf %367, %368 : vector<8x1xf32>
    %370 = vector.broadcast %362 : vector<8x1xf32> to vector<8x128xf32>
    %371 = arith.subf %355, %370 : vector<8x128xf32>
    %cst_116 = arith.constant 9.99999997E-7 : f32
    %372 = vector.broadcast %cst_116 : f32 to vector<8x1xf32>
    %373 = arith.addf %369, %372 : vector<8x1xf32>
    %374 = math.rsqrt %373 : vector<8x1xf32>
    %375 = vector.broadcast %374 : vector<8x1xf32> to vector<8x128xf32>
    %376 = arith.mulf %371, %375 : vector<8x128xf32>
    %377 = vector.broadcast %356 : vector<1x128xf32> to vector<8x128xf32>
    %378 = arith.mulf %376, %377 : vector<8x128xf32>
    %379 = vector.broadcast %357 : vector<1x128xf32> to vector<8x128xf32>
    %380 = arith.addf %378, %379 : vector<8x128xf32>
    %c768 = arith.constant 768 : index
    %c0_117 = arith.constant 0 : index
    %381 = vector.load %arg5[%c768, %c0_117] : memref<896x128xbf16, #tpu.memory_space<vmem>>, vector<128x128xbf16>
    %382 = arith.truncf %380 : vector<8x128xf32> to vector<8x128xbf16>
    %cst_118 = arith.constant dense<0.000000e+00> : vector<8x128xf32>
    %383 = tpu.matmul %382, %381, %cst_118 {dimension_numbers = #tpu.dot_dimension_numbers<[1], [0], [0], [1], [0, 0, 1, 1], [], []>} : vector<8x128xbf16>, vector<128x128xbf16>, vector<8x128xf32> -> vector<8x128xf32>
    %384 = vector.broadcast %358 : vector<1x128xf32> to vector<8x128xf32>
    %385 = arith.addf %383, %384 : vector<8x128xf32>
    %c0_119 = arith.constant 0 : index
    %c0_120 = arith.constant 0 : index
    %c0_121 = arith.constant 0 : index
    %386 = vector.load %arg6[%c0_119, %c0_120, %c0_121] : memref<1x8x128xf32, #tpu.memory_space<vmem>>, vector<1x8x128xf32>
    %387 = vector.shape_cast %386 : vector<1x8x128xf32> to vector<8x128xf32>
    %388 = vector.shape_cast %385 : vector<8x128xf32> to vector<1x8x128xf32>
    tpu.vector_store %arg6[%c0_119, %c0_120, %c0_121], %388 {strides = array<i32>} : memref<1x8x128xf32, #tpu.memory_space<vmem>>, vector<1x8x128xf32>,
    return
  }
  func.func @transform_0(%arg0: i32) -> (i32, i32, i32) {
    %c0_i32 = arith.constant 0 : i32
    %c0_i32_0 = arith.constant 0 : i32
    %c0_i32_1 = arith.constant 0 : i32
    return %arg0, %c0_i32, %c0_i32_0 : i32, i32, i32
  }
  func.func @transform_1(%arg0: i32) -> (i32, i32) {
    %c0_i32 = arith.constant 0 : i32
    %c0_i32_0 = arith.constant 0 : i32
    %c0_i32_1 = arith.constant 0 : i32
    return %c0_i32, %c0_i32_0 : i32, i32
  }
  func.func @transform_2(%arg0: i32) -> (i32, i32, i32) {
    %c0_i32 = arith.constant 0 : i32
    %c0_i32_0 = arith.constant 0 : i32
    %c0_i32_1 = arith.constant 0 : i32
    %c0_i32_2 = arith.constant 0 : i32
    return %c0_i32, %c0_i32_0, %c0_i32_1 : i32, i32, i32
  }
  func.func @transform_3(%arg0: i32) -> (i32, i32, i32) {
    %c0_i32 = arith.constant 0 : i32
    %c0_i32_0 = arith.constant 0 : i32
    %c0_i32_1 = arith.constant 0 : i32
    %c0_i32_2 = arith.constant 0 : i32
    return %c0_i32, %c0_i32_0, %c0_i32_1 : i32, i32, i32
  }
  func.func @transform_4(%arg0: i32) -> (i32, i32) {
    %c0_i32 = arith.constant 0 : i32
    %c0_i32_0 = arith.constant 0 : i32
    %c0_i32_1 = arith.constant 0 : i32
    return %c0_i32, %c0_i32_0 : i32, i32
  }
  func.func @transform_5(%arg0: i32) -> (i32, i32, i32) {
    %c0_i32 = arith.constant 0 : i32
    %c0_i32_0 = arith.constant 0 : i32
    %c0_i32_1 = arith.constant 0 : i32
    return %arg0, %c0_i32, %c0_i32_0 : i32, i32, i32
  }
}

</mosaic_0001>

<llo_original>
// kernel: vit_forward.1
$region0: #{vit_forward.1}
  #allocation0 [shape = 'u32[]', space=smem, size = 0x4, offset = 0x4, fixed_abs, tag = 'smem constant byte address 0x4 - core index']
  #allocation1 [shape = 'u32[144,128]{1,0:T(1,128)}', space=vmem, size = 0x12000, scoped, tag = 'internal scratch']
  %s0 = inlined_call_operand.vmem [shape: bf16[2,8,768], index: 0, kind: input, shape index: {}]
  %s1 = inlined_call_operand.vmem [shape: f32[32,384], index: 1, kind: input, shape index: {}]
  %s2 = inlined_call_operand.vmem [shape: bf16[2,128,768], index: 2, kind: input, shape index: {}]
  %s3 = inlined_call_operand.vmem [shape: bf16[2,256,128], index: 3, kind: input, shape index: {}]
  %s4 = inlined_call_operand.vmem [shape: bf16[896,128], index: 4, kind: input, shape index: {}]
  %s5 = inlined_call_operand.vmem [shape: f32[2,8,128], index: 5, kind: output, shape index: {}]
  %s6 = sld [smem:[#allocation0]]
  $region53: #{vit_forward.1} parent=0
    _
  %s8 = ssub.s32 1, %s6
  %s9 = scalar_select 0, %s8, %s6
  loop: start=0, step=1, limit=4
  $region2: #{vit_forward.1} parent=0 // loop_pre_header
    _
  $region3: #{vit_forward.1} parent=0 // loop_header
    %s11 = sphi 0, %s15
    %p12 = scmp.ge.s32.totalorder %s11, 4
    %s21 = sphi 0, %s23
    %s24 = sphi 0, %s21
    %s25 = sphi 0, %s24
    %s41 = sphi 0, %s25
    %s45 = sphi 0, %s45
    %s47 = sphi 0, %s45
    %s48 = sphi 0, %s47
    %s62 = sphi 0, %s48
    %s66 = sphi 0, %s66
    %s68 = sphi 0, %s66
    %s69 = sphi 0, %s68
    %s83 = sphi 0, %s69
    %s87 = sphi 0, %s87
    %s89 = sphi 0, %s87
    %s90 = sphi 0, %s89
    %s104 = sphi 0, %s90
    %s108 = sphi 0, %s108
    %s110 = sphi 0, %s108
    %s111 = sphi 0, %s110
    %s125 = sphi 0, %s111
    %s131 = sphi 0, %s133
    %s134 = sphi 0, %s131
    %s135 = sphi 0, %s134
    %s151 = sphi 0, %s135
  $region4: #{vit_forward.1} parent=0 // loop_header_branch
    %14 = sbr.rel (%p12) target = $region8
  $region5: #{vit_forward.1} parent=0 // loop_body
    %s16 = ssub.s32 %s11, 1
    %s17 = ssub.s32 %s11, 2
    %s18 = sadd.s32 %s11, 1
    %s19 = ssub.s32 %s11, %s18
    %p20 = scmp.eq.s32.totalorder %s19, 0
    %s22 = sadd.s32 %s21, 1
    %s23 = scalar_select %p20, %s21, %s22
    %p26 = pneg %p20
    %p27 = scmp.eq.s32.totalorder %s11, 1
    %p28 = por %p26, %p27
    %p29 = scmp.ne.s32.totalorder %s21, %s24
    %p30 = scmp.eq.s32.totalorder %s11, 0
    %p31 = por %p29, %p30
    %p32 = scmp.ne.s32.totalorder %s21, %s24
    %p33 = scmp.eq.s32.totalorder %s16, 1
    %p34 = por %p32, %p33
    %p35 = scmp.ne.s32.totalorder %s24, %s25
    %p36 = scmp.eq.s32.totalorder %s16, 0
    %p37 = por %p35, %p36
    %p38 = scmp.ne.s32.totalorder %s24, %s25
    %p39 = scmp.eq.s32.totalorder %s17, 1
    %p40 = por %p38, %p39
    %p42 = scmp.ne.s32.totalorder %s25, %s41
    %p43 = scmp.eq.s32.totalorder %s17, 0
    %p44 = por %p42, %p43
    %s46 = sadd.s32 %s45, 1
    %p49 = scmp.eq.s32.totalorder %s11, 1
    %p50 = scmp.ne.s32.totalorder %s45, %s47
    %p51 = scmp.eq.s32.totalorder %s11, 0
    %p52 = por %p50, %p51
    %p53 = scmp.ne.s32.totalorder %s45, %s47
    %p54 = scmp.eq.s32.totalorder %s16, 1
    %p55 = por %p53, %p54
    %p56 = scmp.ne.s32.totalorder %s47, %s48
    %p57 = scmp.eq.s32.totalorder %s16, 0
    %p58 = por %p56, %p57
    %p59 = scmp.ne.s32.totalorder %s47, %s48
    %p60 = scmp.eq.s32.totalorder %s17, 1
    %p61 = por %p59, %p60
    %p63 = scmp.ne.s32.totalorder %s48, %s62
    %p64 = scmp.eq.s32.totalorder %s17, 0
    %p65 = por %p63, %p64
    %s67 = sadd.s32 %s66, 1
    %p70 = scmp.eq.s32.totalorder %s11, 1
    %p71 = scmp.ne.s32.totalorder %s66, %s68
    %p72 = scmp.eq.s32.totalorder %s11, 0
    %p73 = por %p71, %p72
    %p74 = scmp.ne.s32.totalorder %s66, %s68
    %p75 = scmp.eq.s32.totalorder %s16, 1
    %p76 = por %p74, %p75
    %p77 = scmp.ne.s32.totalorder %s68, %s69
    %p78 = scmp.eq.s32.totalorder %s16, 0
    %p79 = por %p77, %p78
    %p80 = scmp.ne.s32.totalorder %s68, %s69
    %p81 = scmp.eq.s32.totalorder %s17, 1
    %p82 = por %p80, %p81
    %p84 = scmp.ne.s32.totalorder %s69, %s83
    %p85 = scmp.eq.s32.totalorder %s17, 0
    %p86 = por %p84, %p85
    %s88 = sadd.s32 %s87, 1
    %p91 = scmp.eq.s32.totalorder %s11, 1
    %p92 = scmp.ne.s32.totalorder %s87, %s89
    %p93 = scmp.eq.s32.totalorder %s11, 0
    %p94 = por %p92, %p93
    %p95 = scmp.ne.s32.totalorder %s87, %s89
    %p96 = scmp.eq.s32.totalorder %s16, 1
    %p97 = por %p95, %p96
    %p98 = scmp.ne.s32.totalorder %s89, %s90
    %p99 = scmp.eq.s32.totalorder %s16, 0
    %p100 = por %p98, %p99
    %p101 = scmp.ne.s32.totalorder %s89, %s90
    %p102 = scmp.eq.s32.totalorder %s17, 1
    %p103 = por %p101, %p102
    %p105 = scmp.ne.s32.totalorder %s90, %s104
    %p106 = scmp.eq.s32.totalorder %s17, 0
    %p107 = por %p105, %p106
    %s109 = sadd.s32 %s108, 1
    %p112 = scmp.eq.s32.totalorder %s11, 1
    %p113 = scmp.ne.s32.totalorder %s108, %s110
    %p114 = scmp.eq.s32.totalorder %s11, 0
    %p115 = por %p113, %p114
    %p116 = scmp.ne.s32.totalorder %s108, %s110
    %p117 = scmp.eq.s32.totalorder %s16, 1
    %p118 = por %p116, %p117
    %p119 = scmp.ne.s32.totalorder %s110, %s111
    %p120 = scmp.eq.s32.totalorder %s16, 0
    %p121 = por %p119, %p120
    %p122 = scmp.ne.s32.totalorder %s110, %s111
    %p123 = scmp.eq.s32.totalorder %s17, 1
    %p124 = por %p122, %p123
    %p126 = scmp.ne.s32.totalorder %s111, %s125
    %p127 = scmp.eq.s32.totalorder %s17, 0
    %p128 = por %p126, %p127
    %s129 = ssub.s32 %s11, %s18
    %p130 = scmp.eq.s32.totalorder %s129, 0
    %s132 = sadd.s32 %s131, 1
    %s133 = scalar_select %p130, %s131, %s132
    %p136 = pneg %p130
    %p137 = scmp.eq.s32.totalorder %s11, 1
    %p138 = por %p136, %p137
    %p139 = scmp.ne.s32.totalorder %s131, %s134
    %p140 = scmp.eq.s32.totalorder %s11, 0
    %p141 = por %p139, %p140
    %p142 = scmp.ne.s32.totalorder %s131, %s134
    %p143 = scmp.eq.s32.totalorder %s16, 1
    %p144 = por %p142, %p143
    %p145 = scmp.ne.s32.totalorder %s134, %s135
    %p146 = scmp.eq.s32.totalorder %s16, 0
    %p147 = por %p145, %p146
    %p148 = scmp.ne.s32.totalorder %s134, %s135
    %p149 = scmp.eq.s32.totalorder %s17, 1
    %p150 = por %p148, %p149
    %p152 = scmp.ne.s32.totalorder %s135, %s151
    %p153 = scmp.eq.s32.totalorder %s17, 0
    %p154 = por %p152, %p153
    %p155 = scmp.le.s32.totalorder 1, %s11
    %p156 = scmp.lt.s32.totalorder %s11, 3
    %p157 = pnand %p155, %p156
    %p158 = pneg %p157
    // Predicated region
    $region9: #{vit_forward.1} parent=5 // pred_check
      _
    $region10: #{vit_forward.1} parent=5 // pred_check_branch
      %160 = sbr.rel (%p157) target = $region12
    $region11: #{vit_forward.1} parent=5 // pred_region
      %s161 = ssub.s32 %s11, 1
      // Predicated region
      $region13: #{vit_forward.1} parent=11 // pred_check
        %p162 = pneg %p58
      $region14: #{vit_forward.1} parent=11 // pred_check_branch
        %164 = sbr.rel (%p162) target = $region16
      $region15: #{vit_forward.1} parent=11 // pred_region
        _
      $region16: #{vit_forward.1} parent=11 // pred_fallthru
        _
      // Predicated region
      $region17: #{vit_forward.1} parent=11 // pred_check
        %p165 = pneg %p79
      $region18: #{vit_forward.1} parent=11 // pred_check_branch
        %167 = sbr.rel (%p165) target = $region20
      $region19: #{vit_forward.1} parent=11 // pred_region
        _
      $region20: #{vit_forward.1} parent=11 // pred_fallthru
        _
      // Predicated region
      $region21: #{vit_forward.1} parent=11 // pred_check
        %p168 = pneg %p100
      $region22: #{vit_forward.1} parent=11 // pred_check_branch
        %170 = sbr.rel (%p168) target = $region24
      $region23: #{vit_forward.1} parent=11 // pred_region
        _
      $region24: #{vit_forward.1} parent=11 // pred_fallthru
        _
      // Predicated region
      $region25: #{vit_forward.1} parent=11 // pred_check
        %p171 = pneg %p121
      $region26: #{vit_forward.1} parent=11 // pred_check_branch
        %173 = sbr.rel (%p171) target = $region28
      $region27: #{vit_forward.1} parent=11 // pred_region
        _
      $region28: #{vit_forward.1} parent=11 // pred_fallthru
        _
    $region12: #{vit_forward.1} parent=5 // pred_fallthru
      _
    %p174 = scmp.lt.s32.totalorder %s11, 2
    // Predicated region
    $region29: #{vit_forward.1} parent=5 // pred_check
      %p175 = pneg %p174
    $region30: #{vit_forward.1} parent=5 // pred_check_branch
      %177 = sbr.rel (%p175) target = $region32
    $region31: #{vit_forward.1} parent=5 // pred_region
      // Predicated region
      $region33: #{vit_forward.1} parent=31 // pred_check
        %p178 = pneg %p31
      $region34: #{vit_forward.1} parent=31 // pred_check_branch
        %180 = sbr.rel (%p178) target = $region36
      $region35: #{vit_forward.1} parent=31 // pred_region
        %p181 = scmp.lt.s32.totalorder %s11, 1
        %s182 = scalar_select %p181, %s11, 1
        %s183 = smul.addr %s182, 6
        %s184 = smul.addr %s183, 4
        %s185 = scalar_lea.vmem %s0, %s184
      $region36: #{vit_forward.1} parent=31 // pred_fallthru
        _
    $region32: #{vit_forward.1} parent=5 // pred_fallthru
      _
    %p186 = scmp.le.s32.totalorder 1, %s11
    %p187 = scmp.lt.s32.totalorder %s11, 3
    %p188 = pnand %p186, %p187
    %p189 = pneg %p188
    // Predicated region
    $region37: #{vit_forward.1} parent=5 // pred_check
      _
    $region38: #{vit_forward.1} parent=5 // pred_check_branch
      %191 = sbr.rel (%p188) target = $region40
    $region39: #{vit_forward.1} parent=5 // pred_region
      %s192 = ssub.s32 %s11, 1
      %p193 = scmp.lt.s32.totalorder %s16, 1
      %s194 = scalar_select %p193, %s16, 1
      %s195 = smul.addr %s194, 6
      %s196 = smul.addr %s195, 4
      %s197 = scalar_lea.vmem %s0, %s196
      %p198 = pneg %p37
      %p199 = pneg %p34
      %p200 = pneg %p58
      %p201 = pneg %p55
      %p202 = pneg %p79
      %p203 = pneg %p76
      %p204 = pneg %p100
      %p205 = pneg %p97
      %p206 = pneg %p121
      %p207 = pneg %p118
      %p208 = pneg %p147
      %p209 = pneg %p144
      %p210 = scmp.lt.s32.totalorder %s16, 1
      %s211 = scalar_select %p210, %s16, 1
      %s212 = smul.addr %s211, 8
      %s213 = scalar_lea.vmem %s5, %s212
      %p214 = scmp.lt.s32.totalorder %s16, 1
      %s215 = scalar_select %p214, %s16, 1
      %s216 = smul.addr %s215, 6
      %s217 = smul.addr %s216, 4
      %s218 = scalar_lea.vmem %s0, %s217
      %p219 = scmp.lt.s32.totalorder %s16, 1
      %s220 = scalar_select %p219, %s16, 1
      %s221 = smul.addr %s220, 8
      %s222 = scalar_lea.vmem %s5, %s221
      %v224 = vld [vmem:[%s1] sm:$0xff]
      %v225 = vld [vmem:[%s1 + $0x18] sm:$0xf]
      %v226 = vld [vmem:[%s1 + $0x1c] ss:$0 sm:$0xff]
      %v227 = vld [vmem:[%s4] sm:$0xf]
      %v228 = vld [vmem:[%s4 + $0x4] sm:$0xf]
      %v229 = vld [vmem:[%s4 + $0x8] sm:$0xf]
      %v230 = vld [vmem:[%s4 + $0xc] sm:$0xf]
      %v231 = vld [vmem:[%s4 + $0x10] sm:$0xf]
      %v232 = vld [vmem:[%s4 + $0x14] sm:$0xf]
      %v233 = vld [vmem:[%s4 + $0x18] sm:$0xf]
      %v234 = vld [vmem:[%s4 + $0x1c] sm:$0xf]
      %v235 = vld [vmem:[%s4 + $0x20] sm:$0xf]
      %v236 = vld [vmem:[%s4 + $0x24] sm:$0xf]
      %v237 = vld [vmem:[%s4 + $0x28] sm:$0xf]
      %v238 = vld [vmem:[%s4 + $0x2c] sm:$0xf]
      %v239 = vld [vmem:[%s4 + $0x30] sm:$0xf]
      %v240 = vld [vmem:[%s4 + $0x34] sm:$0xf]
      %v241 = vld [vmem:[%s4 + $0x38] sm:$0xf]
      %v242 = vld [vmem:[%s4 + $0x3c] sm:$0xf]
      %v243 = vld [vmem:[%s4 + $0x40] sm:$0xf]
      %v244 = vld [vmem:[%s4 + $0x44] sm:$0xf]
      %v245 = vld [vmem:[%s4 + $0x48] sm:$0xf]
      %v246 = vld [vmem:[%s4 + $0x4c] sm:$0xf]
      %v247 = vld [vmem:[%s4 + $0x50] sm:$0xf]
      %v248 = vld [vmem:[%s4 + $0x54] sm:$0xf]
      %v249 = vld [vmem:[%s4 + $0x58] sm:$0xf]
      %v250 = vld [vmem:[%s4 + $0x5c] sm:$0xf]
      %v251 = vld [vmem:[%s4 + $0x60] sm:$0xf]
      %v252 = vld [vmem:[%s4 + $0x64] sm:$0xf]
      %v253 = vld [vmem:[%s4 + $0x68] sm:$0xf]
      %v254 = vld [vmem:[%s4 + $0x6c] sm:$0xf]
      %v255 = vld [vmem:[%s4 + $0x70] sm:$0xf]
      %v256 = vld [vmem:[%s4 + $0x74] sm:$0xf]
      %v257 = vld [vmem:[%s4 + $0x78] sm:$0xf]
      %v258 = vld [vmem:[%s4 + $0x7c] sm:$0xf]
      %v259 = vld [vmem:[%s4 + $0x80] sm:$0xf]
      %v260 = vld [vmem:[%s4 + $0x84] sm:$0xf]
      %v261 = vld [vmem:[%s4 + $0x88] sm:$0xf]
      %v262 = vld [vmem:[%s4 + $0x8c] sm:$0xf]
      %v263 = vld [vmem:[%s4 + $0x90] sm:$0xf]
      %v264 = vld [vmem:[%s4 + $0x94] sm:$0xf]
      %v265 = vld [vmem:[%s4 + $0x98] sm:$0xf]
      %v266 = vld [vmem:[%s4 + $0x9c] sm:$0xf]
      %v267 = vld [vmem:[%s4 + $0xa0] sm:$0xf]
      %v268 = vld [vmem:[%s4 + $0xa4] sm:$0xf]
      %v269 = vld [vmem:[%s4 + $0xa8] sm:$0xf]
      %v270 = vld [vmem:[%s4 + $0xac] sm:$0xf]
      %v271 = vld [vmem:[%s4 + $0xb0] sm:$0xf]
      %v272 = vld [vmem:[%s4 + $0xb4] sm:$0xf]
      %v273 = vld [vmem:[%s4 + $0xb8] sm:$0xf]
      %v274 = vld [vmem:[%s4 + $0xbc] sm:$0xf]
      %v275 = vld [vmem:[%s4 + $0xc0] sm:$0xf]
      %v276 = vld [vmem:[%s4 + $0xc4] sm:$0xf]
      %v277 = vld [vmem:[%s4 + $0xc8] sm:$0xf]
      %v278 = vld [vmem:[%s4 + $0xcc] sm:$0xf]
      %v279 = vld [vmem:[%s4 + $0xd0] sm:$0xf]
      %v280 = vld [vmem:[%s4 + $0xd4] sm:$0xf]
      %v281 = vld [vmem:[%s4 + $0xd8] sm:$0xf]
      %v282 = vld [vmem:[%s4 + $0xdc] sm:$0xf]
      %v283 = vld [vmem:[%s4 + $0xe0] sm:$0xf]
      %v284 = vld [vmem:[%s4 + $0xe4] sm:$0xf]
      %v285 = vld [vmem:[%s4 + $0xe8] sm:$0xf]
      %v286 = vld [vmem:[%s4 + $0xec] sm:$0xf]
      %v287 = vld [vmem:[%s4 + $0xf0] sm:$0xf]
      %v288 = vld [vmem:[%s4 + $0xf4] sm:$0xf]
      %v289 = vld [vmem:[%s4 + $0xf8] sm:$0xf]
      %v290 = vld [vmem:[%s4 + $0xfc] sm:$0xf]
      %v291 = vld [vmem:[%s4 + $0x100] sm:$0xf]
      %v292 = vld [vmem:[%s4 + $0x104] sm:$0xf]
      %v293 = vld [vmem:[%s4 + $0x108] sm:$0xf]
      %v294 = vld [vmem:[%s4 + $0x10c] sm:$0xf]
      %v295 = vld [vmem:[%s4 + $0x110] sm:$0xf]
      %v296 = vld [vmem:[%s4 + $0x114] sm:$0xf]
      %v297 = vld [vmem:[%s4 + $0x118] sm:$0xf]
      %v298 = vld [vmem:[%s4 + $0x11c] sm:$0xf]
      %v299 = vld [vmem:[%s4 + $0x120] sm:$0xf]
      %v300 = vld [vmem:[%s4 + $0x124] sm:$0xf]
      %v301 = vld [vmem:[%s4 + $0x128] sm:$0xf]
      %v302 = vld [vmem:[%s4 + $0x12c] sm:$0xf]
      %v303 = vld [vmem:[%s4 + $0x130] sm:$0xf]
      %v304 = vld [vmem:[%s4 + $0x134] sm:$0xf]
      %v305 = vld [vmem:[%s4 + $0x138] sm:$0xf]
      %v306 = vld [vmem:[%s4 + $0x13c] sm:$0xf]
      %v307 = vld [vmem:[%s4 + $0x140] sm:$0xf]
      %v308 = vld [vmem:[%s4 + $0x144] sm:$0xf]
      %v309 = vld [vmem:[%s4 + $0x148] sm:$0xf]
      %v310 = vld [vmem:[%s4 + $0x14c] sm:$0xf]
      %v311 = vld [vmem:[%s4 + $0x150] sm:$0xf]
      %v312 = vld [vmem:[%s4 + $0x154] sm:$0xf]
      %v313 = vld [vmem:[%s4 + $0x158] sm:$0xf]
      %v314 = vld [vmem:[%s4 + $0x15c] sm:$0xf]
      %v315 = vld [vmem:[%s4 + $0x160] sm:$0xf]
      %v316 = vld [vmem:[%s4 + $0x164] sm:$0xf]
      %v317 = vld [vmem:[%s4 + $0x168] sm:$0xf]
      %v318 = vld [vmem:[%s4 + $0x16c] sm:$0xf]
      %v319 = vld [vmem:[%s4 + $0x170] sm:$0xf]
      %v320 = vld [vmem:[%s4 + $0x174] sm:$0xf]
      %v321 = vld [vmem:[%s4 + $0x178] sm:$0xf]
      %v322 = vld [vmem:[%s4 + $0x17c] sm:$0xf]
      %v323 = vld [vmem:[%s218] sm:$0xff]
      %v324 = vld [vmem:[%s218 + $0x8] sm:$0xff]
      %v325 = vld [vmem:[%s218 + $0x10] sm:$0xff]
      %v329 = vunpack.c.l.b16 %v323
      %v330 = vunpack.c.h.b16 %v323
      %v331 = vunpack.c.l.b16 %v324
      %v332 = vunpack.c.h.b16 %v324
      %v333 = vunpack.c.l.b16 %v325
      %v334 = vunpack.c.h.b16 %v325
      %v335 = vpack.c.b16 %v329, %v329
      %v336 = vpack.c.b16 %v330, %v330
      %v337 = vpack.c.b16 %v331, %v331
      %v338 = vpack.c.b16 %v332, %v332
      %v339 = vpack.c.b16 %v333, %v333
      %v340 = vpack.c.b16 %v334, %v334
      %v443 = vunpack.c.l.b16 %v227
      %v444 = vunpack.c.l.b16 %v228
      %v445 = vunpack.c.l.b16 %v229
      %v446 = vunpack.c.l.b16 %v230
      %v447 = vunpack.c.l.b16 %v231
      %v448 = vunpack.c.l.b16 %v232
      %v449 = vunpack.c.l.b16 %v233
      %v450 = vunpack.c.l.b16 %v234
      %v451 = vunpack.c.l.b16 %v235
      %v452 = vunpack.c.l.b16 %v236
      %v453 = vunpack.c.l.b16 %v237
      %v454 = vunpack.c.l.b16 %v238
      %v455 = vunpack.c.l.b16 %v239
      %v456 = vunpack.c.l.b16 %v240
      %v457 = vunpack.c.l.b16 %v241
      %v458 = vunpack.c.l.b16 %v242
      %v459 = vunpack.c.l.b16 %v243
      %v460 = vunpack.c.l.b16 %v244
      %v461 = vunpack.c.l.b16 %v245
      %v462 = vunpack.c.l.b16 %v246
      %v463 = vunpack.c.l.b16 %v247
      %v464 = vunpack.c.l.b16 %v248
      %v465 = vunpack.c.l.b16 %v249
      %v466 = vunpack.c.l.b16 %v250
      %v467 = vunpack.c.l.b16 %v251
      %v468 = vunpack.c.l.b16 %v252
      %v469 = vunpack.c.l.b16 %v253
      %v470 = vunpack.c.l.b16 %v254
      %v471 = vunpack.c.l.b16 %v255
      %v472 = vunpack.c.l.b16 %v256
      %v473 = vunpack.c.l.b16 %v257
      %v474 = vunpack.c.l.b16 %v258
      %v475 = vunpack.c.l.b16 %v259
      %v476 = vunpack.c.l.b16 %v260
      %v477 = vunpack.c.l.b16 %v261
      %v478 = vunpack.c.l.b16 %v262
      %v479 = vunpack.c.l.b16 %v263
      %v480 = vunpack.c.l.b16 %v264
      %v481 = vunpack.c.l.b16 %v265
      %v482 = vunpack.c.l.b16 %v266
      %v483 = vunpack.c.l.b16 %v267
      %v484 = vunpack.c.l.b16 %v268
      %v485 = vunpack.c.l.b16 %v269
      %v486 = vunpack.c.l.b16 %v270
      %v487 = vunpack.c.l.b16 %v271
      %v488 = vunpack.c.l.b16 %v272
      %v489 = vunpack.c.l.b16 %v273
      %v490 = vunpack.c.l.b16 %v274
      %v491 = vunpack.c.l.b16 %v275
      %v492 = vunpack.c.l.b16 %v276
      %v493 = vunpack.c.l.b16 %v277
      %v494 = vunpack.c.l.b16 %v278
      %v495 = vunpack.c.l.b16 %v279
      %v496 = vunpack.c.l.b16 %v280
      %v497 = vunpack.c.l.b16 %v281
      %v498 = vunpack.c.l.b16 %v282
      %v499 = vunpack.c.l.b16 %v283
      %v500 = vunpack.c.l.b16 %v284
      %v501 = vunpack.c.l.b16 %v285
      %v502 = vunpack.c.l.b16 %v286
      %v503 = vunpack.c.l.b16 %v287
      %v504 = vunpack.c.l.b16 %v288
      %v505 = vunpack.c.l.b16 %v289
      %v506 = vunpack.c.l.b16 %v290
      %v507 = vunpack.c.l.b16 %v291
      %v508 = vunpack.c.l.b16 %v292
      %v509 = vunpack.c.l.b16 %v293
      %v510 = vunpack.c.l.b16 %v294
      %v511 = vunpack.c.l.b16 %v295
      %v512 = vunpack.c.l.b16 %v296
      %v513 = vunpack.c.l.b16 %v297
      %v514 = vunpack.c.l.b16 %v298
      %v515 = vunpack.c.l.b16 %v299
      %v516 = vunpack.c.l.b16 %v300
      %v517 = vunpack.c.l.b16 %v301
      %v518 = vunpack.c.l.b16 %v302
      %v519 = vunpack.c.l.b16 %v303
      %v520 = vunpack.c.l.b16 %v304
      %v521 = vunpack.c.l.b16 %v305
      %v522 = vunpack.c.l.b16 %v306
      %v523 = vunpack.c.l.b16 %v307
      %v524 = vunpack.c.l.b16 %v308
      %v525 = vunpack.c.l.b16 %v309
      %v526 = vunpack.c.l.b16 %v310
      %v527 = vunpack.c.l.b16 %v311
      %v528 = vunpack.c.l.b16 %v312
      %v529 = vunpack.c.l.b16 %v313
      %v530 = vunpack.c.l.b16 %v314
      %v531 = vunpack.c.l.b16 %v315
      %v532 = vunpack.c.l.b16 %v316
      %v533 = vunpack.c.l.b16 %v317
      %v534 = vunpack.c.l.b16 %v318
      %v535 = vunpack.c.l.b16 %v319
      %v536 = vunpack.c.l.b16 %v320
      %v537 = vunpack.c.l.b16 %v321
      %v538 = vunpack.c.l.b16 %v322
      %v539 = vpack.c.b16 %v444, %v443
      %v540 = vpack.c.b16 %v446, %v445
      %v541 = vpack.c.b16 %v448, %v447
      %v542 = vpack.c.b16 %v450, %v449
      %v543 = vpack.c.b16 %v452, %v451
      %v544 = vpack.c.b16 %v454, %v453
      %v545 = vpack.c.b16 %v456, %v455
      %v546 = vpack.c.b16 %v458, %v457
      %v547 = vpack.c.b16 %v460, %v459
      %v548 = vpack.c.b16 %v462, %v461
      %v549 = vpack.c.b16 %v464, %v463
      %v550 = vpack.c.b16 %v466, %v465
      %v551 = vpack.c.b16 %v468, %v467
      %v552 = vpack.c.b16 %v470, %v469
      %v553 = vpack.c.b16 %v472, %v471
      %v554 = vpack.c.b16 %v474, %v473
      %v555 = vpack.c.b16 %v476, %v475
      %v556 = vpack.c.b16 %v478, %v477
      %v557 = vpack.c.b16 %v480, %v479
      %v558 = vpack.c.b16 %v482, %v481
      %v559 = vpack.c.b16 %v484, %v483
      %v560 = vpack.c.b16 %v486, %v485
      %v561 = vpack.c.b16 %v488, %v487
      %v562 = vpack.c.b16 %v490, %v489
      %v563 = vpack.c.b16 %v492, %v491
      %v564 = vpack.c.b16 %v494, %v493
      %v565 = vpack.c.b16 %v496, %v495
      %v566 = vpack.c.b16 %v498, %v497
      %v567 = vpack.c.b16 %v500, %v499
      %v568 = vpack.c.b16 %v502, %v501
      %v569 = vpack.c.b16 %v504, %v503
      %v570 = vpack.c.b16 %v506, %v505
      %v571 = vpack.c.b16 %v508, %v507
      %v572 = vpack.c.b16 %v510, %v509
      %v573 = vpack.c.b16 %v512, %v511
      %v574 = vpack.c.b16 %v514, %v513
      %v575 = vpack.c.b16 %v516, %v515
      %v576 = vpack.c.b16 %v518, %v517
      %v577 = vpack.c.b16 %v520, %v519
      %v578 = vpack.c.b16 %v522, %v521
      %v579 = vpack.c.b16 %v524, %v523
      %v580 = vpack.c.b16 %v526, %v525
      %v581 = vpack.c.b16 %v528, %v527
      %v582 = vpack.c.b16 %v530, %v529
      %v583 = vpack.c.b16 %v532, %v531
      %v584 = vpack.c.b16 %v534, %v533
      %v585 = vpack.c.b16 %v536, %v535
      %v586 = vpack.c.b16 %v538, %v537
      %635 = vmatprep.subr.bf16.mxu0 0
      %636 = vmatpush1.bf16.msra.mxu0 %v539
      %637 = vmatprep.subr.bf16.mxu0 0
      %638 = vmatpush1.bf16.msra.mxu0 %v540
      %639 = vmatprep.subr.bf16.mxu0 0
      %640 = vmatpush1.bf16.msra.mxu0 %v541
      %641 = vmatprep.subr.bf16.mxu0 0
      %642 = vmatpush1.bf16.msra.mxu0 %v542
      %643 = vmatprep.subr.bf16.mxu0 0
      %644 = vmatpush1.bf16.msra.mxu0 %v543
      %645 = vmatprep.subr.bf16.mxu0 0
      %646 = vmatpush1.bf16.msra.mxu0 %v544
      %647 = vmatprep.subr.bf16.mxu0 0
      %648 = vmatpush1.bf16.msra.mxu0 %v545
      %649 = vmatprep.subr.bf16.mxu0 0
      %650 = vmatpush1.bf16.msra.mxu0 %v546
      %651 = vmatprep.subr.bf16.mxu0 0
      %652 = vmatpush1.bf16.msra.mxu0 %v547
      %653 = vmatprep.subr.bf16.mxu0 0
      %654 = vmatpush1.bf16.msra.mxu0 %v548
      %655 = vmatprep.subr.bf16.mxu0 0
      %656 = vmatpush1.bf16.msra.mxu0 %v549
      %657 = vmatprep.subr.bf16.mxu0 0
      %658 = vmatpush1.bf16.msra.mxu0 %v550
      %659 = vmatprep.subr.bf16.mxu0 0
      %660 = vmatpush1.bf16.msra.mxu0 %v551
      %661 = vmatprep.subr.bf16.mxu0 0
      %662 = vmatpush1.bf16.msra.mxu0 %v552
      %663 = vmatprep.subr.bf16.mxu0 0
      %664 = vmatpush1.bf16.msra.mxu0 %v553
      %665 = vmatprep.subr.bf16.mxu0 0
      %666 = vmatpush1.bf16.msra.mxu0 %v554
      %667 = vmatprep.mubr.bf16.mxu0 %v336
      %668 = vmatmul.mubr.bf16.gmra.mrb[0].mxu0 %v335
      %v669 = vpop.f32.mrb[0].mxu0
      %v670 = vadd.f32 %v224, %v669
      %v671 = vpop.f32.mrb[0].mxu0
      %v672 = vpop.f32.mrb[0].mxu0
      %v673 = vpop.f32.mrb[0].mxu0
      %674 = vdwg.mxu0
      %675 = vmatprep.subr.bf16.mxu0 0
      %676 = vmatpush1.bf16.msra.mxu0 %v555
      %677 = vmatprep.subr.bf16.mxu0 0
      %678 = vmatpush1.bf16.msra.mxu0 %v556
      %679 = vmatprep.subr.bf16.mxu0 0
      %680 = vmatpush1.bf16.msra.mxu0 %v557
      %681 = vmatprep.subr.bf16.mxu0 0
      %682 = vmatpush1.bf16.msra.mxu0 %v558
      %683 = vmatprep.subr.bf16.mxu0 0
      %684 = vmatpush1.bf16.msra.mxu0 %v559
      %685 = vmatprep.subr.bf16.mxu0 0
      %686 = vmatpush1.bf16.msra.mxu0 %v560
      %687 = vmatprep.subr.bf16.mxu0 0
      %688 = vmatpush1.bf16.msra.mxu0 %v561
      %689 = vmatprep.subr.bf16.mxu0 0
      %690 = vmatpush1.bf16.msra.mxu0 %v562
      %691 = vmatprep.subr.bf16.mxu0 0
      %692 = vmatpush1.bf16.msra.mxu0 %v563
      %693 = vmatprep.subr.bf16.mxu0 0
      %694 = vmatpush1.bf16.msra.mxu0 %v564
      %695 = vmatprep.subr.bf16.mxu0 0
      %696 = vmatpush1.bf16.msra.mxu0 %v565
      %697 = vmatprep.subr.bf16.mxu0 0
      %698 = vmatpush1.bf16.msra.mxu0 %v566
      %699 = vmatprep.subr.bf16.mxu0 0
      %700 = vmatpush1.bf16.msra.mxu0 %v567
      %701 = vmatprep.subr.bf16.mxu0 0
      %702 = vmatpush1.bf16.msra.mxu0 %v568
      %703 = vmatprep.subr.bf16.mxu0 0
      %704 = vmatpush1.bf16.msra.mxu0 %v569
      %705 = vmatprep.subr.bf16.mxu0 0
      %706 = vmatpush1.bf16.msra.mxu0 %v570
      %707 = vmatprep.mubr.bf16.mxu0 %v338
      %708 = vmatmul.mubr.bf16.gmra.mrb[0].mxu0 %v337
      %v709 = vpop.f32.mrb[0].mxu0
      %v710 = vadd.f32 %v670, %v709
      %v711 = vpop.f32.mrb[0].mxu0
      %v712 = vpop.f32.mrb[0].mxu0
      %v713 = vpop.f32.mrb[0].mxu0
      %714 = vdwg.mxu0
      %715 = vmatprep.subr.bf16.mxu0 0
      %716 = vmatpush1.bf16.msra.mxu0 %v571
      %717 = vmatprep.subr.bf16.mxu0 0
      %718 = vmatpush1.bf16.msra.mxu0 %v572
      %719 = vmatprep.subr.bf16.mxu0 0
      %720 = vmatpush1.bf16.msra.mxu0 %v573
      %721 = vmatprep.subr.bf16.mxu0 0
      %722 = vmatpush1.bf16.msra.mxu0 %v574
      %723 = vmatprep.subr.bf16.mxu0 0
      %724 = vmatpush1.bf16.msra.mxu0 %v575
      %725 = vmatprep.subr.bf16.mxu0 0
      %726 = vmatpush1.bf16.msra.mxu0 %v576
      %727 = vmatprep.subr.bf16.mxu0 0
      %728 = vmatpush1.bf16.msra.mxu0 %v577
      %729 = vmatprep.subr.bf16.mxu0 0
      %730 = vmatpush1.bf16.msra.mxu0 %v578
      %731 = vmatprep.subr.bf16.mxu0 0
      %732 = vmatpush1.bf16.msra.mxu0 %v579
      %733 = vmatprep.subr.bf16.mxu0 0
      %734 = vmatpush1.bf16.msra.mxu0 %v580
      %735 = vmatprep.subr.bf16.mxu0 0
      %736 = vmatpush1.bf16.msra.mxu0 %v581
      %737 = vmatprep.subr.bf16.mxu0 0
      %738 = vmatpush1.bf16.msra.mxu0 %v582
      %739 = vmatprep.subr.bf16.mxu0 0
      %740 = vmatpush1.bf16.msra.mxu0 %v583
      %741 = vmatprep.subr.bf16.mxu0 0
      %742 = vmatpush1.bf16.msra.mxu0 %v584
      %743 = vmatprep.subr.bf16.mxu0 0
      %744 = vmatpush1.bf16.msra.mxu0 %v585
      %745 = vmatprep.subr.bf16.mxu0 0
      %746 = vmatpush1.bf16.msra.mxu0 %v586
      %747 = vmatprep.mubr.bf16.mxu0 %v340
      %748 = vmatmul.mubr.bf16.gmra.mrb[0].mxu0 %v339
      %v749 = vpop.f32.mrb[0].mxu0
      %v750 = vadd.f32 %v710, %v749
      %v751 = vpop.f32.mrb[0].mxu0
      %v752 = vpop.f32.mrb[0].mxu0
      %v753 = vpop.f32.mrb[0].mxu0
      %754 = vdwg.mxu0
      %v755 = vld [vmem:[%s1 + $0x30] ss:$0 sm:$0xff]
      %v756 = vld [vmem:[%s1 + $0x31] ss:$0 sm:$0xff]
      %s757 = scalar_lea.vmem %s1, 50
      %v758 = vld [vmem:[%s757] ss:$8 sm:$0x7]
      %v759 = vld [vmem:[%s1 + $0x33] ss:$0 sm:$0xff]
      %v760 = vld [vmem:[%s1 + $0x34] ss:$0 sm:$0xff]
      %v761 = vld [vmem:[%s1 + $0x35] ss:$0 sm:$0xff]
      %s762 = scalar_lea.vmem %s1, 54
      %v763 = vld [vmem:[%s762] ss:$8 sm:$0x3]
      %v764 = vld [vmem:[%s1 + $0x37] ss:$0 sm:$0xff]
      %v765 = vld [vmem:[%s2] sm:$0xff]
      %v766 = vld [vmem:[%s2 + $0x8] sm:$0xf]
      %v767 = vld [vmem:[%s2 + $0x18] sm:$0xff]
      %v768 = vld [vmem:[%s2 + $0x20] sm:$0xf]
      %v769 = vld [vmem:[%s2 + $0x30] sm:$0xff]
      %v770 = vld [vmem:[%s2 + $0x38] sm:$0xf]
      %v771 = vld [vmem:[%s2 + $0x48] sm:$0xff]
      %v772 = vld [vmem:[%s2 + $0x50] sm:$0xf]
      %v773 = vld [vmem:[%s2 + $0x60] sm:$0xff]
      %v774 = vld [vmem:[%s2 + $0x68] sm:$0xf]
      %v775 = vld [vmem:[%s2 + $0x78] sm:$0xff]
      %v776 = vld [vmem:[%s2 + $0x80] sm:$0xf]
      %v777 = vld [vmem:[%s2 + $0x90] sm:$0xff]
      %v778 = vld [vmem:[%s2 + $0x98] sm:$0xf]
      %v779 = vld [vmem:[%s2 + $0xa8] sm:$0xff]
      %v780 = vld [vmem:[%s2 + $0xb0] sm:$0xf]
      %v781 = vld [vmem:[%s2 + $0xc0] sm:$0xff]
      %v782 = vld [vmem:[%s2 + $0xc8] sm:$0xf]
      %v783 = vld [vmem:[%s2 + $0xd8] sm:$0xff]
      %v784 = vld [vmem:[%s2 + $0xe0] sm:$0xf]
      %v785 = vld [vmem:[%s2 + $0xf0] sm:$0xff]
      %v786 = vld [vmem:[%s2 + $0xf8] sm:$0xf]
      %v787 = vld [vmem:[%s2 + $0x108] sm:$0xff]
      %v788 = vld [vmem:[%s2 + $0x110] sm:$0xf]
      %v789 = vld [vmem:[%s2 + $0x120] sm:$0xff]
      %v790 = vld [vmem:[%s2 + $0x128] sm:$0xf]
      %v791 = vld [vmem:[%s2 + $0x138] sm:$0xff]
      %v792 = vld [vmem:[%s2 + $0x140] sm:$0xf]
      %v793 = vld [vmem:[%s2 + $0x150] sm:$0xff]
      %v794 = vld [vmem:[%s2 + $0x158] sm:$0xf]
      %v795 = vld [vmem:[%s2 + $0x168] sm:$0xff]
      %v796 = vld [vmem:[%s2 + $0x170] sm:$0xf]
      %v797 = vld [vmem:[%s2 + $0xc] sm:$0xf]
      %v798 = vld [vmem:[%s2 + $0x24] sm:$0xf]
      %v799 = vld [vmem:[%s2 + $0x3c] sm:$0xf]
      %v800 = vld [vmem:[%s2 + $0x54] sm:$0xf]
      %v801 = vld [vmem:[%s2 + $0x6c] sm:$0xf]
      %v802 = vld [vmem:[%s2 + $0x84] sm:$0xf]
      %v803 = vld [vmem:[%s2 + $0x9c] sm:$0xf]
      %v804 = vld [vmem:[%s2 + $0xb4] sm:$0xf]
      %v805 = vld [vmem:[%s2 + $0xcc] sm:$0xf]
      %v806 = vld [vmem:[%s2 + $0xe4] sm:$0xf]
      %v807 = vld [vmem:[%s2 + $0xfc] sm:$0xf]
      %v808 = vld [vmem:[%s2 + $0x114] sm:$0xf]
      %v809 = vld [vmem:[%s2 + $0x12c] sm:$0xf]
      %v810 = vld [vmem:[%s2 + $0x144] sm:$0xf]
      %v811 = vld [vmem:[%s2 + $0x15c] sm:$0xf]
      %v812 = vld [vmem:[%s2 + $0x174] sm:$0xf]
      %v813 = vld [vmem:[%s2 + $0x10] sm:$0xff]
      %v814 = vld [vmem:[%s2 + $0x28] sm:$0xff]
      %v815 = vld [vmem:[%s2 + $0x40] sm:$0xff]
      %v816 = vld [vmem:[%s2 + $0x58] sm:$0xff]
      %v817 = vld [vmem:[%s2 + $0x70] sm:$0xff]
      %v818 = vld [vmem:[%s2 + $0x88] sm:$0xff]
      %v819 = vld [vmem:[%s2 + $0xa0] sm:$0xff]
      %v820 = vld [vmem:[%s2 + $0xb8] sm:$0xff]
      %v821 = vld [vmem:[%s2 + $0xd0] sm:$0xff]
      %v822 = vld [vmem:[%s2 + $0xe8] sm:$0xff]
      %v823 = vld [vmem:[%s2 + $0x100] sm:$0xff]
      %v824 = vld [vmem:[%s2 + $0x118] sm:$0xff]
      %v825 = vld [vmem:[%s2 + $0x130] sm:$0xff]
      %v826 = vld [vmem:[%s2 + $0x148] sm:$0xff]
      %v827 = vld [vmem:[%s2 + $0x160] sm:$0xff]
      %v828 = vld [vmem:[%s2 + $0x178] sm:$0xff]
      %v829 = vld [vmem:[%s3] sm:$0xf]
      %v830 = vld [vmem:[%s3 + $0x4] sm:$0xf]
      %v831 = vld [vmem:[%s3 + $0x8] sm:$0xf]
      %v832 = vld [vmem:[%s3 + $0xc] sm:$0xf]
      %v833 = vld [vmem:[%s3 + $0x10] sm:$0xf]
      %v834 = vld [vmem:[%s3 + $0x14] sm:$0xf]
      %v835 = vld [vmem:[%s3 + $0x18] sm:$0xf]
      %v836 = vld [vmem:[%s3 + $0x1c] sm:$0xf]
      %v837 = vld [vmem:[%s3 + $0x20] sm:$0xf]
      %v838 = vld [vmem:[%s3 + $0x24] sm:$0xf]
      %v839 = vld [vmem:[%s3 + $0x28] sm:$0xf]
      %v840 = vld [vmem:[%s3 + $0x2c] sm:$0xf]
      %v841 = vld [vmem:[%s3 + $0x30] sm:$0xf]
      %v842 = vld [vmem:[%s3 + $0x34] sm:$0xf]
      %v843 = vld [vmem:[%s3 + $0x38] sm:$0xf]
      %v844 = vld [vmem:[%s3 + $0x3c] sm:$0xf]
      %v845 = vld [vmem:[%s3 + $0x40] sm:$0xf]
      %v846 = vld [vmem:[%s3 + $0x44] sm:$0xf]
      %v847 = vld [vmem:[%s3 + $0x48] sm:$0xf]
      %v848 = vld [vmem:[%s3 + $0x4c] sm:$0xf]
      %v849 = vld [vmem:[%s3 + $0x50] sm:$0xf]
      %v850 = vld [vmem:[%s3 + $0x54] sm:$0xf]
      %v851 = vld [vmem:[%s3 + $0x58] sm:$0xf]
      %v852 = vld [vmem:[%s3 + $0x5c] sm:$0xf]
      %v853 = vld [vmem:[%s3 + $0x60] sm:$0xf]
      %v854 = vld [vmem:[%s3 + $0x64] sm:$0xf]
      %v855 = vld [vmem:[%s3 + $0x68] sm:$0xf]
      %v856 = vld [vmem:[%s3 + $0x6c] sm:$0xf]
      %v857 = vld [vmem:[%s3 + $0x70] sm:$0xf]
      %v858 = vld [vmem:[%s3 + $0x74] sm:$0xf]
      %v859 = vld [vmem:[%s3 + $0x78] sm:$0xf]
      %v860 = vld [vmem:[%s3 + $0x7c] sm:$0xf]
      %861 = vadd.xlane.f32.xlu0 %v750
      %v862 = vpop.xlane.xlu0 %861
      %v863 = vrcp.pop 128.0
      %v864 = vmul.f32 %v862, %v863
      %v865 = vsub.f32 %v750, %v864
      %v866 = vmul.f32 %v865, %v865
      %867 = vadd.xlane.f32.xlu0 %v866
      %v868 = vpop.xlane.xlu0 %867
      %v869 = vmul.f32 %v868, %v863
      %v870 = vadd.f32 %v869, 1e-06
      %v871 = vrsqrt.pop %v870
      %v872 = vmul.f32 %v865, %v871
      %v873 = vmul.f32 %v872, %v755
      %v874 = vadd.f32 %v873, %v756
      %v875 = vpack.c.bf16 %v874, %v874
      %v877 = vlaneseq
      %v878 = vshrl.u32 %v877, 7
      %v879 = vsub.s32 0, %v878
      %v880 = vrot.slane %v758, %v879
      %v881 = vlaneseq
      %v882 = vshrl.u32 %v881, 7
      %v883 = vsub.s32 1, %v882
      %v884 = vrot.slane %v758, %v883
      %v885 = vlaneseq
      %v886 = vshrl.u32 %v885, 7
      %v887 = vsub.s32 2, %v886
      %v888 = vrot.slane %v758, %v887
      %v924 = vunpack.c.l.b16 %v765
      %v925 = vunpack.c.h.b16 %v765
      %v926 = vunpack.c.l.b16 %v766
      %v927 = vunpack.c.l.b16 %v767
      %v928 = vunpack.c.h.b16 %v767
      %v929 = vunpack.c.l.b16 %v768
      %v930 = vunpack.c.l.b16 %v769
      %v931 = vunpack.c.h.b16 %v769
      %v932 = vunpack.c.l.b16 %v770
      %v933 = vunpack.c.l.b16 %v771
      %v934 = vunpack.c.h.b16 %v771
      %v935 = vunpack.c.l.b16 %v772
      %v936 = vunpack.c.l.b16 %v773
      %v937 = vunpack.c.h.b16 %v773
      %v938 = vunpack.c.l.b16 %v774
      %v939 = vunpack.c.l.b16 %v775
      %v940 = vunpack.c.h.b16 %v775
      %v941 = vunpack.c.l.b16 %v776
      %v942 = vunpack.c.l.b16 %v777
      %v943 = vunpack.c.h.b16 %v777
      %v944 = vunpack.c.l.b16 %v778
      %v945 = vunpack.c.l.b16 %v779
      %v946 = vunpack.c.h.b16 %v779
      %v947 = vunpack.c.l.b16 %v780
      %v948 = vunpack.c.l.b16 %v781
      %v949 = vunpack.c.h.b16 %v781
      %v950 = vunpack.c.l.b16 %v782
      %v951 = vunpack.c.l.b16 %v783
      %v952 = vunpack.c.h.b16 %v783
      %v953 = vunpack.c.l.b16 %v784
      %v954 = vunpack.c.l.b16 %v785
      %v955 = vunpack.c.h.b16 %v785
      %v956 = vunpack.c.l.b16 %v786
      %v957 = vunpack.c.l.b16 %v787
      %v958 = vunpack.c.h.b16 %v787
      %v959 = vunpack.c.l.b16 %v788
      %v960 = vunpack.c.l.b16 %v789
      %v961 = vunpack.c.h.b16 %v789
      %v962 = vunpack.c.l.b16 %v790
      %v963 = vunpack.c.l.b16 %v791
      %v964 = vunpack.c.h.b16 %v791
      %v965 = vunpack.c.l.b16 %v792
      %v966 = vunpack.c.l.b16 %v793
      %v967 = vunpack.c.h.b16 %v793
      %v968 = vunpack.c.l.b16 %v794
      %v969 = vunpack.c.l.b16 %v795
      %v970 = vunpack.c.h.b16 %v795
      %v971 = vunpack.c.l.b16 %v796
      %v972 = vpack.c.b16 %v927, %v924
      %v973 = vpack.c.b16 %v928, %v925
      %v974 = vpack.c.b16 %v929, %v926
      %v975 = vpack.c.b16 %v933, %v930
      %v976 = vpack.c.b16 %v934, %v931
      %v977 = vpack.c.b16 %v935, %v932
      %v978 = vpack.c.b16 %v939, %v936
      %v979 = vpack.c.b16 %v940, %v937
      %v980 = vpack.c.b16 %v941, %v938
      %v981 = vpack.c.b16 %v945, %v942
      %v982 = vpack.c.b16 %v946, %v943
      %v983 = vpack.c.b16 %v947, %v944
      %v984 = vpack.c.b16 %v951, %v948
      %v985 = vpack.c.b16 %v952, %v949
      %v986 = vpack.c.b16 %v953, %v950
      %v987 = vpack.c.b16 %v957, %v954
      %v988 = vpack.c.b16 %v958, %v955
      %v989 = vpack.c.b16 %v959, %v956
      %v990 = vpack.c.b16 %v963, %v960
      %v991 = vpack.c.b16 %v964, %v961
      %v992 = vpack.c.b16 %v965, %v962
      %v993 = vpack.c.b16 %v969, %v966
      %v994 = vpack.c.b16 %v970, %v967
      %v995 = vpack.c.b16 %v971, %v968
      %1020 = vmatprep.subr.bf16.mxu0 %v973
      %1021 = vmatpush1.bf16.msra.mxu0 %v972
      %1022 = vmatprep.subr.bf16.mxu0 %v976
      %1023 = vmatpush1.bf16.msra.mxu0 %v975
      %1024 = vmatprep.subr.bf16.mxu0 %v979
      %1025 = vmatpush1.bf16.msra.mxu0 %v978
      %1026 = vmatprep.subr.bf16.mxu0 %v982
      %1027 = vmatpush1.bf16.msra.mxu0 %v981
      %1028 = vmatprep.subr.bf16.mxu0 %v985
      %1029 = vmatpush1.bf16.msra.mxu0 %v984
      %1030 = vmatprep.subr.bf16.mxu0 %v988
      %1031 = vmatpush1.bf16.msra.mxu0 %v987
      %1032 = vmatprep.subr.bf16.mxu0 %v991
      %1033 = vmatpush1.bf16.msra.mxu0 %v990
      %1034 = vmatprep.subr.bf16.mxu0 %v994
      %1035 = vmatpush1.bf16.msra.mxu0 %v993
      %1036 = vmatprep.subr.bf16.mxu0 0
      %1037 = vmatpush1.bf16.msra.mxu0 0
      %1038 = vmatprep.subr.bf16.mxu0 0
      %1039 = vmatpush1.bf16.msra.mxu0 0
      %1040 = vmatprep.subr.bf16.mxu0 0
      %1041 = vmatpush1.bf16.msra.mxu0 0
      %1042 = vmatprep.subr.bf16.mxu0 0
      %1043 = vmatpush1.bf16.msra.mxu0 0
      %1044 = vmatprep.subr.bf16.mxu0 0
      %1045 = vmatpush1.bf16.msra.mxu0 0
      %1046 = vmatprep.subr.bf16.mxu0 0
      %1047 = vmatpush1.bf16.msra.mxu0 0
      %1048 = vmatprep.subr.bf16.mxu0 0
      %1049 = vmatpush1.bf16.msra.mxu0 0
      %1050 = vmatprep.subr.bf16.mxu0 0
      %1051 = vmatpush1.bf16.msra.mxu0 0
      %1052 = vmatprep.mubr.bf16.mxu0 0
      %1053 = vmatmul.mubr.bf16.gmra.mrb[0].mxu0 %v875
      %v1054 = vpop.f32.mrb[0].mxu0
      %v1055 = vadd.f32 %v880, %v1054
      %v1056 = vpop.f32.mrb[0].mxu0
      %v1057 = vadd.f32 %v884, %v1056
      %v1058 = vpop.f32.mrb[0].mxu0
      %v1059 = vpop.f32.mrb[0].mxu0
      %1060 = vdwg.mxu0
      %1061 = vmatprep.subr.bf16.mxu0 0
      %1062 = vmatpush1.bf16.msra.mxu0 %v974
      %1063 = vmatprep.subr.bf16.mxu0 0
      %1064 = vmatpush1.bf16.msra.mxu0 %v977
      %1065 = vmatprep.subr.bf16.mxu0 0
      %1066 = vmatpush1.bf16.msra.mxu0 %v980
      %1067 = vmatprep.subr.bf16.mxu0 0
      %1068 = vmatpush1.bf16.msra.mxu0 %v983
      %1069 = vmatprep.subr.bf16.mxu0 0
      %1070 = vmatpush1.bf16.msra.mxu0 %v986
      %1071 = vmatprep.subr.bf16.mxu0 0
      %1072 = vmatpush1.bf16.msra.mxu0 %v989
      %1073 = vmatprep.subr.bf16.mxu0 0
      %1074 = vmatpush1.bf16.msra.mxu0 %v992
      %1075 = vmatprep.subr.bf16.mxu0 0
      %1076 = vmatpush1.bf16.msra.mxu0 %v995
      %1077 = vmatprep.subr.bf16.mxu0 0
      %1078 = vmatpush1.bf16.msra.mxu0 0
      %1079 = vmatprep.subr.bf16.mxu0 0
      %1080 = vmatpush1.bf16.msra.mxu0 0
      %1081 = vmatprep.subr.bf16.mxu0 0
      %1082 = vmatpush1.bf16.msra.mxu0 0
      %1083 = vmatprep.subr.bf16.mxu0 0
      %1084 = vmatpush1.bf16.msra.mxu0 0
      %1085 = vmatprep.subr.bf16.mxu0 0
      %1086 = vmatpush1.bf16.msra.mxu0 0
      %1087 = vmatprep.subr.bf16.mxu0 0
      %1088 = vmatpush1.bf16.msra.mxu0 0
      %1089 = vmatprep.subr.bf16.mxu0 0
      %1090 = vmatpush1.bf16.msra.mxu0 0
      %1091 = vmatprep.subr.bf16.mxu0 0
      %1092 = vmatpush1.bf16.msra.mxu0 0
      %1093 = vmatprep.mubr.bf16.mxu0 0
      %1094 = vmatmul.mubr.bf16.gmra.mrb[0].mxu0 %v875
      %v1095 = vpop.f32.mrb[0].mxu0
      %v1096 = vadd.f32 %v888, %v1095
      %v1097 = vpop.f32.mrb[0].mxu0
      %v1098 = vpop.f32.mrb[0].mxu0
      %v1099 = vpop.f32.mrb[0].mxu0
      %1100 = vdwg.mxu0
      %v1101 = vmul.f32 %v1055, 0.17677669
      %v1102 = vpack.c.bf16 %v1057, %v1057
      %v1103 = vlaneseq
      %v1104 = vshrl.u32 %v1103, 7
      %v1105 = vsub.s32 0, %v1104
      %v1106 = vrot.slane %v225, %v1105
      %v1107 = vmul.f32 %v1101, %v1106
      %v1108 = vpack.c.bf16 %v1107, %v1107
      %v1109 = vmul.f32 %v1096, %v1106
      %v1110 = vpack.c.bf16 %v1109, %v1109
      %1111 = vmatprep.subr.bf16.mxu0 0
      %1112 = vmatpush1.bf16.xpose.msra.mxu0 %v1102
      %1113 = vmatprep.subr.bf16.mxu0 0
      %1114 = vmatpush1.bf16.xpose.msra.mxu0 0
      %1115 = vmatprep.subr.bf16.mxu0 0
      %1116 = vmatpush1.bf16.xpose.msra.mxu0 0
      %1117 = vmatprep.subr.bf16.mxu0 0
      %1118 = vmatpush1.bf16.xpose.msra.mxu0 0
      %1119 = vmatprep.subr.bf16.mxu0 0
      %1120 = vmatpush1.bf16.xpose.msra.mxu0 0
      %1121 = vmatprep.subr.bf16.mxu0 0
      %1122 = vmatpush1.bf16.xpose.msra.mxu0 0
      %1123 = vmatprep.subr.bf16.mxu0 0
      %1124 = vmatpush1.bf16.xpose.msra.mxu0 0
      %1125 = vmatprep.subr.bf16.mxu0 0
      %1126 = vmatpush1.bf16.xpose.msra.mxu0 0
      %1127 = vmatprep.subr.bf16.mxu0 0
      %1128 = vmatpush1.bf16.xpose.msra.mxu0 0
      %1129 = vmatprep.subr.bf16.mxu0 0
      %1130 = vmatpush1.bf16.xpose.msra.mxu0 0
      %1131 = vmatprep.subr.bf16.mxu0 0
      %1132 = vmatpush1.bf16.xpose.msra.mxu0 0
      %1133 = vmatprep.subr.bf16.mxu0 0
      %1134 = vmatpush1.bf16.xpose.msra.mxu0 0
      %1135 = vmatprep.subr.bf16.mxu0 0
      %1136 = vmatpush1.bf16.xpose.msra.mxu0 0
      %1137 = vmatprep.subr.bf16.mxu0 0
      %1138 = vmatpush1.bf16.xpose.msra.mxu0 0
      %1139 = vmatprep.subr.bf16.mxu0 0
      %1140 = vmatpush1.bf16.xpose.msra.mxu0 0
      %1141 = vmatprep.subr.bf16.mxu0 0
      %1142 = vmatpush1.bf16.xpose.msra.mxu0 0
      %1143 = vmatprep.mubr.bf16.mxu0 0
      %1144 = vmatmul.mubr.bf16.gmra.mrb[0].mxu0 %v1108
      %v1145 = vpop.f32.mrb[0].mxu0
      %v1146 = vadd.f32 %v226, %v1145
      %v1147 = vpop.f32.mrb[0].mxu0
      %v1148 = vpop.f32.mrb[0].mxu0
      %v1149 = vpop.f32.mrb[0].mxu0
      %1150 = vdwg.mxu0
      %v1151 = vmul.f32 %v1146, 1.442695
      %v1152 = vpow.pop %v1151
      %vm1153 = vcmask 64512
      %v1154 = vsel %vm1153, %v1152, 0.0
      %1155 = vadd.xlane.f32.xlu0 %v1154
      %v1156 = vpop.xlane.xlu0 %1155
      %v1157 = vrcp.pop %v1156
      %v1158 = vmul.f32 %v1152, %v1157
      %v1159 = vpack.c.bf16 %v1158, %v1158
      %v1160 = vlaneseq
      %v1161 = vshrl.u32 %v1160, 7
      %v1162 = vsub.s32 1, %v1161
      %v1163 = vrot.slane %v225, %v1162
      %v1164 = vmul.f32 %v1101, %v1163
      %v1165 = vpack.c.bf16 %v1164, %v1164
      %v1166 = vmul.f32 %v1096, %v1163
      %v1167 = vpack.c.bf16 %v1166, %v1166
      %1168 = vmatprep.subr.bf16.mxu0 0
      %1169 = vmatpush1.bf16.xpose.msra.mxu0 %v1102
      %1170 = vmatprep.subr.bf16.mxu0 0
      %1171 = vmatpush1.bf16.xpose.msra.mxu0 0
      %1172 = vmatprep.subr.bf16.mxu0 0
      %1173 = vmatpush1.bf16.xpose.msra.mxu0 0
      %1174 = vmatprep.subr.bf16.mxu0 0
      %1175 = vmatpush1.bf16.xpose.msra.mxu0 0
      %1176 = vmatprep.subr.bf16.mxu0 0
      %1177 = vmatpush1.bf16.xpose.msra.mxu0 0
      %1178 = vmatprep.subr.bf16.mxu0 0
      %1179 = vmatpush1.bf16.xpose.msra.mxu0 0
      %1180 = vmatprep.subr.bf16.mxu0 0
      %1181 = vmatpush1.bf16.xpose.msra.mxu0 0
      %1182 = vmatprep.subr.bf16.mxu0 0
      %1183 = vmatpush1.bf16.xpose.msra.mxu0 0
      %1184 = vmatprep.subr.bf16.mxu0 0
      %1185 = vmatpush1.bf16.xpose.msra.mxu0 0
      %1186 = vmatprep.subr.bf16.mxu0 0
      %1187 = vmatpush1.bf16.xpose.msra.mxu0 0
      %1188 = vmatprep.subr.bf16.mxu0 0
      %1189 = vmatpush1.bf16.xpose.msra.mxu0 0
      %1190 = vmatprep.subr.bf16.mxu0 0
      %1191 = vmatpush1.bf16.xpose.msra.mxu0 0
      %1192 = vmatprep.subr.bf16.mxu0 0
      %1193 = vmatpush1.bf16.xpose.msra.mxu0 0
      %1194 = vmatprep.subr.bf16.mxu0 0
      %1195 = vmatpush1.bf16.xpose.msra.mxu0 0
      %1196 = vmatprep.subr.bf16.mxu0 0
      %1197 = vmatpush1.bf16.xpose.msra.mxu0 0
      %1198 = vmatprep.subr.bf16.mxu0 0
      %1199 = vmatpush1.bf16.xpose.msra.mxu0 0
      %1200 = vmatprep.mubr.bf16.mxu0 0
      %1201 = vmatmul.mubr.bf16.gmra.mrb[0].mxu0 %v1165
      %v1202 = vpop.f32.mrb[0].mxu0
      %v1203 = vadd.f32 %v226, %v1202
      %v1204 = vpop.f32.mrb[0].mxu0
      %v1205 = vpop.f32.mrb[0].mxu0
      %v1206 = vpop.f32.mrb[0].mxu0
      %1207 = vdwg.mxu0
      %v1208 = vmul.f32 %v1203, 1.442695
      %v1209 = vpow.pop %v1208
      %v1210 = vsel %vm1153, %v1209, 0.0
      %1211 = vadd.xlane.f32.xlu0 %v1210
      %v1212 = vpop.xlane.xlu0 %1211
      %v1213 = vrcp.pop %v1212
      %v1214 = vmul.f32 %v1209, %v1213
      %v1215 = vpack.c.bf16 %v1214, %v1214
      %v1217 = vsel %vm1153, %v1215, 0
      %vm1219 = vcmask 1043456
      %v1221 = vsel %vm1219, %v1167, 0
      %1223 = vmatprep.subr.bf16.mxu0 0
      %1224 = vmatpush1.bf16.msra.mxu0 %v1221
      %1225 = vmatprep.subr.bf16.mxu0 0
      %1226 = vmatpush1.bf16.msra.mxu0 0
      %1227 = vmatprep.subr.bf16.mxu0 0
      %1228 = vmatpush1.bf16.msra.mxu0 0
      %1229 = vmatprep.subr.bf16.mxu0 0
      %1230 = vmatpush1.bf16.msra.mxu0 0
      %1231 = vmatprep.subr.bf16.mxu0 0
      %1232 = vmatpush1.bf16.msra.mxu0 0
      %1233 = vmatprep.subr.bf16.mxu0 0
      %1234 = vmatpush1.bf16.msra.mxu0 0
      %1235 = vmatprep.subr.bf16.mxu0 0
      %1236 = vmatpush1.bf16.msra.mxu0 0
      %1237 = vmatprep.subr.bf16.mxu0 0
      %1238 = vmatpush1.bf16.msra.mxu0 0
      %1239 = vmatprep.subr.bf16.mxu0 0
      %1240 = vmatpush1.bf16.msra.mxu0 0
      %1241 = vmatprep.subr.bf16.mxu0 0
      %1242 = vmatpush1.bf16.msra.mxu0 0
      %1243 = vmatprep.subr.bf16.mxu0 0
      %1244 = vmatpush1.bf16.msra.mxu0 0
      %1245 = vmatprep.subr.bf16.mxu0 0
      %1246 = vmatpush1.bf16.msra.mxu0 0
      %1247 = vmatprep.subr.bf16.mxu0 0
      %1248 = vmatpush1.bf16.msra.mxu0 0
      %1249 = vmatprep.subr.bf16.mxu0 0
      %1250 = vmatpush1.bf16.msra.mxu0 0
      %1251 = vmatprep.subr.bf16.mxu0 0
      %1252 = vmatpush1.bf16.msra.mxu0 0
      %1253 = vmatprep.subr.bf16.mxu0 0
      %1254 = vmatpush1.bf16.msra.mxu0 0
      %1255 = vmatprep.mubr.bf16.mxu0 0
      %1256 = vmatmul.mubr.bf16.gmra.mrb[0].mxu0 %v1217
      %v1257 = vpop.f32.mrb[0].mxu0
      %v1258 = vadd.f32 0.0, %v1257
      %v1259 = vpop.f32.mrb[0].mxu0
      %v1260 = vpop.f32.mrb[0].mxu0
      %v1261 = vpop.f32.mrb[0].mxu0
      %1262 = vdwg.mxu0
      %v1264 = vsel %vm1153, %v1159, 0
      %v1267 = vsel %vm1219, %v1110, 0
      %1269 = vmatprep.subr.bf16.mxu0 0
      %1270 = vmatpush1.bf16.msra.mxu0 %v1267
      %1271 = vmatprep.subr.bf16.mxu0 0
      %1272 = vmatpush1.bf16.msra.mxu0 0
      %1273 = vmatprep.subr.bf16.mxu0 0
      %1274 = vmatpush1.bf16.msra.mxu0 0
      %1275 = vmatprep.subr.bf16.mxu0 0
      %1276 = vmatpush1.bf16.msra.mxu0 0
      %1277 = vmatprep.subr.bf16.mxu0 0
      %1278 = vmatpush1.bf16.msra.mxu0 0
      %1279 = vmatprep.subr.bf16.mxu0 0
      %1280 = vmatpush1.bf16.msra.mxu0 0
      %1281 = vmatprep.subr.bf16.mxu0 0
      %1282 = vmatpush1.bf16.msra.mxu0 0
      %1283 = vmatprep.subr.bf16.mxu0 0
      %1284 = vmatpush1.bf16.msra.mxu0 0
      %1285 = vmatprep.subr.bf16.mxu0 0
      %1286 = vmatpush1.bf16.msra.mxu0 0
      %1287 = vmatprep.subr.bf16.mxu0 0
      %1288 = vmatpush1.bf16.msra.mxu0 0
      %1289 = vmatprep.subr.bf16.mxu0 0
      %1290 = vmatpush1.bf16.msra.mxu0 0
      %1291 = vmatprep.subr.bf16.mxu0 0
      %1292 = vmatpush1.bf16.msra.mxu0 0
      %1293 = vmatprep.subr.bf16.mxu0 0
      %1294 = vmatpush1.bf16.msra.mxu0 0
      %1295 = vmatprep.subr.bf16.mxu0 0
      %1296 = vmatpush1.bf16.msra.mxu0 0
      %1297 = vmatprep.subr.bf16.mxu0 0
      %1298 = vmatpush1.bf16.msra.mxu0 0
      %1299 = vmatprep.subr.bf16.mxu0 0
      %1300 = vmatpush1.bf16.msra.mxu0 0
      %1301 = vmatprep.mubr.bf16.mxu0 0
      %1302 = vmatmul.mubr.bf16.gmra.mrb[0].mxu0 %v1264
      %v1303 = vpop.f32.mrb[0].mxu0
      %v1304 = vadd.f32 %v1258, %v1303
      %v1305 = vpop.f32.mrb[0].mxu0
      %v1306 = vpop.f32.mrb[0].mxu0
      %v1307 = vpop.f32.mrb[0].mxu0
      %1308 = vdwg.mxu0
      %v1309 = vlaneseq
      %v1310 = vshrl.u32 %v1309, 7
      %v1311 = vsub.s32 2, %v1310
      %v1312 = vrot.slane %v225, %v1311
      %v1313 = vmul.f32 %v1101, %v1312
      %v1314 = vpack.c.bf16 %v1313, %v1313
      %v1315 = vmul.f32 %v1096, %v1312
      %v1316 = vpack.c.bf16 %v1315, %v1315
      %1317 = vmatprep.subr.bf16.mxu0 0
      %1318 = vmatpush1.bf16.xpose.msra.mxu0 %v1102
      %1319 = vmatprep.subr.bf16.mxu0 0
      %1320 = vmatpush1.bf16.xpose.msra.mxu0 0
      %1321 = vmatprep.subr.bf16.mxu0 0
      %1322 = vmatpush1.bf16.xpose.msra.mxu0 0
      %1323 = vmatprep.subr.bf16.mxu0 0
      %1324 = vmatpush1.bf16.xpose.msra.mxu0 0
      %1325 = vmatprep.subr.bf16.mxu0 0
      %1326 = vmatpush1.bf16.xpose.msra.mxu0 0
      %1327 = vmatprep.subr.bf16.mxu0 0
      %1328 = vmatpush1.bf16.xpose.msra.mxu0 0
      %1329 = vmatprep.subr.bf16.mxu0 0
      %1330 = vmatpush1.bf16.xpose.msra.mxu0 0
      %1331 = vmatprep.subr.bf16.mxu0 0
      %1332 = vmatpush1.bf16.xpose.msra.mxu0 0
      %1333 = vmatprep.subr.bf16.mxu0 0
      %1334 = vmatpush1.bf16.xpose.msra.mxu0 0
      %1335 = vmatprep.subr.bf16.mxu0 0
      %1336 = vmatpush1.bf16.xpose.msra.mxu0 0
      %1337 = vmatprep.subr.bf16.mxu0 0
      %1338 = vmatpush1.bf16.xpose.msra.mxu0 0
      %1339 = vmatprep.subr.bf16.mxu0 0
      %1340 = vmatpush1.bf16.xpose.msra.mxu0 0
      %1341 = vmatprep.subr.bf16.mxu0 0
      %1342 = vmatpush1.bf16.xpose.msra.mxu0 0
      %1343 = vmatprep.subr.bf16.mxu0 0
      %1344 = vmatpush1.bf16.xpose.msra.mxu0 0
      %1345 = vmatprep.subr.bf16.mxu0 0
      %1346 = vmatpush1.bf16.xpose.msra.mxu0 0
      %1347 = vmatprep.subr.bf16.mxu0 0
      %1348 = vmatpush1.bf16.xpose.msra.mxu0 0
      %1349 = vmatprep.mubr.bf16.mxu0 0
      %1350 = vmatmul.mubr.bf16.gmra.mrb[0].mxu0 %v1314
      %v1351 = vpop.f32.mrb[0].mxu0
      %v1352 = vadd.f32 %v226, %v1351
      %v1353 = vpop.f32.mrb[0].mxu0
      %v1354 = vpop.f32.mrb[0].mxu0
      %v1355 = vpop.f32.mrb[0].mxu0
      %1356 = vdwg.mxu0
      %v1357 = vmul.f32 %v1352, 1.442695
      %v1358 = vpow.pop %v1357
      %v1359 = vsel %vm1153, %v1358, 0.0
      %1360 = vadd.xlane.f32.xlu0 %v1359
      %v1361 = vpop.xlane.xlu0 %1360
      %v1362 = vrcp.pop %v1361
      %v1363 = vmul.f32 %v1358, %v1362
      %v1364 = vpack.c.bf16 %v1363, %v1363
      %v1366 = vsel %vm1153, %v1364, 0
      %v1369 = vsel %vm1219, %v1316, 0
      %1371 = vmatprep.subr.bf16.mxu0 0
      %1372 = vmatpush1.bf16.msra.mxu0 %v1369
      %1373 = vmatprep.subr.bf16.mxu0 0
      %1374 = vmatpush1.bf16.msra.mxu0 0
      %1375 = vmatprep.subr.bf16.mxu0 0
      %1376 = vmatpush1.bf16.msra.mxu0 0
      %1377 = vmatprep.subr.bf16.mxu0 0
      %1378 = vmatpush1.bf16.msra.mxu0 0
      %1379 = vmatprep.subr.bf16.mxu0 0
      %1380 = vmatpush1.bf16.msra.mxu0 0
      %1381 = vmatprep.subr.bf16.mxu0 0
      %1382 = vmatpush1.bf16.msra.mxu0 0
      %1383 = vmatprep.subr.bf16.mxu0 0
      %1384 = vmatpush1.bf16.msra.mxu0 0
      %1385 = vmatprep.subr.bf16.mxu0 0
      %1386 = vmatpush1.bf16.msra.mxu0 0
      %1387 = vmatprep.subr.bf16.mxu0 0
      %1388 = vmatpush1.bf16.msra.mxu0 0
      %1389 = vmatprep.subr.bf16.mxu0 0
      %1390 = vmatpush1.bf16.msra.mxu0 0
      %1391 = vmatprep.subr.bf16.mxu0 0
      %1392 = vmatpush1.bf16.msra.mxu0 0
      %1393 = vmatprep.subr.bf16.mxu0 0
      %1394 = vmatpush1.bf16.msra.mxu0 0
      %1395 = vmatprep.subr.bf16.mxu0 0
      %1396 = vmatpush1.bf16.msra.mxu0 0
      %1397 = vmatprep.subr.bf16.mxu0 0
      %1398 = vmatpush1.bf16.msra.mxu0 0
      %1399 = vmatprep.subr.bf16.mxu0 0
      %1400 = vmatpush1.bf16.msra.mxu0 0
      %1401 = vmatprep.subr.bf16.mxu0 0
      %1402 = vmatpush1.bf16.msra.mxu0 0
      %1403 = vmatprep.mubr.bf16.mxu0 0
      %1404 = vmatmul.mubr.bf16.gmra.mrb[0].mxu0 %v1366
      %v1405 = vpop.f32.mrb[0].mxu0
      %v1406 = vadd.f32 0.0, %v1405
      %v1407 = vpop.f32.mrb[0].mxu0
      %v1408 = vpop.f32.mrb[0].mxu0
      %v1409 = vpop.f32.mrb[0].mxu0
      %1410 = vdwg.mxu0
      %v1411 = vadd.f32 %v1304, %v1406
      %v1412 = vlaneseq
      %v1413 = vshrl.u32 %v1412, 7
      %v1414 = vsub.s32 3, %v1413
      %v1415 = vrot.slane %v225, %v1414
      %v1416 = vmul.f32 %v1101, %v1415
      %v1417 = vpack.c.bf16 %v1416, %v1416
      %v1418 = vmul.f32 %v1096, %v1415
      %v1419 = vpack.c.bf16 %v1418, %v1418
      %1420 = vmatprep.subr.bf16.mxu0 0
      %1421 = vmatpush1.bf16.xpose.msra.mxu0 %v1102
      %1422 = vmatprep.subr.bf16.mxu0 0
      %1423 = vmatpush1.bf16.xpose.msra.mxu0 0
      %1424 = vmatprep.subr.bf16.mxu0 0
      %1425 = vmatpush1.bf16.xpose.msra.mxu0 0
      %1426 = vmatprep.subr.bf16.mxu0 0
      %1427 = vmatpush1.bf16.xpose.msra.mxu0 0
      %1428 = vmatprep.subr.bf16.mxu0 0
      %1429 = vmatpush1.bf16.xpose.msra.mxu0 0
      %1430 = vmatprep.subr.bf16.mxu0 0
      %1431 = vmatpush1.bf16.xpose.msra.mxu0 0
      %1432 = vmatprep.subr.bf16.mxu0 0
      %1433 = vmatpush1.bf16.xpose.msra.mxu0 0
      %1434 = vmatprep.subr.bf16.mxu0 0
      %1435 = vmatpush1.bf16.xpose.msra.mxu0 0
      %1436 = vmatprep.subr.bf16.mxu0 0
      %1437 = vmatpush1.bf16.xpose.msra.mxu0 0
      %1438 = vmatprep.subr.bf16.mxu0 0
      %1439 = vmatpush1.bf16.xpose.msra.mxu0 0
      %1440 = vmatprep.subr.bf16.mxu0 0
      %1441 = vmatpush1.bf16.xpose.msra.mxu0 0
      %1442 = vmatprep.subr.bf16.mxu0 0
      %1443 = vmatpush1.bf16.xpose.msra.mxu0 0
      %1444 = vmatprep.subr.bf16.mxu0 0
      %1445 = vmatpush1.bf16.xpose.msra.mxu0 0
      %1446 = vmatprep.subr.bf16.mxu0 0
      %1447 = vmatpush1.bf16.xpose.msra.mxu0 0
      %1448 = vmatprep.subr.bf16.mxu0 0
      %1449 = vmatpush1.bf16.xpose.msra.mxu0 0
      %1450 = vmatprep.subr.bf16.mxu0 0
      %1451 = vmatpush1.bf16.xpose.msra.mxu0 0
      %1452 = vmatprep.mubr.bf16.mxu0 0
      %1453 = vmatmul.mubr.bf16.gmra.mrb[0].mxu0 %v1417
      %v1454 = vpop.f32.mrb[0].mxu0
      %v1455 = vadd.f32 %v226, %v1454
      %v1456 = vpop.f32.mrb[0].mxu0
      %v1457 = vpop.f32.mrb[0].mxu0
      %v1458 = vpop.f32.mrb[0].mxu0
      %1459 = vdwg.mxu0
      %v1460 = vmul.f32 %v1455, 1.442695
      %v1461 = vpow.pop %v1460
      %v1462 = vsel %vm1153, %v1461, 0.0
      %1463 = vadd.xlane.f32.xlu0 %v1462
      %v1464 = vpop.xlane.xlu0 %1463
      %v1465 = vrcp.pop %v1464
      %v1466 = vmul.f32 %v1461, %v1465
      %v1467 = vpack.c.bf16 %v1466, %v1466
      %v1469 = vsel %vm1153, %v1467, 0
      %v1472 = vsel %vm1219, %v1419, 0
      %1474 = vmatprep.subr.bf16.mxu0 0
      %1475 = vmatpush1.bf16.msra.mxu0 %v1472
      %1476 = vmatprep.subr.bf16.mxu0 0
      %1477 = vmatpush1.bf16.msra.mxu0 0
      %1478 = vmatprep.subr.bf16.mxu0 0
      %1479 = vmatpush1.bf16.msra.mxu0 0
      %1480 = vmatprep.subr.bf16.mxu0 0
      %1481 = vmatpush1.bf16.msra.mxu0 0
      %1482 = vmatprep.subr.bf16.mxu0 0
      %1483 = vmatpush1.bf16.msra.mxu0 0
      %1484 = vmatprep.subr.bf16.mxu0 0
      %1485 = vmatpush1.bf16.msra.mxu0 0
      %1486 = vmatprep.subr.bf16.mxu0 0
      %1487 = vmatpush1.bf16.msra.mxu0 0
      %1488 = vmatprep.subr.bf16.mxu0 0
      %1489 = vmatpush1.bf16.msra.mxu0 0
      %1490 = vmatprep.subr.bf16.mxu0 0
      %1491 = vmatpush1.bf16.msra.mxu0 0
      %1492 = vmatprep.subr.bf16.mxu0 0
      %1493 = vmatpush1.bf16.msra.mxu0 0
      %1494 = vmatprep.subr.bf16.mxu0 0
      %1495 = vmatpush1.bf16.msra.mxu0 0
      %1496 = vmatprep.subr.bf16.mxu0 0
      %1497 = vmatpush1.bf16.msra.mxu0 0
      %1498 = vmatprep.subr.bf16.mxu0 0
      %1499 = vmatpush1.bf16.msra.mxu0 0
      %1500 = vmatprep.subr.bf16.mxu0 0
      %1501 = vmatpush1.bf16.msra.mxu0 0
      %1502 = vmatprep.subr.bf16.mxu0 0
      %1503 = vmatpush1.bf16.msra.mxu0 0
      %1504 = vmatprep.subr.bf16.mxu0 0
      %1505 = vmatpush1.bf16.msra.mxu0 0
      %1506 = vmatprep.mubr.bf16.mxu0 0
      %1507 = vmatmul.mubr.bf16.gmra.mrb[0].mxu0 %v1469
      %v1508 = vpop.f32.mrb[0].mxu0
      %v1509 = vadd.f32 0.0, %v1508
      %v1510 = vpop.f32.mrb[0].mxu0
      %v1511 = vpop.f32.mrb[0].mxu0
      %v1512 = vpop.f32.mrb[0].mxu0
      %1513 = vdwg.mxu0
      %v1514 = vadd.f32 %v1411, %v1509
      %v1515 = vpack.c.bf16 %v1514, %v1514
      %v1532 = vunpack.c.l.b16 %v797
      %v1533 = vunpack.c.l.b16 %v798
      %v1534 = vunpack.c.l.b16 %v799
      %v1535 = vunpack.c.l.b16 %v800
      %v1536 = vunpack.c.l.b16 %v801
      %v1537 = vunpack.c.l.b16 %v802
      %v1538 = vunpack.c.l.b16 %v803
      %v1539 = vunpack.c.l.b16 %v804
      %v1540 = vunpack.c.l.b16 %v805
      %v1541 = vunpack.c.l.b16 %v806
      %v1542 = vunpack.c.l.b16 %v807
      %v1543 = vunpack.c.l.b16 %v808
      %v1544 = vunpack.c.l.b16 %v809
      %v1545 = vunpack.c.l.b16 %v810
      %v1546 = vunpack.c.l.b16 %v811
      %v1547 = vunpack.c.l.b16 %v812
      %v1548 = vpack.c.b16 %v1533, %v1532
      %v1549 = vpack.c.b16 %v1535, %v1534
      %v1550 = vpack.c.b16 %v1537, %v1536
      %v1551 = vpack.c.b16 %v1539, %v1538
      %v1552 = vpack.c.b16 %v1541, %v1540
      %v1553 = vpack.c.b16 %v1543, %v1542
      %v1554 = vpack.c.b16 %v1545, %v1544
      %v1555 = vpack.c.b16 %v1547, %v1546
      %1564 = vmatprep.subr.bf16.mxu0 0
      %1565 = vmatpush1.bf16.msra.mxu0 %v1548
      %1566 = vmatprep.subr.bf16.mxu0 0
      %1567 = vmatpush1.bf16.msra.mxu0 %v1549
      %1568 = vmatprep.subr.bf16.mxu0 0
      %1569 = vmatpush1.bf16.msra.mxu0 %v1550
      %1570 = vmatprep.subr.bf16.mxu0 0
      %1571 = vmatpush1.bf16.msra.mxu0 %v1551
      %1572 = vmatprep.subr.bf16.mxu0 0
      %1573 = vmatpush1.bf16.msra.mxu0 %v1552
      %1574 = vmatprep.subr.bf16.mxu0 0
      %1575 = vmatpush1.bf16.msra.mxu0 %v1553
      %1576 = vmatprep.subr.bf16.mxu0 0
      %1577 = vmatpush1.bf16.msra.mxu0 %v1554
      %1578 = vmatprep.subr.bf16.mxu0 0
      %1579 = vmatpush1.bf16.msra.mxu0 %v1555
      %1580 = vmatprep.subr.bf16.mxu0 0
      %1581 = vmatpush1.bf16.msra.mxu0 0
      %1582 = vmatprep.subr.bf16.mxu0 0
      %1583 = vmatpush1.bf16.msra.mxu0 0
      %1584 = vmatprep.subr.bf16.mxu0 0
      %1585 = vmatpush1.bf16.msra.mxu0 0
      %1586 = vmatprep.subr.bf16.mxu0 0
      %1587 = vmatpush1.bf16.msra.mxu0 0
      %1588 = vmatprep.subr.bf16.mxu0 0
      %1589 = vmatpush1.bf16.msra.mxu0 0
      %1590 = vmatprep.subr.bf16.mxu0 0
      %1591 = vmatpush1.bf16.msra.mxu0 0
      %1592 = vmatprep.subr.bf16.mxu0 0
      %1593 = vmatpush1.bf16.msra.mxu0 0
      %1594 = vmatprep.subr.bf16.mxu0 0
      %1595 = vmatpush1.bf16.msra.mxu0 0
      %1596 = vmatprep.mubr.bf16.mxu0 0
      %1597 = vmatmul.mubr.bf16.gmra.mrb[0].mxu0 %v1515
      %v1598 = vpop.f32.mrb[0].mxu0
      %v1599 = vadd.f32 0.0, %v1598
      %v1600 = vpop.f32.mrb[0].mxu0
      %v1601 = vpop.f32.mrb[0].mxu0
      %v1602 = vpop.f32.mrb[0].mxu0
      %1603 = vdwg.mxu0
      %v1604 = vadd.f32 %v750, %v1599
      %v1605 = vadd.f32 %v1604, %v759
      %1606 = vadd.xlane.f32.xlu0 %v1605
      %v1607 = vpop.xlane.xlu0 %1606
      %v1608 = vmul.f32 %v1607, %v863
      %v1609 = vsub.f32 %v1605, %v1608
      %v1610 = vmul.f32 %v1609, %v1609
      %1611 = vadd.xlane.f32.xlu0 %v1610
      %v1612 = vpop.xlane.xlu0 %1611
      %v1613 = vmul.f32 %v1612, %v863
      %v1614 = vadd.f32 %v1613, 1e-06
      %v1615 = vrsqrt.pop %v1614
      %v1616 = vmul.f32 %v1609, %v1615
      %v1617 = vmul.f32 %v1616, %v760
      %v1618 = vadd.f32 %v1617, %v761
      %v1619 = vpack.c.bf16 %v1618, %v1618
      %v1621 = vlaneseq
      %v1622 = vshrl.u32 %v1621, 7
      %v1623 = vsub.s32 0, %v1622
      %v1624 = vrot.slane %v763, %v1623
      %v1625 = vlaneseq
      %v1626 = vshrl.u32 %v1625, 7
      %v1627 = vsub.s32 1, %v1626
      %v1628 = vrot.slane %v763, %v1627
      %v1647 = vunpack.c.l.b16 %v813
      %v1648 = vunpack.c.h.b16 %v813
      %v1649 = vunpack.c.l.b16 %v814
      %v1650 = vunpack.c.h.b16 %v814
      %v1651 = vunpack.c.l.b16 %v815
      %v1652 = vunpack.c.h.b16 %v815
      %v1653 = vunpack.c.l.b16 %v816
      %v1654 = vunpack.c.h.b16 %v816
      %v1655 = vunpack.c.l.b16 %v817
      %v1656 = vunpack.c.h.b16 %v817
      %v1657 = vunpack.c.l.b16 %v818
      %v1658 = vunpack.c.h.b16 %v818
      %v1659 = vunpack.c.l.b16 %v819
      %v1660 = vunpack.c.h.b16 %v819
      %v1661 = vunpack.c.l.b16 %v820
      %v1662 = vunpack.c.h.b16 %v820
      %v1663 = vunpack.c.l.b16 %v821
      %v1664 = vunpack.c.h.b16 %v821
      %v1665 = vunpack.c.l.b16 %v822
      %v1666 = vunpack.c.h.b16 %v822
      %v1667 = vunpack.c.l.b16 %v823
      %v1668 = vunpack.c.h.b16 %v823
      %v1669 = vunpack.c.l.b16 %v824
      %v1670 = vunpack.c.h.b16 %v824
      %v1671 = vunpack.c.l.b16 %v825
      %v1672 = vunpack.c.h.b16 %v825
      %v1673 = vunpack.c.l.b16 %v826
      %v1674 = vunpack.c.h.b16 %v826
      %v1675 = vunpack.c.l.b16 %v827
      %v1676 = vunpack.c.h.b16 %v827
      %v1677 = vunpack.c.l.b16 %v828
      %v1678 = vunpack.c.h.b16 %v828
      %v1679 = vpack.c.b16 %v1649, %v1647
      %v1680 = vpack.c.b16 %v1650, %v1648
      %v1681 = vpack.c.b16 %v1653, %v1651
      %v1682 = vpack.c.b16 %v1654, %v1652
      %v1683 = vpack.c.b16 %v1657, %v1655
      %v1684 = vpack.c.b16 %v1658, %v1656
      %v1685 = vpack.c.b16 %v1661, %v1659
      %v1686 = vpack.c.b16 %v1662, %v1660
      %v1687 = vpack.c.b16 %v1665, %v1663
      %v1688 = vpack.c.b16 %v1666, %v1664
      %v1689 = vpack.c.b16 %v1669, %v1667
      %v1690 = vpack.c.b16 %v1670, %v1668
      %v1691 = vpack.c.b16 %v1673, %v1671
      %v1692 = vpack.c.b16 %v1674, %v1672
      %v1693 = vpack.c.b16 %v1677, %v1675
      %v1694 = vpack.c.b16 %v1678, %v1676
      %1711 = vmatprep.subr.bf16.mxu0 %v1680
      %1712 = vmatpush1.bf16.msra.mxu0 %v1679
      %1713 = vmatprep.subr.bf16.mxu0 %v1682
      %1714 = vmatpush1.bf16.msra.mxu0 %v1681
      %1715 = vmatprep.subr.bf16.mxu0 %v1684
      %1716 = vmatpush1.bf16.msra.mxu0 %v1683
      %1717 = vmatprep.subr.bf16.mxu0 %v1686
      %1718 = vmatpush1.bf16.msra.mxu0 %v1685
      %1719 = vmatprep.subr.bf16.mxu0 %v1688
      %1720 = vmatpush1.bf16.msra.mxu0 %v1687
      %1721 = vmatprep.subr.bf16.mxu0 %v1690
      %1722 = vmatpush1.bf16.msra.mxu0 %v1689
      %1723 = vmatprep.subr.bf16.mxu0 %v1692
      %1724 = vmatpush1.bf16.msra.mxu0 %v1691
      %1725 = vmatprep.subr.bf16.mxu0 %v1694
      %1726 = vmatpush1.bf16.msra.mxu0 %v1693
      %1727 = vmatprep.subr.bf16.mxu0 0
      %1728 = vmatpush1.bf16.msra.mxu0 0
      %1729 = vmatprep.subr.bf16.mxu0 0
      %1730 = vmatpush1.bf16.msra.mxu0 0
      %1731 = vmatprep.subr.bf16.mxu0 0
      %1732 = vmatpush1.bf16.msra.mxu0 0
      %1733 = vmatprep.subr.bf16.mxu0 0
      %1734 = vmatpush1.bf16.msra.mxu0 0
      %1735 = vmatprep.subr.bf16.mxu0 0
      %1736 = vmatpush1.bf16.msra.mxu0 0
      %1737 = vmatprep.subr.bf16.mxu0 0
      %1738 = vmatpush1.bf16.msra.mxu0 0
      %1739 = vmatprep.subr.bf16.mxu0 0
      %1740 = vmatpush1.bf16.msra.mxu0 0
      %1741 = vmatprep.subr.bf16.mxu0 0
      %1742 = vmatpush1.bf16.msra.mxu0 0
      %1743 = vmatprep.mubr.bf16.mxu0 0
      %1744 = vmatmul.mubr.bf16.gmra.mrb[0].mxu0 %v1619
      %v1745 = vpop.f32.mrb[0].mxu0
      %v1746 = vadd.f32 %v1624, %v1745
      %v1747 = vpop.f32.mrb[0].mxu0
      %v1748 = vadd.f32 %v1628, %v1747
      %v1749 = vpop.f32.mrb[0].mxu0
      %v1750 = vpop.f32.mrb[0].mxu0
      %1751 = vdwg.mxu0
      %v1752 = vmul.f32 %v1746, %v1746
      %v1753 = vmul.f32 %v1748, %v1748
      %v1754 = vmul.f32 %v1746, %v1752
      %v1755 = vmul.f32 %v1748, %v1753
      %v1756 = vmul.f32 %v1754, 0.044715
      %v1757 = vmul.f32 %v1755, 0.044715
      %v1758 = vadd.f32 %v1746, %v1756
      %v1759 = vadd.f32 %v1748, %v1757
      %v1760 = vmul.f32 %v1758, 0.7978846
      %v1761 = vmul.f32 %v1759, 0.7978846
      %v1762 = vtanh.pop %v1760
      %v1763 = vtanh.pop %v1761
      %v1764 = vadd.f32 %v1762, 1.0
      %v1765 = vadd.f32 %v1763, 1.0
      %v1766 = vmul.f32 %v1764, 0.5
      %v1767 = vmul.f32 %v1765, 0.5
      %v1768 = vmul.f32 %v1746, %v1766
      %v1769 = vmul.f32 %v1748, %v1767
      %v1770 = vpack.c.bf16 %v1768, %v1768
      %v1771 = vpack.c.bf16 %v1769, %v1769
      %v1804 = vunpack.c.l.b16 %v829
      %v1805 = vunpack.c.l.b16 %v830
      %v1806 = vunpack.c.l.b16 %v831
      %v1807 = vunpack.c.l.b16 %v832
      %v1808 = vunpack.c.l.b16 %v833
      %v1809 = vunpack.c.l.b16 %v834
      %v1810 = vunpack.c.l.b16 %v835
      %v1811 = vunpack.c.l.b16 %v836
      %v1812 = vunpack.c.l.b16 %v837
      %v1813 = vunpack.c.l.b16 %v838
      %v1814 = vunpack.c.l.b16 %v839
      %v1815 = vunpack.c.l.b16 %v840
      %v1816 = vunpack.c.l.b16 %v841
      %v1817 = vunpack.c.l.b16 %v842
      %v1818 = vunpack.c.l.b16 %v843
      %v1819 = vunpack.c.l.b16 %v844
      %v1820 = vunpack.c.l.b16 %v845
      %v1821 = vunpack.c.l.b16 %v846
      %v1822 = vunpack.c.l.b16 %v847
      %v1823 = vunpack.c.l.b16 %v848
      %v1824 = vunpack.c.l.b16 %v849
      %v1825 = vunpack.c.l.b16 %v850
      %v1826 = vunpack.c.l.b16 %v851
      %v1827 = vunpack.c.l.b16 %v852
      %v1828 = vunpack.c.l.b16 %v853
      %v1829 = vunpack.c.l.b16 %v854
      %v1830 = vunpack.c.l.b16 %v855
      %v1831 = vunpack.c.l.b16 %v856
      %v1832 = vunpack.c.l.b16 %v857
      %v1833 = vunpack.c.l.b16 %v858
      %v1834 = vunpack.c.l.b16 %v859
      %v1835 = vunpack.c.l.b16 %v860
      %v1836 = vpack.c.b16 %v1805, %v1804
      %v1837 = vpack.c.b16 %v1807, %v1806
      %v1838 = vpack.c.b16 %v1809, %v1808
      %v1839 = vpack.c.b16 %v1811, %v1810
      %v1840 = vpack.c.b16 %v1813, %v1812
      %v1841 = vpack.c.b16 %v1815, %v1814
      %v1842 = vpack.c.b16 %v1817, %v1816
      %v1843 = vpack.c.b16 %v1819, %v1818
      %v1844 = vpack.c.b16 %v1821, %v1820
      %v1845 = vpack.c.b16 %v1823, %v1822
      %v1846 = vpack.c.b16 %v1825, %v1824
      %v1847 = vpack.c.b16 %v1827, %v1826
      %v1848 = vpack.c.b16 %v1829, %v1828
      %v1849 = vpack.c.b16 %v1831, %v1830
      %v1850 = vpack.c.b16 %v1833, %v1832
      %v1851 = vpack.c.b16 %v1835, %v1834
      %1868 = vmatprep.subr.bf16.mxu0 0
      %1869 = vmatpush1.bf16.msra.mxu0 %v1836
      %1870 = vmatprep.subr.bf16.mxu0 0
      %1871 = vmatpush1.bf16.msra.mxu0 %v1837
      %1872 = vmatprep.subr.bf16.mxu0 0
      %1873 = vmatpush1.bf16.msra.mxu0 %v1838
      %1874 = vmatprep.subr.bf16.mxu0 0
      %1875 = vmatpush1.bf16.msra.mxu0 %v1839
      %1876 = vmatprep.subr.bf16.mxu0 0
      %1877 = vmatpush1.bf16.msra.mxu0 %v1840
      %1878 = vmatprep.subr.bf16.mxu0 0
      %1879 = vmatpush1.bf16.msra.mxu0 %v1841
      %1880 = vmatprep.subr.bf16.mxu0 0
      %1881 = vmatpush1.bf16.msra.mxu0 %v1842
      %1882 = vmatprep.subr.bf16.mxu0 0
      %1883 = vmatpush1.bf16.msra.mxu0 %v1843
      %1884 = vmatprep.subr.bf16.mxu0 0
      %1885 = vmatpush1.bf16.msra.mxu0 %v1844
      %1886 = vmatprep.subr.bf16.mxu0 0
      %1887 = vmatpush1.bf16.msra.mxu0 %v1845
      %1888 = vmatprep.subr.bf16.mxu0 0
      %1889 = vmatpush1.bf16.msra.mxu0 %v1846
      %1890 = vmatprep.subr.bf16.mxu0 0
      %1891 = vmatpush1.bf16.msra.mxu0 %v1847
      %1892 = vmatprep.subr.bf16.mxu0 0
      %1893 = vmatpush1.bf16.msra.mxu0 %v1848
      %1894 = vmatprep.subr.bf16.mxu0 0
      %1895 = vmatpush1.bf16.msra.mxu0 %v1849
      %1896 = vmatprep.subr.bf16.mxu0 0
      %1897 = vmatpush1.bf16.msra.mxu0 %v1850
      %1898 = vmatprep.subr.bf16.mxu0 0
      %1899 = vmatpush1.bf16.msra.mxu0 %v1851
      %1900 = vmatprep.mubr.bf16.mxu0 %v1771
      %1901 = vmatmul.mubr.bf16.gmra.mrb[0].mxu0 %v1770
      %v1902 = vpop.f32.mrb[0].mxu0
      %v1903 = vadd.f32 0.0, %v1902
      %v1904 = vpop.f32.mrb[0].mxu0
      %v1905 = vpop.f32.mrb[0].mxu0
      %v1906 = vpop.f32.mrb[0].mxu0
      %1907 = vdwg.mxu0
      %v1908 = vadd.f32 %v1605, %v1903
      %v1909 = vadd.f32 %v1908, %v764
      %v1910 = vld [vmem:[%s1 + $0x48] ss:$0 sm:$0xff]
      %v1911 = vld [vmem:[%s1 + $0x49] ss:$0 sm:$0xff]
      %s1912 = scalar_lea.vmem %s1, 74
      %v1913 = vld [vmem:[%s1912] ss:$8 sm:$0x7]
      %v1914 = vld [vmem:[%s1 + $0x4b] ss:$0 sm:$0xff]
      %v1915 = vld [vmem:[%s1 + $0x4c] ss:$0 sm:$0xff]
      %v1916 = vld [vmem:[%s1 + $0x4d] ss:$0 sm:$0xff]
      %s1917 = scalar_lea.vmem %s1, 78
      %v1918 = vld [vmem:[%s1917] ss:$8 sm:$0x3]
      %v1919 = vld [vmem:[%s1 + $0x4f] ss:$0 sm:$0xff]
      %s1920 = scalar_lea.vmem %s2, 384
      %v1921 = vld [vmem:[%s1920] sm:$0xff]
      %v1922 = vld [vmem:[%s1920 + $0x8] sm:$0xf]
      %v1923 = vld [vmem:[%s1920 + $0x18] sm:$0xff]
      %v1924 = vld [vmem:[%s1920 + $0x20] sm:$0xf]
      %v1925 = vld [vmem:[%s1920 + $0x30] sm:$0xff]
      %v1926 = vld [vmem:[%s1920 + $0x38] sm:$0xf]
      %v1927 = vld [vmem:[%s1920 + $0x48] sm:$0xff]
      %v1928 = vld [vmem:[%s1920 + $0x50] sm:$0xf]
      %v1929 = vld [vmem:[%s1920 + $0x60] sm:$0xff]
      %v1930 = vld [vmem:[%s1920 + $0x68] sm:$0xf]
      %v1931 = vld [vmem:[%s1920 + $0x78] sm:$0xff]
      %v1932 = vld [vmem:[%s1920 + $0x80] sm:$0xf]
      %v1933 = vld [vmem:[%s1920 + $0x90] sm:$0xff]
      %v1934 = vld [vmem:[%s1920 + $0x98] sm:$0xf]
      %v1935 = vld [vmem:[%s1920 + $0xa8] sm:$0xff]
      %v1936 = vld [vmem:[%s1920 + $0xb0] sm:$0xf]
      %v1937 = vld [vmem:[%s1920 + $0xc0] sm:$0xff]
      %v1938 = vld [vmem:[%s1920 + $0xc8] sm:$0xf]
      %v1939 = vld [vmem:[%s1920 + $0xd8] sm:$0xff]
      %v1940 = vld [vmem:[%s1920 + $0xe0] sm:$0xf]
      %v1941 = vld [vmem:[%s1920 + $0xf0] sm:$0xff]
      %v1942 = vld [vmem:[%s1920 + $0xf8] sm:$0xf]
      %v1943 = vld [vmem:[%s1920 + $0x108] sm:$0xff]
      %v1944 = vld [vmem:[%s1920 + $0x110] sm:$0xf]
      %v1945 = vld [vmem:[%s1920 + $0x120] sm:$0xff]
      %v1946 = vld [vmem:[%s1920 + $0x128] sm:$0xf]
      %v1947 = vld [vmem:[%s1920 + $0x138] sm:$0xff]
      %v1948 = vld [vmem:[%s1920 + $0x140] sm:$0xf]
      %v1949 = vld [vmem:[%s1920 + $0x150] sm:$0xff]
      %v1950 = vld [vmem:[%s1920 + $0x158] sm:$0xf]
      %v1951 = vld [vmem:[%s1920 + $0x168] sm:$0xff]
      %v1952 = vld [vmem:[%s1920 + $0x170] sm:$0xf]
      %v1953 = vld [vmem:[%s1920 + $0xc] sm:$0xf]
      %v1954 = vld [vmem:[%s1920 + $0x24] sm:$0xf]
      %v1955 = vld [vmem:[%s1920 + $0x3c] sm:$0xf]
      %v1956 = vld [vmem:[%s1920 + $0x54] sm:$0xf]
      %v1957 = vld [vmem:[%s1920 + $0x6c] sm:$0xf]
      %v1958 = vld [vmem:[%s1920 + $0x84] sm:$0xf]
      %v1959 = vld [vmem:[%s1920 + $0x9c] sm:$0xf]
      %v1960 = vld [vmem:[%s1920 + $0xb4] sm:$0xf]
      %v1961 = vld [vmem:[%s1920 + $0xcc] sm:$0xf]
      %v1962 = vld [vmem:[%s1920 + $0xe4] sm:$0xf]
      %v1963 = vld [vmem:[%s1920 + $0xfc] sm:$0xf]
      %v1964 = vld [vmem:[%s1920 + $0x114] sm:$0xf]
      %v1965 = vld [vmem:[%s1920 + $0x12c] sm:$0xf]
      %v1966 = vld [vmem:[%s1920 + $0x144] sm:$0xf]
      %v1967 = vld [vmem:[%s1920 + $0x15c] sm:$0xf]
      %v1968 = vld [vmem:[%s1920 + $0x174] sm:$0xf]
      %v1969 = vld [vmem:[%s1920 + $0x10] sm:$0xff]
      %v1970 = vld [vmem:[%s1920 + $0x28] sm:$0xff]
      %v1971 = vld [vmem:[%s1920 + $0x40] sm:$0xff]
      %v1972 = vld [vmem:[%s1920 + $0x58] sm:$0xff]
      %v1973 = vld [vmem:[%s1920 + $0x70] sm:$0xff]
      %v1974 = vld [vmem:[%s1920 + $0x88] sm:$0xff]
      %v1975 = vld [vmem:[%s1920 + $0xa0] sm:$0xff]
      %v1976 = vld [vmem:[%s1920 + $0xb8] sm:$0xff]
      %v1977 = vld [vmem:[%s1920 + $0xd0] sm:$0xff]
      %v1978 = vld [vmem:[%s1920 + $0xe8] sm:$0xff]
      %v1979 = vld [vmem:[%s1920 + $0x100] sm:$0xff]
      %v1980 = vld [vmem:[%s1920 + $0x118] sm:$0xff]
      %v1981 = vld [vmem:[%s1920 + $0x130] sm:$0xff]
      %v1982 = vld [vmem:[%s1920 + $0x148] sm:$0xff]
      %v1983 = vld [vmem:[%s1920 + $0x160] sm:$0xff]
      %v1984 = vld [vmem:[%s1920 + $0x178] sm:$0xff]
      %s1985 = scalar_lea.vmem %s3, 128
      %v1986 = vld [vmem:[%s1985] sm:$0xf]
      %v1987 = vld [vmem:[%s1985 + $0x4] sm:$0xf]
      %v1988 = vld [vmem:[%s1985 + $0x8] sm:$0xf]
      %v1989 = vld [vmem:[%s1985 + $0xc] sm:$0xf]
      %v1990 = vld [vmem:[%s1985 + $0x10] sm:$0xf]
      %v1991 = vld [vmem:[%s1985 + $0x14] sm:$0xf]
      %v1992 = vld [vmem:[%s1985 + $0x18] sm:$0xf]
      %v1993 = vld [vmem:[%s1985 + $0x1c] sm:$0xf]
      %v1994 = vld [vmem:[%s1985 + $0x20] sm:$0xf]
      %v1995 = vld [vmem:[%s1985 + $0x24] sm:$0xf]
      %v1996 = vld [vmem:[%s1985 + $0x28] sm:$0xf]
      %v1997 = vld [vmem:[%s1985 + $0x2c] sm:$0xf]
      %v1998 = vld [vmem:[%s1985 + $0x30] sm:$0xf]
      %v1999 = vld [vmem:[%s1985 + $0x34] sm:$0xf]
      %v2000 = vld [vmem:[%s1985 + $0x38] sm:$0xf]
      %v2001 = vld [vmem:[%s1985 + $0x3c] sm:$0xf]
      %v2002 = vld [vmem:[%s1985 + $0x40] sm:$0xf]
      %v2003 = vld [vmem:[%s1985 + $0x44] sm:$0xf]
      %v2004 = vld [vmem:[%s1985 + $0x48] sm:$0xf]
      %v2005 = vld [vmem:[%s1985 + $0x4c] sm:$0xf]
      %v2006 = vld [vmem:[%s1985 + $0x50] sm:$0xf]
      %v2007 = vld [vmem:[%s1985 + $0x54] sm:$0xf]
      %v2008 = vld [vmem:[%s1985 + $0x58] sm:$0xf]
      %v2009 = vld [vmem:[%s1985 + $0x5c] sm:$0xf]
      %v2010 = vld [vmem:[%s1985 + $0x60] sm:$0xf]
      %v2011 = vld [vmem:[%s1985 + $0x64] sm:$0xf]
      %v2012 = vld [vmem:[%s1985 + $0x68] sm:$0xf]
      %v2013 = vld [vmem:[%s1985 + $0x6c] sm:$0xf]
      %v2014 = vld [vmem:[%s1985 + $0x70] sm:$0xf]
      %v2015 = vld [vmem:[%s1985 + $0x74] sm:$0xf]
      %v2016 = vld [vmem:[%s1985 + $0x78] sm:$0xf]
      %v2017 = vld [vmem:[%s1985 + $0x7c] sm:$0xf]
      %2018 = vadd.xlane.f32.xlu0 %v1909
      %v2019 = vpop.xlane.xlu0 %2018
      %v2020 = vmul.f32 %v2019, %v863
      %v2021 = vsub.f32 %v1909, %v2020
      %v2022 = vmul.f32 %v2021, %v2021
      %2023 = vadd.xlane.f32.xlu0 %v2022
      %v2024 = vpop.xlane.xlu0 %2023
      %v2025 = vmul.f32 %v2024, %v863
      %v2026 = vadd.f32 %v2025, 1e-06
      %v2027 = vrsqrt.pop %v2026
      %v2028 = vmul.f32 %v2021, %v2027
      %v2029 = vmul.f32 %v2028, %v1910
      %v2030 = vadd.f32 %v2029, %v1911
      %v2031 = vpack.c.bf16 %v2030, %v2030
      %v2033 = vlaneseq
      %v2034 = vshrl.u32 %v2033, 7
      %v2035 = vsub.s32 0, %v2034
      %v2036 = vrot.slane %v1913, %v2035
      %v2037 = vlaneseq
      %v2038 = vshrl.u32 %v2037, 7
      %v2039 = vsub.s32 1, %v2038
      %v2040 = vrot.slane %v1913, %v2039
      %v2041 = vlaneseq
      %v2042 = vshrl.u32 %v2041, 7
      %v2043 = vsub.s32 2, %v2042
      %v2044 = vrot.slane %v1913, %v2043
      %v2080 = vunpack.c.l.b16 %v1921
      %v2081 = vunpack.c.h.b16 %v1921
      %v2082 = vunpack.c.l.b16 %v1922
      %v2083 = vunpack.c.l.b16 %v1923
      %v2084 = vunpack.c.h.b16 %v1923
      %v2085 = vunpack.c.l.b16 %v1924
      %v2086 = vunpack.c.l.b16 %v1925
      %v2087 = vunpack.c.h.b16 %v1925
      %v2088 = vunpack.c.l.b16 %v1926
      %v2089 = vunpack.c.l.b16 %v1927
      %v2090 = vunpack.c.h.b16 %v1927
      %v2091 = vunpack.c.l.b16 %v1928
      %v2092 = vunpack.c.l.b16 %v1929
      %v2093 = vunpack.c.h.b16 %v1929
      %v2094 = vunpack.c.l.b16 %v1930
      %v2095 = vunpack.c.l.b16 %v1931
      %v2096 = vunpack.c.h.b16 %v1931
      %v2097 = vunpack.c.l.b16 %v1932
      %v2098 = vunpack.c.l.b16 %v1933
      %v2099 = vunpack.c.h.b16 %v1933
      %v2100 = vunpack.c.l.b16 %v1934
      %v2101 = vunpack.c.l.b16 %v1935
      %v2102 = vunpack.c.h.b16 %v1935
      %v2103 = vunpack.c.l.b16 %v1936
      %v2104 = vunpack.c.l.b16 %v1937
      %v2105 = vunpack.c.h.b16 %v1937
      %v2106 = vunpack.c.l.b16 %v1938
      %v2107 = vunpack.c.l.b16 %v1939
      %v2108 = vunpack.c.h.b16 %v1939
      %v2109 = vunpack.c.l.b16 %v1940
      %v2110 = vunpack.c.l.b16 %v1941
      %v2111 = vunpack.c.h.b16 %v1941
      %v2112 = vunpack.c.l.b16 %v1942
      %v2113 = vunpack.c.l.b16 %v1943
      %v2114 = vunpack.c.h.b16 %v1943
      %v2115 = vunpack.c.l.b16 %v1944
      %v2116 = vunpack.c.l.b16 %v1945
      %v2117 = vunpack.c.h.b16 %v1945
      %v2118 = vunpack.c.l.b16 %v1946
      %v2119 = vunpack.c.l.b16 %v1947
      %v2120 = vunpack.c.h.b16 %v1947
      %v2121 = vunpack.c.l.b16 %v1948
      %v2122 = vunpack.c.l.b16 %v1949
      %v2123 = vunpack.c.h.b16 %v1949
      %v2124 = vunpack.c.l.b16 %v1950
      %v2125 = vunpack.c.l.b16 %v1951
      %v2126 = vunpack.c.h.b16 %v1951
      %v2127 = vunpack.c.l.b16 %v1952
      %v2128 = vpack.c.b16 %v2083, %v2080
      %v2129 = vpack.c.b16 %v2084, %v2081
      %v2130 = vpack.c.b16 %v2085, %v2082
      %v2131 = vpack.c.b16 %v2089, %v2086
      %v2132 = vpack.c.b16 %v2090, %v2087
      %v2133 = vpack.c.b16 %v2091, %v2088
      %v2134 = vpack.c.b16 %v2095, %v2092
      %v2135 = vpack.c.b16 %v2096, %v2093
      %v2136 = vpack.c.b16 %v2097, %v2094
      %v2137 = vpack.c.b16 %v2101, %v2098
      %v2138 = vpack.c.b16 %v2102, %v2099
      %v2139 = vpack.c.b16 %v2103, %v2100
      %v2140 = vpack.c.b16 %v2107, %v2104
      %v2141 = vpack.c.b16 %v2108, %v2105
      %v2142 = vpack.c.b16 %v2109, %v2106
      %v2143 = vpack.c.b16 %v2113, %v2110
      %v2144 = vpack.c.b16 %v2114, %v2111
      %v2145 = vpack.c.b16 %v2115, %v2112
      %v2146 = vpack.c.b16 %v2119, %v2116
      %v2147 = vpack.c.b16 %v2120, %v2117
      %v2148 = vpack.c.b16 %v2121, %v2118
      %v2149 = vpack.c.b16 %v2125, %v2122
      %v2150 = vpack.c.b16 %v2126, %v2123
      %v2151 = vpack.c.b16 %v2127, %v2124
      %2176 = vmatprep.subr.bf16.mxu0 %v2129
      %2177 = vmatpush1.bf16.msra.mxu0 %v2128
      %2178 = vmatprep.subr.bf16.mxu0 %v2132
      %2179 = vmatpush1.bf16.msra.mxu0 %v2131
      %2180 = vmatprep.subr.bf16.mxu0 %v2135
      %2181 = vmatpush1.bf16.msra.mxu0 %v2134
      %2182 = vmatprep.subr.bf16.mxu0 %v2138
      %2183 = vmatpush1.bf16.msra.mxu0 %v2137
      %2184 = vmatprep.subr.bf16.mxu0 %v2141
      %2185 = vmatpush1.bf16.msra.mxu0 %v2140
      %2186 = vmatprep.subr.bf16.mxu0 %v2144
      %2187 = vmatpush1.bf16.msra.mxu0 %v2143
      %2188 = vmatprep.subr.bf16.mxu0 %v2147
      %2189 = vmatpush1.bf16.msra.mxu0 %v2146
      %2190 = vmatprep.subr.bf16.mxu0 %v2150
      %2191 = vmatpush1.bf16.msra.mxu0 %v2149
      %2192 = vmatprep.subr.bf16.mxu0 0
      %2193 = vmatpush1.bf16.msra.mxu0 0
      %2194 = vmatprep.subr.bf16.mxu0 0
      %2195 = vmatpush1.bf16.msra.mxu0 0
      %2196 = vmatprep.subr.bf16.mxu0 0
      %2197 = vmatpush1.bf16.msra.mxu0 0
      %2198 = vmatprep.subr.bf16.mxu0 0
      %2199 = vmatpush1.bf16.msra.mxu0 0
      %2200 = vmatprep.subr.bf16.mxu0 0
      %2201 = vmatpush1.bf16.msra.mxu0 0
      %2202 = vmatprep.subr.bf16.mxu0 0
      %2203 = vmatpush1.bf16.msra.mxu0 0
      %2204 = vmatprep.subr.bf16.mxu0 0
      %2205 = vmatpush1.bf16.msra.mxu0 0
      %2206 = vmatprep.subr.bf16.mxu0 0
      %2207 = vmatpush1.bf16.msra.mxu0 0
      %2208 = vmatprep.mubr.bf16.mxu0 0
      %2209 = vmatmul.mubr.bf16.gmra.mrb[0].mxu0 %v2031
      %v2210 = vpop.f32.mrb[0].mxu0
      %v2211 = vadd.f32 %v2036, %v2210
      %v2212 = vpop.f32.mrb[0].mxu0
      %v2213 = vadd.f32 %v2040, %v2212
      %v2214 = vpop.f32.mrb[0].mxu0
      %v2215 = vpop.f32.mrb[0].mxu0
      %2216 = vdwg.mxu0
      %2217 = vmatprep.subr.bf16.mxu0 0
      %2218 = vmatpush1.bf16.msra.mxu0 %v2130
      %2219 = vmatprep.subr.bf16.mxu0 0
      %2220 = vmatpush1.bf16.msra.mxu0 %v2133
      %2221 = vmatprep.subr.bf16.mxu0 0
      %2222 = vmatpush1.bf16.msra.mxu0 %v2136
      %2223 = vmatprep.subr.bf16.mxu0 0
      %2224 = vmatpush1.bf16.msra.mxu0 %v2139
      %2225 = vmatprep.subr.bf16.mxu0 0
      %2226 = vmatpush1.bf16.msra.mxu0 %v2142
      %2227 = vmatprep.subr.bf16.mxu0 0
      %2228 = vmatpush1.bf16.msra.mxu0 %v2145
      %2229 = vmatprep.subr.bf16.mxu0 0
      %2230 = vmatpush1.bf16.msra.mxu0 %v2148
      %2231 = vmatprep.subr.bf16.mxu0 0
      %2232 = vmatpush1.bf16.msra.mxu0 %v2151
      %2233 = vmatprep.subr.bf16.mxu0 0
      %2234 = vmatpush1.bf16.msra.mxu0 0
      %2235 = vmatprep.subr.bf16.mxu0 0
      %2236 = vmatpush1.bf16.msra.mxu0 0
      %2237 = vmatprep.subr.bf16.mxu0 0
      %2238 = vmatpush1.bf16.msra.mxu0 0
      %2239 = vmatprep.subr.bf16.mxu0 0
      %2240 = vmatpush1.bf16.msra.mxu0 0
      %2241 = vmatprep.subr.bf16.mxu0 0
      %2242 = vmatpush1.bf16.msra.mxu0 0
      %2243 = vmatprep.subr.bf16.mxu0 0
      %2244 = vmatpush1.bf16.msra.mxu0 0
      %2245 = vmatprep.subr.bf16.mxu0 0
      %2246 = vmatpush1.bf16.msra.mxu0 0
      %2247 = vmatprep.subr.bf16.mxu0 0
      %2248 = vmatpush1.bf16.msra.mxu0 0
      %2249 = vmatprep.mubr.bf16.mxu0 0
      %2250 = vmatmul.mubr.bf16.gmra.mrb[0].mxu0 %v2031
      %v2251 = vpop.f32.mrb[0].mxu0
      %v2252 = vadd.f32 %v2044, %v2251
      %v2253 = vpop.f32.mrb[0].mxu0
      %v2254 = vpop.f32.mrb[0].mxu0
      %v2255 = vpop.f32.mrb[0].mxu0
      %2256 = vdwg.mxu0
      %v2257 = vmul.f32 %v2211, 0.17677669
      %v2258 = vpack.c.bf16 %v2213, %v2213
      %v2259 = vmul.f32 %v2257, %v1106
      %v2260 = vpack.c.bf16 %v2259, %v2259
      %v2261 = vmul.f32 %v2252, %v1106
      %v2262 = vpack.c.bf16 %v2261, %v2261
      %2263 = vmatprep.subr.bf16.mxu0 0
      %2264 = vmatpush1.bf16.xpose.msra.mxu0 %v2258
      %2265 = vmatprep.subr.bf16.mxu0 0
      %2266 = vmatpush1.bf16.xpose.msra.mxu0 0
      %2267 = vmatprep.subr.bf16.mxu0 0
      %2268 = vmatpush1.bf16.xpose.msra.mxu0 0
      %2269 = vmatprep.subr.bf16.mxu0 0
      %2270 = vmatpush1.bf16.xpose.msra.mxu0 0
      %2271 = vmatprep.subr.bf16.mxu0 0
      %2272 = vmatpush1.bf16.xpose.msra.mxu0 0
      %2273 = vmatprep.subr.bf16.mxu0 0
      %2274 = vmatpush1.bf16.xpose.msra.mxu0 0
      %2275 = vmatprep.subr.bf16.mxu0 0
      %2276 = vmatpush1.bf16.xpose.msra.mxu0 0
      %2277 = vmatprep.subr.bf16.mxu0 0
      %2278 = vmatpush1.bf16.xpose.msra.mxu0 0
      %2279 = vmatprep.subr.bf16.mxu0 0
      %2280 = vmatpush1.bf16.xpose.msra.mxu0 0
      %2281 = vmatprep.subr.bf16.mxu0 0
      %2282 = vmatpush1.bf16.xpose.msra.mxu0 0
      %2283 = vmatprep.subr.bf16.mxu0 0
      %2284 = vmatpush1.bf16.xpose.msra.mxu0 0
      %2285 = vmatprep.subr.bf16.mxu0 0
      %2286 = vmatpush1.bf16.xpose.msra.mxu0 0
      %2287 = vmatprep.subr.bf16.mxu0 0
      %2288 = vmatpush1.bf16.xpose.msra.mxu0 0
      %2289 = vmatprep.subr.bf16.mxu0 0
      %2290 = vmatpush1.bf16.xpose.msra.mxu0 0
      %2291 = vmatprep.subr.bf16.mxu0 0
      %2292 = vmatpush1.bf16.xpose.msra.mxu0 0
      %2293 = vmatprep.subr.bf16.mxu0 0
      %2294 = vmatpush1.bf16.xpose.msra.mxu0 0
      %2295 = vmatprep.mubr.bf16.mxu0 0
      %2296 = vmatmul.mubr.bf16.gmra.mrb[0].mxu0 %v2260
      %v2297 = vpop.f32.mrb[0].mxu0
      %v2298 = vadd.f32 %v226, %v2297
      %v2299 = vpop.f32.mrb[0].mxu0
      %v2300 = vpop.f32.mrb[0].mxu0
      %v2301 = vpop.f32.mrb[0].mxu0
      %2302 = vdwg.mxu0
      %v2303 = vmul.f32 %v2298, 1.442695
      %v2304 = vpow.pop %v2303
      %v2305 = vsel %vm1153, %v2304, 0.0
      %2306 = vadd.xlane.f32.xlu0 %v2305
      %v2307 = vpop.xlane.xlu0 %2306
      %v2308 = vrcp.pop %v2307
      %v2309 = vmul.f32 %v2304, %v2308
      %v2310 = vpack.c.bf16 %v2309, %v2309
      %v2311 = vmul.f32 %v2257, %v1163
      %v2312 = vpack.c.bf16 %v2311, %v2311
      %v2313 = vmul.f32 %v2252, %v1163
      %v2314 = vpack.c.bf16 %v2313, %v2313
      %2315 = vmatprep.subr.bf16.mxu0 0
      %2316 = vmatpush1.bf16.xpose.msra.mxu0 %v2258
      %2317 = vmatprep.subr.bf16.mxu0 0
      %2318 = vmatpush1.bf16.xpose.msra.mxu0 0
      %2319 = vmatprep.subr.bf16.mxu0 0
      %2320 = vmatpush1.bf16.xpose.msra.mxu0 0
      %2321 = vmatprep.subr.bf16.mxu0 0
      %2322 = vmatpush1.bf16.xpose.msra.mxu0 0
      %2323 = vmatprep.subr.bf16.mxu0 0
      %2324 = vmatpush1.bf16.xpose.msra.mxu0 0
      %2325 = vmatprep.subr.bf16.mxu0 0
      %2326 = vmatpush1.bf16.xpose.msra.mxu0 0
      %2327 = vmatprep.subr.bf16.mxu0 0
      %2328 = vmatpush1.bf16.xpose.msra.mxu0 0
      %2329 = vmatprep.subr.bf16.mxu0 0
      %2330 = vmatpush1.bf16.xpose.msra.mxu0 0
      %2331 = vmatprep.subr.bf16.mxu0 0
      %2332 = vmatpush1.bf16.xpose.msra.mxu0 0
      %2333 = vmatprep.subr.bf16.mxu0 0
      %2334 = vmatpush1.bf16.xpose.msra.mxu0 0
      %2335 = vmatprep.subr.bf16.mxu0 0
      %2336 = vmatpush1.bf16.xpose.msra.mxu0 0
      %2337 = vmatprep.subr.bf16.mxu0 0
      %2338 = vmatpush1.bf16.xpose.msra.mxu0 0
      %2339 = vmatprep.subr.bf16.mxu0 0
      %2340 = vmatpush1.bf16.xpose.msra.mxu0 0
      %2341 = vmatprep.subr.bf16.mxu0 0
      %2342 = vmatpush1.bf16.xpose.msra.mxu0 0
      %2343 = vmatprep.subr.bf16.mxu0 0
      %2344 = vmatpush1.bf16.xpose.msra.mxu0 0
      %2345 = vmatprep.subr.bf16.mxu0 0
      %2346 = vmatpush1.bf16.xpose.msra.mxu0 0
      %2347 = vmatprep.mubr.bf16.mxu0 0
      %2348 = vmatmul.mubr.bf16.gmra.mrb[0].mxu0 %v2312
      %v2349 = vpop.f32.mrb[0].mxu0
      %v2350 = vadd.f32 %v226, %v2349
      %v2351 = vpop.f32.mrb[0].mxu0
      %v2352 = vpop.f32.mrb[0].mxu0
      %v2353 = vpop.f32.mrb[0].mxu0
      %2354 = vdwg.mxu0
      %v2355 = vmul.f32 %v2350, 1.442695
      %v2356 = vpow.pop %v2355
      %v2357 = vsel %vm1153, %v2356, 0.0
      %2358 = vadd.xlane.f32.xlu0 %v2357
      %v2359 = vpop.xlane.xlu0 %2358
      %v2360 = vrcp.pop %v2359
      %v2361 = vmul.f32 %v2356, %v2360
      %v2362 = vpack.c.bf16 %v2361, %v2361
      %v2364 = vsel %vm1153, %v2362, 0
      %v2367 = vsel %vm1219, %v2314, 0
      %2369 = vmatprep.subr.bf16.mxu0 0
      %2370 = vmatpush1.bf16.msra.mxu0 %v2367
      %2371 = vmatprep.subr.bf16.mxu0 0
      %2372 = vmatpush1.bf16.msra.mxu0 0
      %2373 = vmatprep.subr.bf16.mxu0 0
      %2374 = vmatpush1.bf16.msra.mxu0 0
      %2375 = vmatprep.subr.bf16.mxu0 0
      %2376 = vmatpush1.bf16.msra.mxu0 0
      %2377 = vmatprep.subr.bf16.mxu0 0
      %2378 = vmatpush1.bf16.msra.mxu0 0
      %2379 = vmatprep.subr.bf16.mxu0 0
      %2380 = vmatpush1.bf16.msra.mxu0 0
      %2381 = vmatprep.subr.bf16.mxu0 0
      %2382 = vmatpush1.bf16.msra.mxu0 0
      %2383 = vmatprep.subr.bf16.mxu0 0
      %2384 = vmatpush1.bf16.msra.mxu0 0
      %2385 = vmatprep.subr.bf16.mxu0 0
      %2386 = vmatpush1.bf16.msra.mxu0 0
      %2387 = vmatprep.subr.bf16.mxu0 0
      %2388 = vmatpush1.bf16.msra.mxu0 0
      %2389 = vmatprep.subr.bf16.mxu0 0
      %2390 = vmatpush1.bf16.msra.mxu0 0
      %2391 = vmatprep.subr.bf16.mxu0 0
      %2392 = vmatpush1.bf16.msra.mxu0 0
      %2393 = vmatprep.subr.bf16.mxu0 0
      %2394 = vmatpush1.bf16.msra.mxu0 0
      %2395 = vmatprep.subr.bf16.mxu0 0
      %2396 = vmatpush1.bf16.msra.mxu0 0
      %2397 = vmatprep.subr.bf16.mxu0 0
      %2398 = vmatpush1.bf16.msra.mxu0 0
      %2399 = vmatprep.subr.bf16.mxu0 0
      %2400 = vmatpush1.bf16.msra.mxu0 0
      %2401 = vmatprep.mubr.bf16.mxu0 0
      %2402 = vmatmul.mubr.bf16.gmra.mrb[0].mxu0 %v2364
      %v2403 = vpop.f32.mrb[0].mxu0
      %v2404 = vadd.f32 0.0, %v2403
      %v2405 = vpop.f32.mrb[0].mxu0
      %v2406 = vpop.f32.mrb[0].mxu0
      %v2407 = vpop.f32.mrb[0].mxu0
      %2408 = vdwg.mxu0
      %v2410 = vsel %vm1153, %v2310, 0
      %v2413 = vsel %vm1219, %v2262, 0
      %2415 = vmatprep.subr.bf16.mxu0 0
      %2416 = vmatpush1.bf16.msra.mxu0 %v2413
      %2417 = vmatprep.subr.bf16.mxu0 0
      %2418 = vmatpush1.bf16.msra.mxu0 0
      %2419 = vmatprep.subr.bf16.mxu0 0
      %2420 = vmatpush1.bf16.msra.mxu0 0
      %2421 = vmatprep.subr.bf16.mxu0 0
      %2422 = vmatpush1.bf16.msra.mxu0 0
      %2423 = vmatprep.subr.bf16.mxu0 0
      %2424 = vmatpush1.bf16.msra.mxu0 0
      %2425 = vmatprep.subr.bf16.mxu0 0
      %2426 = vmatpush1.bf16.msra.mxu0 0
      %2427 = vmatprep.subr.bf16.mxu0 0
      %2428 = vmatpush1.bf16.msra.mxu0 0
      %2429 = vmatprep.subr.bf16.mxu0 0
      %2430 = vmatpush1.bf16.msra.mxu0 0
      %2431 = vmatprep.subr.bf16.mxu0 0
      %2432 = vmatpush1.bf16.msra.mxu0 0
      %2433 = vmatprep.subr.bf16.mxu0 0
      %2434 = vmatpush1.bf16.msra.mxu0 0
      %2435 = vmatprep.subr.bf16.mxu0 0
      %2436 = vmatpush1.bf16.msra.mxu0 0
      %2437 = vmatprep.subr.bf16.mxu0 0
      %2438 = vmatpush1.bf16.msra.mxu0 0
      %2439 = vmatprep.subr.bf16.mxu0 0
      %2440 = vmatpush1.bf16.msra.mxu0 0
      %2441 = vmatprep.subr.bf16.mxu0 0
      %2442 = vmatpush1.bf16.msra.mxu0 0
      %2443 = vmatprep.subr.bf16.mxu0 0
      %2444 = vmatpush1.bf16.msra.mxu0 0
      %2445 = vmatprep.subr.bf16.mxu0 0
      %2446 = vmatpush1.bf16.msra.mxu0 0
      %2447 = vmatprep.mubr.bf16.mxu0 0
      %2448 = vmatmul.mubr.bf16.gmra.mrb[0].mxu0 %v2410
      %v2449 = vpop.f32.mrb[0].mxu0
      %v2450 = vadd.f32 %v2404, %v2449
      %v2451 = vpop.f32.mrb[0].mxu0
      %v2452 = vpop.f32.mrb[0].mxu0
      %v2453 = vpop.f32.mrb[0].mxu0
      %2454 = vdwg.mxu0
      %v2455 = vmul.f32 %v2257, %v1312
      %v2456 = vpack.c.bf16 %v2455, %v2455
      %v2457 = vmul.f32 %v2252, %v1312
      %v2458 = vpack.c.bf16 %v2457, %v2457
      %2459 = vmatprep.subr.bf16.mxu0 0
      %2460 = vmatpush1.bf16.xpose.msra.mxu0 %v2258
      %2461 = vmatprep.subr.bf16.mxu0 0
      %2462 = vmatpush1.bf16.xpose.msra.mxu0 0
      %2463 = vmatprep.subr.bf16.mxu0 0
      %2464 = vmatpush1.bf16.xpose.msra.mxu0 0
      %2465 = vmatprep.subr.bf16.mxu0 0
      %2466 = vmatpush1.bf16.xpose.msra.mxu0 0
      %2467 = vmatprep.subr.bf16.mxu0 0
      %2468 = vmatpush1.bf16.xpose.msra.mxu0 0
      %2469 = vmatprep.subr.bf16.mxu0 0
      %2470 = vmatpush1.bf16.xpose.msra.mxu0 0
      %2471 = vmatprep.subr.bf16.mxu0 0
      %2472 = vmatpush1.bf16.xpose.msra.mxu0 0
      %2473 = vmatprep.subr.bf16.mxu0 0
      %2474 = vmatpush1.bf16.xpose.msra.mxu0 0
      %2475 = vmatprep.subr.bf16.mxu0 0
      %2476 = vmatpush1.bf16.xpose.msra.mxu0 0
      %2477 = vmatprep.subr.bf16.mxu0 0
      %2478 = vmatpush1.bf16.xpose.msra.mxu0 0
      %2479 = vmatprep.subr.bf16.mxu0 0
      %2480 = vmatpush1.bf16.xpose.msra.mxu0 0
      %2481 = vmatprep.subr.bf16.mxu0 0
      %2482 = vmatpush1.bf16.xpose.msra.mxu0 0
      %2483 = vmatprep.subr.bf16.mxu0 0
      %2484 = vmatpush1.bf16.xpose.msra.mxu0 0
      %2485 = vmatprep.subr.bf16.mxu0 0
      %2486 = vmatpush1.bf16.xpose.msra.mxu0 0
      %2487 = vmatprep.subr.bf16.mxu0 0
      %2488 = vmatpush1.bf16.xpose.msra.mxu0 0
      %2489 = vmatprep.subr.bf16.mxu0 0
      %2490 = vmatpush1.bf16.xpose.msra.mxu0 0
      %2491 = vmatprep.mubr.bf16.mxu0 0
      %2492 = vmatmul.mubr.bf16.gmra.mrb[0].mxu0 %v2456
      %v2493 = vpop.f32.mrb[0].mxu0
      %v2494 = vadd.f32 %v226, %v2493
      %v2495 = vpop.f32.mrb[0].mxu0
      %v2496 = vpop.f32.mrb[0].mxu0
      %v2497 = vpop.f32.mrb[0].mxu0
      %2498 = vdwg.mxu0
      %v2499 = vmul.f32 %v2494, 1.442695
      %v2500 = vpow.pop %v2499
      %v2501 = vsel %vm1153, %v2500, 0.0
      %2502 = vadd.xlane.f32.xlu0 %v2501
      %v2503 = vpop.xlane.xlu0 %2502
      %v2504 = vrcp.pop %v2503
      %v2505 = vmul.f32 %v2500, %v2504
      %v2506 = vpack.c.bf16 %v2505, %v2505
      %v2508 = vsel %vm1153, %v2506, 0
      %v2511 = vsel %vm1219, %v2458, 0
      %2513 = vmatprep.subr.bf16.mxu0 0
      %2514 = vmatpush1.bf16.msra.mxu0 %v2511
      %2515 = vmatprep.subr.bf16.mxu0 0
      %2516 = vmatpush1.bf16.msra.mxu0 0
      %2517 = vmatprep.subr.bf16.mxu0 0
      %2518 = vmatpush1.bf16.msra.mxu0 0
      %2519 = vmatprep.subr.bf16.mxu0 0
      %2520 = vmatpush1.bf16.msra.mxu0 0
      %2521 = vmatprep.subr.bf16.mxu0 0
      %2522 = vmatpush1.bf16.msra.mxu0 0
      %2523 = vmatprep.subr.bf16.mxu0 0
      %2524 = vmatpush1.bf16.msra.mxu0 0
      %2525 = vmatprep.subr.bf16.mxu0 0
      %2526 = vmatpush1.bf16.msra.mxu0 0
      %2527 = vmatprep.subr.bf16.mxu0 0
      %2528 = vmatpush1.bf16.msra.mxu0 0
      %2529 = vmatprep.subr.bf16.mxu0 0
      %2530 = vmatpush1.bf16.msra.mxu0 0
      %2531 = vmatprep.subr.bf16.mxu0 0
      %2532 = vmatpush1.bf16.msra.mxu0 0
      %2533 = vmatprep.subr.bf16.mxu0 0
      %2534 = vmatpush1.bf16.msra.mxu0 0
      %2535 = vmatprep.subr.bf16.mxu0 0
      %2536 = vmatpush1.bf16.msra.mxu0 0
      %2537 = vmatprep.subr.bf16.mxu0 0
      %2538 = vmatpush1.bf16.msra.mxu0 0
      %2539 = vmatprep.subr.bf16.mxu0 0
      %2540 = vmatpush1.bf16.msra.mxu0 0
      %2541 = vmatprep.subr.bf16.mxu0 0
      %2542 = vmatpush1.bf16.msra.mxu0 0
      %2543 = vmatprep.subr.bf16.mxu0 0
      %2544 = vmatpush1.bf16.msra.mxu0 0
      %2545 = vmatprep.mubr.bf16.mxu0 0
      %2546 = vmatmul.mubr.bf16.gmra.mrb[0].mxu0 %v2508
      %v2547 = vpop.f32.mrb[0].mxu0
      %v2548 = vadd.f32 0.0, %v2547
      %v2549 = vpop.f32.mrb[0].mxu0
      %v2550 = vpop.f32.mrb[0].mxu0
      %v2551 = vpop.f32.mrb[0].mxu0
      %2552 = vdwg.mxu0
      %v2553 = vadd.f32 %v2450, %v2548
      %v2554 = vmul.f32 %v2257, %v1415
      %v2555 = vpack.c.bf16 %v2554, %v2554
      %v2556 = vmul.f32 %v2252, %v1415
      %v2557 = vpack.c.bf16 %v2556, %v2556
      %2558 = vmatprep.subr.bf16.mxu0 0
      %2559 = vmatpush1.bf16.xpose.msra.mxu0 %v2258
      %2560 = vmatprep.subr.bf16.mxu0 0
      %2561 = vmatpush1.bf16.xpose.msra.mxu0 0
      %2562 = vmatprep.subr.bf16.mxu0 0
      %2563 = vmatpush1.bf16.xpose.msra.mxu0 0
      %2564 = vmatprep.subr.bf16.mxu0 0
      %2565 = vmatpush1.bf16.xpose.msra.mxu0 0
      %2566 = vmatprep.subr.bf16.mxu0 0
      %2567 = vmatpush1.bf16.xpose.msra.mxu0 0
      %2568 = vmatprep.subr.bf16.mxu0 0
      %2569 = vmatpush1.bf16.xpose.msra.mxu0 0
      %2570 = vmatprep.subr.bf16.mxu0 0
      %2571 = vmatpush1.bf16.xpose.msra.mxu0 0
      %2572 = vmatprep.subr.bf16.mxu0 0
      %2573 = vmatpush1.bf16.xpose.msra.mxu0 0
      %2574 = vmatprep.subr.bf16.mxu0 0
      %2575 = vmatpush1.bf16.xpose.msra.mxu0 0
      %2576 = vmatprep.subr.bf16.mxu0 0
      %2577 = vmatpush1.bf16.xpose.msra.mxu0 0
      %2578 = vmatprep.subr.bf16.mxu0 0
      %2579 = vmatpush1.bf16.xpose.msra.mxu0 0
      %2580 = vmatprep.subr.bf16.mxu0 0
      %2581 = vmatpush1.bf16.xpose.msra.mxu0 0
      %2582 = vmatprep.subr.bf16.mxu0 0
      %2583 = vmatpush1.bf16.xpose.msra.mxu0 0
      %2584 = vmatprep.subr.bf16.mxu0 0
      %2585 = vmatpush1.bf16.xpose.msra.mxu0 0
      %2586 = vmatprep.subr.bf16.mxu0 0
      %2587 = vmatpush1.bf16.xpose.msra.mxu0 0
      %2588 = vmatprep.subr.bf16.mxu0 0
      %2589 = vmatpush1.bf16.xpose.msra.mxu0 0
      %2590 = vmatprep.mubr.bf16.mxu0 0
      %2591 = vmatmul.mubr.bf16.gmra.mrb[0].mxu0 %v2555
      %v2592 = vpop.f32.mrb[0].mxu0
      %v2593 = vadd.f32 %v226, %v2592
      %v2594 = vpop.f32.mrb[0].mxu0
      %v2595 = vpop.f32.mrb[0].mxu0
      %v2596 = vpop.f32.mrb[0].mxu0
      %2597 = vdwg.mxu0
      %v2598 = vmul.f32 %v2593, 1.442695
      %v2599 = vpow.pop %v2598
      %v2600 = vsel %vm1153, %v2599, 0.0
      %2601 = vadd.xlane.f32.xlu0 %v2600
      %v2602 = vpop.xlane.xlu0 %2601
      %v2603 = vrcp.pop %v2602
      %v2604 = vmul.f32 %v2599, %v2603
      %v2605 = vpack.c.bf16 %v2604, %v2604
      %v2607 = vsel %vm1153, %v2605, 0
      %v2610 = vsel %vm1219, %v2557, 0
      %2612 = vmatprep.subr.bf16.mxu0 0
      %2613 = vmatpush1.bf16.msra.mxu0 %v2610
      %2614 = vmatprep.subr.bf16.mxu0 0
      %2615 = vmatpush1.bf16.msra.mxu0 0
      %2616 = vmatprep.subr.bf16.mxu0 0
      %2617 = vmatpush1.bf16.msra.mxu0 0
      %2618 = vmatprep.subr.bf16.mxu0 0
      %2619 = vmatpush1.bf16.msra.mxu0 0
      %2620 = vmatprep.subr.bf16.mxu0 0
      %2621 = vmatpush1.bf16.msra.mxu0 0
      %2622 = vmatprep.subr.bf16.mxu0 0
      %2623 = vmatpush1.bf16.msra.mxu0 0
      %2624 = vmatprep.subr.bf16.mxu0 0
      %2625 = vmatpush1.bf16.msra.mxu0 0
      %2626 = vmatprep.subr.bf16.mxu0 0
      %2627 = vmatpush1.bf16.msra.mxu0 0
      %2628 = vmatprep.subr.bf16.mxu0 0
      %2629 = vmatpush1.bf16.msra.mxu0 0
      %2630 = vmatprep.subr.bf16.mxu0 0
      %2631 = vmatpush1.bf16.msra.mxu0 0
      %2632 = vmatprep.subr.bf16.mxu0 0
      %2633 = vmatpush1.bf16.msra.mxu0 0
      %2634 = vmatprep.subr.bf16.mxu0 0
      %2635 = vmatpush1.bf16.msra.mxu0 0
      %2636 = vmatprep.subr.bf16.mxu0 0
      %2637 = vmatpush1.bf16.msra.mxu0 0
      %2638 = vmatprep.subr.bf16.mxu0 0
      %2639 = vmatpush1.bf16.msra.mxu0 0
      %2640 = vmatprep.subr.bf16.mxu0 0
      %2641 = vmatpush1.bf16.msra.mxu0 0
      %2642 = vmatprep.subr.bf16.mxu0 0
      %2643 = vmatpush1.bf16.msra.mxu0 0
      %2644 = vmatprep.mubr.bf16.mxu0 0
      %2645 = vmatmul.mubr.bf16.gmra.mrb[0].mxu0 %v2607
      %v2646 = vpop.f32.mrb[0].mxu0
      %v2647 = vadd.f32 0.0, %v2646
      %v2648 = vpop.f32.mrb[0].mxu0
      %v2649 = vpop.f32.mrb[0].mxu0
      %v2650 = vpop.f32.mrb[0].mxu0
      %2651 = vdwg.mxu0
      %v2652 = vadd.f32 %v2553, %v2647
      %v2653 = vpack.c.bf16 %v2652, %v2652
      %v2670 = vunpack.c.l.b16 %v1953
      %v2671 = vunpack.c.l.b16 %v1954
      %v2672 = vunpack.c.l.b16 %v1955
      %v2673 = vunpack.c.l.b16 %v1956
      %v2674 = vunpack.c.l.b16 %v1957
      %v2675 = vunpack.c.l.b16 %v1958
      %v2676 = vunpack.c.l.b16 %v1959
      %v2677 = vunpack.c.l.b16 %v1960
      %v2678 = vunpack.c.l.b16 %v1961
      %v2679 = vunpack.c.l.b16 %v1962
      %v2680 = vunpack.c.l.b16 %v1963
      %v2681 = vunpack.c.l.b16 %v1964
      %v2682 = vunpack.c.l.b16 %v1965
      %v2683 = vunpack.c.l.b16 %v1966
      %v2684 = vunpack.c.l.b16 %v1967
      %v2685 = vunpack.c.l.b16 %v1968
      %v2686 = vpack.c.b16 %v2671, %v2670
      %v2687 = vpack.c.b16 %v2673, %v2672
      %v2688 = vpack.c.b16 %v2675, %v2674
      %v2689 = vpack.c.b16 %v2677, %v2676
      %v2690 = vpack.c.b16 %v2679, %v2678
      %v2691 = vpack.c.b16 %v2681, %v2680
      %v2692 = vpack.c.b16 %v2683, %v2682
      %v2693 = vpack.c.b16 %v2685, %v2684
      %2702 = vmatprep.subr.bf16.mxu0 0
      %2703 = vmatpush1.bf16.msra.mxu0 %v2686
      %2704 = vmatprep.subr.bf16.mxu0 0
      %2705 = vmatpush1.bf16.msra.mxu0 %v2687
      %2706 = vmatprep.subr.bf16.mxu0 0
      %2707 = vmatpush1.bf16.msra.mxu0 %v2688
      %2708 = vmatprep.subr.bf16.mxu0 0
      %2709 = vmatpush1.bf16.msra.mxu0 %v2689
      %2710 = vmatprep.subr.bf16.mxu0 0
      %2711 = vmatpush1.bf16.msra.mxu0 %v2690
      %2712 = vmatprep.subr.bf16.mxu0 0
      %2713 = vmatpush1.bf16.msra.mxu0 %v2691
      %2714 = vmatprep.subr.bf16.mxu0 0
      %2715 = vmatpush1.bf16.msra.mxu0 %v2692
      %2716 = vmatprep.subr.bf16.mxu0 0
      %2717 = vmatpush1.bf16.msra.mxu0 %v2693
      %2718 = vmatprep.subr.bf16.mxu0 0
      %2719 = vmatpush1.bf16.msra.mxu0 0
      %2720 = vmatprep.subr.bf16.mxu0 0
      %2721 = vmatpush1.bf16.msra.mxu0 0
      %2722 = vmatprep.subr.bf16.mxu0 0
      %2723 = vmatpush1.bf16.msra.mxu0 0
      %2724 = vmatprep.subr.bf16.mxu0 0
      %2725 = vmatpush1.bf16.msra.mxu0 0
      %2726 = vmatprep.subr.bf16.mxu0 0
      %2727 = vmatpush1.bf16.msra.mxu0 0
      %2728 = vmatprep.subr.bf16.mxu0 0
      %2729 = vmatpush1.bf16.msra.mxu0 0
      %2730 = vmatprep.subr.bf16.mxu0 0
      %2731 = vmatpush1.bf16.msra.mxu0 0
      %2732 = vmatprep.subr.bf16.mxu0 0
      %2733 = vmatpush1.bf16.msra.mxu0 0
      %2734 = vmatprep.mubr.bf16.mxu0 0
      %2735 = vmatmul.mubr.bf16.gmra.mrb[0].mxu0 %v2653
      %v2736 = vpop.f32.mrb[0].mxu0
      %v2737 = vadd.f32 0.0, %v2736
      %v2738 = vpop.f32.mrb[0].mxu0
      %v2739 = vpop.f32.mrb[0].mxu0
      %v2740 = vpop.f32.mrb[0].mxu0
      %2741 = vdwg.mxu0
      %v2742 = vadd.f32 %v1909, %v2737
      %v2743 = vadd.f32 %v2742, %v1914
      %2744 = vadd.xlane.f32.xlu0 %v2743
      %v2745 = vpop.xlane.xlu0 %2744
      %v2746 = vmul.f32 %v2745, %v863
      %v2747 = vsub.f32 %v2743, %v2746
      %v2748 = vmul.f32 %v2747, %v2747
      %2749 = vadd.xlane.f32.xlu0 %v2748
      %v2750 = vpop.xlane.xlu0 %2749
      %v2751 = vmul.f32 %v2750, %v863
      %v2752 = vadd.f32 %v2751, 1e-06
      %v2753 = vrsqrt.pop %v2752
      %v2754 = vmul.f32 %v2747, %v2753
      %v2755 = vmul.f32 %v2754, %v1915
      %v2756 = vadd.f32 %v2755, %v1916
      %v2757 = vpack.c.bf16 %v2756, %v2756
      %v2759 = vlaneseq
      %v2760 = vshrl.u32 %v2759, 7
      %v2761 = vsub.s32 0, %v2760
      %v2762 = vrot.slane %v1918, %v2761
      %v2763 = vlaneseq
      %v2764 = vshrl.u32 %v2763, 7
      %v2765 = vsub.s32 1, %v2764
      %v2766 = vrot.slane %v1918, %v2765
      %v2785 = vunpack.c.l.b16 %v1969
      %v2786 = vunpack.c.h.b16 %v1969
      %v2787 = vunpack.c.l.b16 %v1970
      %v2788 = vunpack.c.h.b16 %v1970
      %v2789 = vunpack.c.l.b16 %v1971
      %v2790 = vunpack.c.h.b16 %v1971
      %v2791 = vunpack.c.l.b16 %v1972
      %v2792 = vunpack.c.h.b16 %v1972
      %v2793 = vunpack.c.l.b16 %v1973
      %v2794 = vunpack.c.h.b16 %v1973
      %v2795 = vunpack.c.l.b16 %v1974
      %v2796 = vunpack.c.h.b16 %v1974
      %v2797 = vunpack.c.l.b16 %v1975
      %v2798 = vunpack.c.h.b16 %v1975
      %v2799 = vunpack.c.l.b16 %v1976
      %v2800 = vunpack.c.h.b16 %v1976
      %v2801 = vunpack.c.l.b16 %v1977
      %v2802 = vunpack.c.h.b16 %v1977
      %v2803 = vunpack.c.l.b16 %v1978
      %v2804 = vunpack.c.h.b16 %v1978
      %v2805 = vunpack.c.l.b16 %v1979
      %v2806 = vunpack.c.h.b16 %v1979
      %v2807 = vunpack.c.l.b16 %v1980
      %v2808 = vunpack.c.h.b16 %v1980
      %v2809 = vunpack.c.l.b16 %v1981
      %v2810 = vunpack.c.h.b16 %v1981
      %v2811 = vunpack.c.l.b16 %v1982
      %v2812 = vunpack.c.h.b16 %v1982
      %v2813 = vunpack.c.l.b16 %v1983
      %v2814 = vunpack.c.h.b16 %v1983
      %v2815 = vunpack.c.l.b16 %v1984
      %v2816 = vunpack.c.h.b16 %v1984
      %v2817 = vpack.c.b16 %v2787, %v2785
      %v2818 = vpack.c.b16 %v2788, %v2786
      %v2819 = vpack.c.b16 %v2791, %v2789
      %v2820 = vpack.c.b16 %v2792, %v2790
      %v2821 = vpack.c.b16 %v2795, %v2793
      %v2822 = vpack.c.b16 %v2796, %v2794
      %v2823 = vpack.c.b16 %v2799, %v2797
      %v2824 = vpack.c.b16 %v2800, %v2798
      %v2825 = vpack.c.b16 %v2803, %v2801
      %v2826 = vpack.c.b16 %v2804, %v2802
      %v2827 = vpack.c.b16 %v2807, %v2805
      %v2828 = vpack.c.b16 %v2808, %v2806
      %v2829 = vpack.c.b16 %v2811, %v2809
      %v2830 = vpack.c.b16 %v2812, %v2810
      %v2831 = vpack.c.b16 %v2815, %v2813
      %v2832 = vpack.c.b16 %v2816, %v2814
      %2849 = vmatprep.subr.bf16.mxu0 %v2818
      %2850 = vmatpush1.bf16.msra.mxu0 %v2817
      %2851 = vmatprep.subr.bf16.mxu0 %v2820
      %2852 = vmatpush1.bf16.msra.mxu0 %v2819
      %2853 = vmatprep.subr.bf16.mxu0 %v2822
      %2854 = vmatpush1.bf16.msra.mxu0 %v2821
      %2855 = vmatprep.subr.bf16.mxu0 %v2824
      %2856 = vmatpush1.bf16.msra.mxu0 %v2823
      %2857 = vmatprep.subr.bf16.mxu0 %v2826
      %2858 = vmatpush1.bf16.msra.mxu0 %v2825
      %2859 = vmatprep.subr.bf16.mxu0 %v2828
      %2860 = vmatpush1.bf16.msra.mxu0 %v2827
      %2861 = vmatprep.subr.bf16.mxu0 %v2830
      %2862 = vmatpush1.bf16.msra.mxu0 %v2829
      %2863 = vmatprep.subr.bf16.mxu0 %v2832
      %2864 = vmatpush1.bf16.msra.mxu0 %v2831
      %2865 = vmatprep.subr.bf16.mxu0 0
      %2866 = vmatpush1.bf16.msra.mxu0 0
      %2867 = vmatprep.subr.bf16.mxu0 0
      %2868 = vmatpush1.bf16.msra.mxu0 0
      %2869 = vmatprep.subr.bf16.mxu0 0
      %2870 = vmatpush1.bf16.msra.mxu0 0
      %2871 = vmatprep.subr.bf16.mxu0 0
      %2872 = vmatpush1.bf16.msra.mxu0 0
      %2873 = vmatprep.subr.bf16.mxu0 0
      %2874 = vmatpush1.bf16.msra.mxu0 0
      %2875 = vmatprep.subr.bf16.mxu0 0
      %2876 = vmatpush1.bf16.msra.mxu0 0
      %2877 = vmatprep.subr.bf16.mxu0 0
      %2878 = vmatpush1.bf16.msra.mxu0 0
      %2879 = vmatprep.subr.bf16.mxu0 0
      %2880 = vmatpush1.bf16.msra.mxu0 0
      %2881 = vmatprep.mubr.bf16.mxu0 0
      %2882 = vmatmul.mubr.bf16.gmra.mrb[0].mxu0 %v2757
      %v2883 = vpop.f32.mrb[0].mxu0
      %v2884 = vadd.f32 %v2762, %v2883
      %v2885 = vpop.f32.mrb[0].mxu0
      %v2886 = vadd.f32 %v2766, %v2885
      %v2887 = vpop.f32.mrb[0].mxu0
      %v2888 = vpop.f32.mrb[0].mxu0
      %2889 = vdwg.mxu0
      %v2890 = vmul.f32 %v2884, %v2884
      %v2891 = vmul.f32 %v2886, %v2886
      %v2892 = vmul.f32 %v2884, %v2890
      %v2893 = vmul.f32 %v2886, %v2891
      %v2894 = vmul.f32 %v2892, 0.044715
      %v2895 = vmul.f32 %v2893, 0.044715
      %v2896 = vadd.f32 %v2884, %v2894
      %v2897 = vadd.f32 %v2886, %v2895
      %v2898 = vmul.f32 %v2896, 0.7978846
      %v2899 = vmul.f32 %v2897, 0.7978846
      %v2900 = vtanh.pop %v2898
      %v2901 = vtanh.pop %v2899
      %v2902 = vadd.f32 %v2900, 1.0
      %v2903 = vadd.f32 %v2901, 1.0
      %v2904 = vmul.f32 %v2902, 0.5
      %v2905 = vmul.f32 %v2903, 0.5
      %v2906 = vmul.f32 %v2884, %v2904
      %v2907 = vmul.f32 %v2886, %v2905
      %v2908 = vpack.c.bf16 %v2906, %v2906
      %v2909 = vpack.c.bf16 %v2907, %v2907
      %v2942 = vunpack.c.l.b16 %v1986
      %v2943 = vunpack.c.l.b16 %v1987
      %v2944 = vunpack.c.l.b16 %v1988
      %v2945 = vunpack.c.l.b16 %v1989
      %v2946 = vunpack.c.l.b16 %v1990
      %v2947 = vunpack.c.l.b16 %v1991
      %v2948 = vunpack.c.l.b16 %v1992
      %v2949 = vunpack.c.l.b16 %v1993
      %v2950 = vunpack.c.l.b16 %v1994
      %v2951 = vunpack.c.l.b16 %v1995
      %v2952 = vunpack.c.l.b16 %v1996
      %v2953 = vunpack.c.l.b16 %v1997
      %v2954 = vunpack.c.l.b16 %v1998
      %v2955 = vunpack.c.l.b16 %v1999
      %v2956 = vunpack.c.l.b16 %v2000
      %v2957 = vunpack.c.l.b16 %v2001
      %v2958 = vunpack.c.l.b16 %v2002
      %v2959 = vunpack.c.l.b16 %v2003
      %v2960 = vunpack.c.l.b16 %v2004
      %v2961 = vunpack.c.l.b16 %v2005
      %v2962 = vunpack.c.l.b16 %v2006
      %v2963 = vunpack.c.l.b16 %v2007
      %v2964 = vunpack.c.l.b16 %v2008
      %v2965 = vunpack.c.l.b16 %v2009
      %v2966 = vunpack.c.l.b16 %v2010
      %v2967 = vunpack.c.l.b16 %v2011
      %v2968 = vunpack.c.l.b16 %v2012
      %v2969 = vunpack.c.l.b16 %v2013
      %v2970 = vunpack.c.l.b16 %v2014
      %v2971 = vunpack.c.l.b16 %v2015
      %v2972 = vunpack.c.l.b16 %v2016
      %v2973 = vunpack.c.l.b16 %v2017
      %v2974 = vpack.c.b16 %v2943, %v2942
      %v2975 = vpack.c.b16 %v2945, %v2944
      %v2976 = vpack.c.b16 %v2947, %v2946
      %v2977 = vpack.c.b16 %v2949, %v2948
      %v2978 = vpack.c.b16 %v2951, %v2950
      %v2979 = vpack.c.b16 %v2953, %v2952
      %v2980 = vpack.c.b16 %v2955, %v2954
      %v2981 = vpack.c.b16 %v2957, %v2956
      %v2982 = vpack.c.b16 %v2959, %v2958
      %v2983 = vpack.c.b16 %v2961, %v2960
      %v2984 = vpack.c.b16 %v2963, %v2962
      %v2985 = vpack.c.b16 %v2965, %v2964
      %v2986 = vpack.c.b16 %v2967, %v2966
      %v2987 = vpack.c.b16 %v2969, %v2968
      %v2988 = vpack.c.b16 %v2971, %v2970
      %v2989 = vpack.c.b16 %v2973, %v2972
      %3006 = vmatprep.subr.bf16.mxu0 0
      %3007 = vmatpush1.bf16.msra.mxu0 %v2974
      %3008 = vmatprep.subr.bf16.mxu0 0
      %3009 = vmatpush1.bf16.msra.mxu0 %v2975
      %3010 = vmatprep.subr.bf16.mxu0 0
      %3011 = vmatpush1.bf16.msra.mxu0 %v2976
      %3012 = vmatprep.subr.bf16.mxu0 0
      %3013 = vmatpush1.bf16.msra.mxu0 %v2977
      %3014 = vmatprep.subr.bf16.mxu0 0
      %3015 = vmatpush1.bf16.msra.mxu0 %v2978
      %3016 = vmatprep.subr.bf16.mxu0 0
      %3017 = vmatpush1.bf16.msra.mxu0 %v2979
      %3018 = vmatprep.subr.bf16.mxu0 0
      %3019 = vmatpush1.bf16.msra.mxu0 %v2980
      %3020 = vmatprep.subr.bf16.mxu0 0
      %3021 = vmatpush1.bf16.msra.mxu0 %v2981
      %3022 = vmatprep.subr.bf16.mxu0 0
      %3023 = vmatpush1.bf16.msra.mxu0 %v2982
      %3024 = vmatprep.subr.bf16.mxu0 0
      %3025 = vmatpush1.bf16.msra.mxu0 %v2983
      %3026 = vmatprep.subr.bf16.mxu0 0
      %3027 = vmatpush1.bf16.msra.mxu0 %v2984
      %3028 = vmatprep.subr.bf16.mxu0 0
      %3029 = vmatpush1.bf16.msra.mxu0 %v2985
      %3030 = vmatprep.subr.bf16.mxu0 0
      %3031 = vmatpush1.bf16.msra.mxu0 %v2986
      %3032 = vmatprep.subr.bf16.mxu0 0
      %3033 = vmatpush1.bf16.msra.mxu0 %v2987
      %3034 = vmatprep.subr.bf16.mxu0 0
      %3035 = vmatpush1.bf16.msra.mxu0 %v2988
      %3036 = vmatprep.subr.bf16.mxu0 0
      %3037 = vmatpush1.bf16.msra.mxu0 %v2989
      %3038 = vmatprep.mubr.bf16.mxu0 %v2909
      %3039 = vmatmul.mubr.bf16.gmra.mrb[0].mxu0 %v2908
      %v3040 = vpop.f32.mrb[0].mxu0
      %v3041 = vadd.f32 0.0, %v3040
      %v3042 = vpop.f32.mrb[0].mxu0
      %v3043 = vpop.f32.mrb[0].mxu0
      %v3044 = vpop.f32.mrb[0].mxu0
      %3045 = vdwg.mxu0
      %v3046 = vadd.f32 %v2743, %v3041
      %v3047 = vadd.f32 %v3046, %v1919
      %v3048 = vld [vmem:[%s1 + $0x1d] ss:$0 sm:$0xff]
      %v3049 = vld [vmem:[%s1 + $0x1e] ss:$0 sm:$0xff]
      %v3050 = vld [vmem:[%s1 + $0x1f] ss:$0 sm:$0xff]
      %3051 = vadd.xlane.f32.xlu0 %v3047
      %v3052 = vpop.xlane.xlu0 %3051
      %v3053 = vmul.f32 %v3052, %v863
      %v3054 = vsub.f32 %v3047, %v3053
      %v3055 = vmul.f32 %v3054, %v3054
      %3056 = vadd.xlane.f32.xlu0 %v3055
      %v3057 = vpop.xlane.xlu0 %3056
      %v3058 = vmul.f32 %v3057, %v863
      %v3059 = vadd.f32 %v3058, 1e-06
      %v3060 = vrsqrt.pop %v3059
      %v3061 = vmul.f32 %v3054, %v3060
      %v3062 = vmul.f32 %v3061, %v3048
      %v3063 = vadd.f32 %v3062, %v3049
      %v3064 = vld [vmem:[%s4 + $0x180] sm:$0xf]
      %v3065 = vld [vmem:[%s4 + $0x184] sm:$0xf]
      %v3066 = vld [vmem:[%s4 + $0x188] sm:$0xf]
      %v3067 = vld [vmem:[%s4 + $0x18c] sm:$0xf]
      %v3068 = vld [vmem:[%s4 + $0x190] sm:$0xf]
      %v3069 = vld [vmem:[%s4 + $0x194] sm:$0xf]
      %v3070 = vld [vmem:[%s4 + $0x198] sm:$0xf]
      %v3071 = vld [vmem:[%s4 + $0x19c] sm:$0xf]
      %v3072 = vld [vmem:[%s4 + $0x1a0] sm:$0xf]
      %v3073 = vld [vmem:[%s4 + $0x1a4] sm:$0xf]
      %v3074 = vld [vmem:[%s4 + $0x1a8] sm:$0xf]
      %v3075 = vld [vmem:[%s4 + $0x1ac] sm:$0xf]
      %v3076 = vld [vmem:[%s4 + $0x1b0] sm:$0xf]
      %v3077 = vld [vmem:[%s4 + $0x1b4] sm:$0xf]
      %v3078 = vld [vmem:[%s4 + $0x1b8] sm:$0xf]
      %v3079 = vld [vmem:[%s4 + $0x1bc] sm:$0xf]
      %v3080 = vpack.c.bf16 %v3063, %v3063
      %v3097 = vunpack.c.l.b16 %v3064
      %v3098 = vunpack.c.l.b16 %v3065
      %v3099 = vunpack.c.l.b16 %v3066
      %v3100 = vunpack.c.l.b16 %v3067
      %v3101 = vunpack.c.l.b16 %v3068
      %v3102 = vunpack.c.l.b16 %v3069
      %v3103 = vunpack.c.l.b16 %v3070
      %v3104 = vunpack.c.l.b16 %v3071
      %v3105 = vunpack.c.l.b16 %v3072
      %v3106 = vunpack.c.l.b16 %v3073
      %v3107 = vunpack.c.l.b16 %v3074
      %v3108 = vunpack.c.l.b16 %v3075
      %v3109 = vunpack.c.l.b16 %v3076
      %v3110 = vunpack.c.l.b16 %v3077
      %v3111 = vunpack.c.l.b16 %v3078
      %v3112 = vunpack.c.l.b16 %v3079
      %v3113 = vpack.c.b16 %v3098, %v3097
      %v3114 = vpack.c.b16 %v3100, %v3099
      %v3115 = vpack.c.b16 %v3102, %v3101
      %v3116 = vpack.c.b16 %v3104, %v3103
      %v3117 = vpack.c.b16 %v3106, %v3105
      %v3118 = vpack.c.b16 %v3108, %v3107
      %v3119 = vpack.c.b16 %v3110, %v3109
      %v3120 = vpack.c.b16 %v3112, %v3111
      %3129 = vmatprep.subr.bf16.mxu0 0
      %3130 = vmatpush1.bf16.msra.mxu0 %v3113
      %3131 = vmatprep.subr.bf16.mxu0 0
      %3132 = vmatpush1.bf16.msra.mxu0 %v3114
      %3133 = vmatprep.subr.bf16.mxu0 0
      %3134 = vmatpush1.bf16.msra.mxu0 %v3115
      %3135 = vmatprep.subr.bf16.mxu0 0
      %3136 = vmatpush1.bf16.msra.mxu0 %v3116
      %3137 = vmatprep.subr.bf16.mxu0 0
      %3138 = vmatpush1.bf16.msra.mxu0 %v3117
      %3139 = vmatprep.subr.bf16.mxu0 0
      %3140 = vmatpush1.bf16.msra.mxu0 %v3118
      %3141 = vmatprep.subr.bf16.mxu0 0
      %3142 = vmatpush1.bf16.msra.mxu0 %v3119
      %3143 = vmatprep.subr.bf16.mxu0 0
      %3144 = vmatpush1.bf16.msra.mxu0 %v3120
      %3145 = vmatprep.subr.bf16.mxu0 0
      %3146 = vmatpush1.bf16.msra.mxu0 0
      %3147 = vmatprep.subr.bf16.mxu0 0
      %3148 = vmatpush1.bf16.msra.mxu0 0
      %3149 = vmatprep.subr.bf16.mxu0 0
      %3150 = vmatpush1.bf16.msra.mxu0 0
      %3151 = vmatprep.subr.bf16.mxu0 0
      %3152 = vmatpush1.bf16.msra.mxu0 0
      %3153 = vmatprep.subr.bf16.mxu0 0
      %3154 = vmatpush1.bf16.msra.mxu0 0
      %3155 = vmatprep.subr.bf16.mxu0 0
      %3156 = vmatpush1.bf16.msra.mxu0 0
      %3157 = vmatprep.subr.bf16.mxu0 0
      %3158 = vmatpush1.bf16.msra.mxu0 0
      %3159 = vmatprep.subr.bf16.mxu0 0
      %3160 = vmatpush1.bf16.msra.mxu0 0
      %3161 = vmatprep.mubr.bf16.mxu0 0
      %3162 = vmatmul.mubr.bf16.gmra.mrb[0].mxu0 %v3080
      %v3163 = vpop.f32.mrb[0].mxu0
      %v3164 = vadd.f32 %v3050, %v3163
      %v3165 = vpop.f32.mrb[0].mxu0
      %v3166 = vpop.f32.mrb[0].mxu0
      %v3167 = vpop.f32.mrb[0].mxu0
      %3168 = vdwg.mxu0
      %3169 = vst [vmem:[%s222] sm:$0xff] %v3164
      %p3170 = scmp.lt.s32.totalorder %s16, 1
      %s3171 = scalar_select %p3170, %s16, 1
      %s3172 = smul.addr %s3171, 8
      %s3173 = scalar_lea.vmem %s5, %s3172
      // Predicated region
      $region41: #{vit_forward.1} parent=39 // pred_check
        %p3174 = pneg %p144
      $region42: #{vit_forward.1} parent=39 // pred_check_branch
        %3176 = sbr.rel (%p3174) target = $region44
      $region43: #{vit_forward.1} parent=39 // pred_region
        _
      $region44: #{vit_forward.1} parent=39 // pred_fallthru
        _
    $region40: #{vit_forward.1} parent=5 // pred_fallthru
      _
    %p3177 = scmp.le.s32.totalorder 2, %s11
    // Predicated region
    $region45: #{vit_forward.1} parent=5 // pred_check
      %p3178 = pneg %p3177
    $region46: #{vit_forward.1} parent=5 // pred_check_branch
      %3180 = sbr.rel (%p3178) target = $region48
    $region47: #{vit_forward.1} parent=5 // pred_region
      %s3181 = ssub.s32 %s11, 2
      // Predicated region
      $region49: #{vit_forward.1} parent=47 // pred_check
        %p3182 = pneg %p150
      $region50: #{vit_forward.1} parent=47 // pred_check_branch
        %3184 = sbr.rel (%p3182) target = $region52
      $region51: #{vit_forward.1} parent=47 // pred_region
        %p3185 = scmp.lt.s32.totalorder %s17, 1
        %s3186 = scalar_select %p3185, %s17, 1
        %s3187 = smul.addr %s3186, 8
        %s3188 = scalar_lea.vmem %s5, %s3187
      $region52: #{vit_forward.1} parent=47 // pred_fallthru
        _
    $region48: #{vit_forward.1} parent=5 // pred_fallthru
      _
  $region6: #{vit_forward.1} parent=0 // loop_footer
    %s15 = sadd.s32 1, %s11
  $region7: #{vit_forward.1} parent=0 // loop_footer_branch
    %10 = sbr.rel target = $region3
  $region8: #{vit_forward.1} parent=0 // loop_exit
    _

</llo_original>
